<compile_context>
chip_gen: v7x
topology: tpu7x:2x2x1
jax: 0.10.0
libtpu: 0.0.40
codegen_flags: <defaults>
</compile_context>

<pallas_src>
import functools

import jax
import jax.numpy as jnp
from jax import lax
from jax.experimental import pallas as pl
from jax.experimental.pallas import tpu as pltpu


def _round_up(x, m):
    return ((x + m - 1) // m) * m


def _cdiv(a, b):
    return -(-a // b)


# -----------------------------------------------------------------------------
# Fused Pallas kernel: gated-attention MIL aggregation + resampler (all levels)
# -----------------------------------------------------------------------------
def fused_abmil_resampler_kernel(
        meta_ref,                              # SMEM (4,T) i32: [level, n_valid, first, last]
        x_ref,                                 # (1, tile_n, E)  bf16
        mask_ref,                              # (1, 1, tile_n)  bf16  lane-major 0/1 mask
        wab_ref, bab_ref,                      # (1, E, 2D) bf16 / (1, 1, 2D) f32
        wct_ref, bc_ref,                       # (1, H_pad, D) bf16 / (1, H_pad, 1) f32
        wr_ref, br_ref,                        # (E, hidden) bf16 / (1, hidden) f32 (LN folded)
        out_ref,                               # (1, 1, H_pad, hidden) f32
        m_scr, l_scr, acc_scr,                 # (H_pad,1),(H_pad,1),(H_pad,E) f32 scratch
        *, attn_dim):
    t = pl.program_id(1)
    n_valid = meta_ref[1, t]                   # valid rows in this tile (>= 1 by construction)

    @pl.when(meta_ref[2, t] == 1)              # first tile of this pyramid level
    def _init():
        m_scr[...] = jnp.full(m_scr.shape, -1e30, m_scr.dtype)
        l_scr[...] = jnp.zeros_like(l_scr)
        acc_scr[...] = jnp.zeros_like(acc_scr)

    x = x_ref[0]                               # (tile_n, E) bf16
    msk = mask_ref[0]                          # (1, tile_n) bf16

    # ---- Attn_Net_Gated (dropout = identity in eval) ------------------------
    g = jnp.dot(x, wab_ref[0], preferred_element_type=jnp.float32) + bab_ref[0]
    a_g = jnp.tanh(g[:, :attn_dim])
    # sigmoid(z) == 0.5*(tanh(z/2)+1): one EUP op instead of exp + reciprocal.
    b_g = 0.5 * (jnp.tanh(0.5 * g[:, attn_dim:]) + 1.0)
    ab = (a_g * b_g).astype(jnp.bfloat16)      # (tile_n, D)

    # Scores in (head, patch) orientation: heads on sublanes, patches on lanes,
    # so the lane-major mask row broadcasts with no relayout and the matmul
    # N-dimension is tile_n instead of the head count.
    att = lax.dot_general(
        wct_ref[0], ab, dimension_numbers=(((1,), (1,)), ((), ())),
        preferred_element_type=jnp.float32) + bc_ref[0]          # (H_pad, tile_n)

    # PyTorch semantics: A[mask == 0] = 1e-9 (value fill, NOT -inf).
    att = jnp.where(msk == 0, jnp.float32(1e-9), att)
    # Tile padding beyond this level's patch count is excluded from the softmax.
    pos = lax.broadcasted_iota(jnp.int32, (1, att.shape[1]), 1)
    att = jnp.where(pos >= n_valid, jnp.float32(-1e30), att)

    # ---- Online softmax over the patch (lane) axis ---------------------------
    m_prev = m_scr[...]                                          # (H_pad, 1)
    m_tile = jnp.max(att, axis=1, keepdims=True)
    m_new = jnp.maximum(m_prev, m_tile)
    p = jnp.exp(att - m_new)                                     # (H_pad, tile_n)

    # Only pay the (H_pad, E) accumulator read-scale-write when the max grew.
    grew = jnp.sum(jnp.where(m_tile > m_prev, 1.0, 0.0)) > 0.0

    @pl.when(grew)
    def _rescale():
        corr = jnp.exp(m_prev - m_new)
        l_scr[...] = corr * l_scr[...]
        acc_scr[...] = corr * acc_scr[...]
        m_scr[...] = m_new

    l_scr[...] += jnp.sum(p, axis=1, keepdims=True)
    acc_scr[...] += jnp.dot(p.astype(jnp.bfloat16), x,
                            preferred_element_type=jnp.float32)  # (H_pad, E)

    @pl.when(meta_ref[3, t] == 1)              # last tile of this pyramid level
    def _finalize():
        agg = acc_scr[...] * pl.reciprocal(l_scr[...], approx=True)   # (H_pad, E)
        # LayerNorm over the embedding axis; gamma/beta are folded into wr/br.
        mu = jnp.mean(agg, axis=1, keepdims=True)
        var = jnp.mean((agg - mu) ** 2, axis=1, keepdims=True)
        normed = (agg - mu) * lax.rsqrt(var + 1e-5)
        out = jnp.dot(normed.astype(jnp.bfloat16), wr_ref[...],
                      preferred_element_type=jnp.float32) + br_ref[...]
        out_ref[0, 0] = jnp.maximum(out, 0.0)                         # ReLU


# -----------------------------------------------------------------------------
# Packing helpers (should be hoisted out of the per-call path in production)
# -----------------------------------------------------------------------------
def pack_patch_inputs(feas, masks, tile_n):
    """Pad each level to a tile_n multiple, concatenate along the patch axis, cast to
    bf16, store the 0/1 mask lane-major, and build per-tile SMEM metadata.
    In training/serving do this once where the patch embeddings are produced."""
    xs, ms = [], []
    level, valid, first, last = [], [], [], []
    for l, (f, m) in enumerate(zip(feas, masks)):
        nl = f.shape[1]
        nt = _cdiv(nl, tile_n)
        pad = nt * tile_n - nl
        xs.append(jnp.pad(jnp.asarray(f, jnp.bfloat16), ((0, 0), (0, pad), (0, 0))))
        ms.append(jnp.pad(jnp.asarray(m, jnp.bfloat16), ((0, 0), (0, pad))))
        for j in range(nt):
            level.append(l)
            valid.append(min(tile_n, nl - j * tile_n))   # >= 1: no dead tiles
            first.append(1 if j == 0 else 0)
            last.append(1 if j == nt - 1 else 0)
    x_cat = jnp.concatenate(xs, axis=1)                   # (B, N_cat, E) bf16
    m_cat = jnp.concatenate(ms, axis=1)[:, None, :]       # (B, 1, N_cat) bf16 lane-major
    meta = jnp.array([level, valid, first, last], dtype=jnp.int32)   # (4, T_flat)
    return x_cat, m_cat, meta


def pack_abmil_params(att_params, resampler_params):
    """Fuse wa|wb, transpose/pad wc to (h_pad, d_pad), pad attn_dim & hidden to 128
    multiples, and fold the LayerNorm affine into the bias-free resampler Linear.
    Weights are static -> do this once, not per call."""
    E, d = att_params[0][0].shape
    assert E % 128 == 0, "embed_dim must be a multiple of 128 (512 / 1024 in WPathVLM)"
    d_pad = _round_up(d, 128)                 # keeps g[:, :D]/g[:, D:] on lane boundaries
    heads = [p[4].shape[1] for p in att_params]
    h_pad = _round_up(max(heads), 128)

    wab, bab, wct, bct = [], [], [], []
    for (wa, ba, wb, bb, wc, bc) in att_params:
        h = wc.shape[1]
        wa_p = jnp.pad(jnp.asarray(wa, jnp.float32), ((0, 0), (0, d_pad - d)))
        wb_p = jnp.pad(jnp.asarray(wb, jnp.float32), ((0, 0), (0, d_pad - d)))
        ba_p = jnp.pad(jnp.asarray(ba, jnp.float32), (0, d_pad - d))
        bb_p = jnp.pad(jnp.asarray(bb, jnp.float32), (0, d_pad - d))
        wab.append(jnp.concatenate([wa_p, wb_p], axis=1))                 # (E, 2*d_pad)
        bab.append(jnp.concatenate([ba_p, bb_p])[None, :])                # (1, 2*d_pad)
        wct.append(jnp.pad(jnp.asarray(wc, jnp.float32).T,
                           ((0, h_pad - h), (0, d_pad - d))))             # (h_pad, d_pad)
        bct.append(jnp.pad(jnp.asarray(bc, jnp.float32), (0, h_pad - h))[:, None])

    lng, lnb, wr = resampler_params
    wr = jnp.asarray(wr, jnp.float32)
    hidden = wr.shape[1]
    hidden_pad = _round_up(hidden, 128)       # lane-dense output stores
    wr_scaled = jnp.pad(jnp.asarray(lng, jnp.float32)[:, None] * wr,
                        ((0, 0), (0, hidden_pad - hidden)))
    br = jnp.pad(jnp.asarray(lnb, jnp.float32)[None, :] @ wr,
                 ((0, 0), (0, hidden_pad - hidden)))                      # (1, hidden_pad)

    packed = dict(
        wab=jnp.stack(wab).astype(jnp.bfloat16),
        bab=jnp.stack(bab).astype(jnp.float32),
        wct=jnp.stack(wct).astype(jnp.bfloat16),
        bct=jnp.stack(bct).astype(jnp.float32),
        wr=wr_scaled.astype(jnp.bfloat16),
        br=br.astype(jnp.float32),
    )
    dims = dict(E=E, d_pad=d_pad, h_pad=h_pad, heads=heads,
                hidden=hidden, hidden_pad=hidden_pad, n_level=len(att_params))
    return packed, dims


# -----------------------------------------------------------------------------
# pallas_call wrapper
# -----------------------------------------------------------------------------
def _abmil_resampler_call(x_cat, m_cat, meta, packed, dims, B, *, tile_n,
                          vmem_limit_bytes=None):
    E, d_pad, h_pad = dims['E'], dims['d_pad'], dims['h_pad']
    hidden, hidden_pad = dims['hidden'], dims['hidden_pad']
    heads, L = dims['heads'], dims['n_level']
    d2 = 2 * d_pad
    n_cat = int(x_cat.shape[1])
    t_flat = int(meta.shape[1])

    if vmem_limit_bytes is None:
        # tile_n = 1024-2048 fits comfortably in 48 MiB across v5e/v6e/v7x
        # (v5e/v6e have 128 MiB VMEM and can go higher; v7x only has 64 MiB physical).
        vmem_limit_bytes = (48 if tile_n >= 1024 else 32) * 1024 * 1024

    flops = B * (n_cat * (2 * E * d2 + 2 * d_pad * h_pad + 2 * E * h_pad)
                 + L * 2 * h_pad * E * hidden_pad)
    transcendentals = B * n_cat * (d2 + h_pad)
    bytes_accessed = (x_cat.size * 2 + m_cat.size * 2
                      + B * (packed['wab'].size * 2 + packed['bab'].size * 4
                             + packed['wct'].size * 2 + packed['bct'].size * 4)
                      + packed['wr'].size * 2 + packed['br'].size * 4
                      + L * B * h_pad * hidden_pad * 4)

    kernel = functools.partial(fused_abmil_resampler_kernel, attn_dim=d_pad)

    out = pl.pallas_call(
        kernel,
        out_shape=jax.ShapeDtypeStruct((L, B, h_pad, hidden_pad), jnp.float32),
        grid_spec=pltpu.PrefetchScalarGridSpec(
            num_scalar_prefetch=1,
            grid=(B, t_flat),
            in_specs=[
                pl.BlockSpec((1, tile_n, E), lambda b, t, mt: (b, t, 0)),          # x
                pl.BlockSpec((1, 1, tile_n), lambda b, t, mt: (b, 0, t)),          # mask
                pl.BlockSpec((1, E, d2), lambda b, t, mt: (mt[0, t], 0, 0)),       # wa|wb
                pl.BlockSpec((1, 1, d2), lambda b, t, mt: (mt[0, t], 0, 0)),       # ba|bb
                pl.BlockSpec((1, h_pad, d_pad), lambda b, t, mt: (mt[0, t], 0, 0)),# wc^T
                pl.BlockSpec((1, h_pad, 1), lambda b, t, mt: (mt[0, t], 0, 0)),    # bc
                # wr/br block indices never change; pipeline_mode=pl.Buffered(1) would
                # free their second VMEM copy for production hidden sizes (~4 MiB bf16).
                pl.BlockSpec((E, hidden_pad), lambda b, t, mt: (0, 0)),            # folded wr
                pl.BlockSpec((1, hidden_pad), lambda b, t, mt: (0, 0)),            # folded bias
            ],
            out_specs=pl.BlockSpec((1, 1, h_pad, hidden_pad),
                                   lambda b, t, mt: (mt[0, t], b, 0, 0)),
            scratch_shapes=[
                pltpu.VMEM((h_pad, 1), jnp.float32),     # running max
                pltpu.VMEM((h_pad, 1), jnp.float32),     # running softmax denom
                pltpu.VMEM((h_pad, E), jnp.float32),     # running weighted sum
            ],
        ),
        compiler_params=pltpu.CompilerParams(
            # Batch is the leading "parallel" axis so v7x's two TensorCores split work.
            # TODO(synk): for B == 1 serving add an explicit core-split grid axis.
            dimension_semantics=("parallel", "arbitrary"),
            vmem_limit_bytes=vmem_limit_bytes,
        ),
        cost_estimate=pl.CostEstimate(
            flops=int(flops),
            transcendentals=int(transcendentals),
            bytes_accessed=int(bytes_accessed)),
    )(meta, x_cat, m_cat, packed['wab'], packed['bab'], packed['wct'],
      packed['bct'], packed['wr'], packed['br'])

    return [out[l, :, :heads[l], :hidden] for l in range(L)]


def wpath_abmil_resampler(feas, masks, att_params, resampler_params,
                          *, tile_n=1024, vmem_limit_bytes=None):
    """Fused gated-attention MIL aggregation + resampler for all pyramid levels.

    feas:  list of (B, N_l, E) per-level patch embeddings
    masks: list of (B, N_l) patch masks (1 = valid patch, 0 = padded patch)
    att_params: per-level (wa(E,D), ba(D,), wb(E,D), bb(D,), wc(D,H_l), bc(H_l,))
    resampler_params: (ln_gamma(E,), ln_beta(E,), wr(E, hidden))
    returns: list of (B, H_l, hidden) f32 aggregated + resampled WSI embeddings.
    """
    B = feas[0].shape[0]
    assert len(feas) == len(masks) == len(att_params)
    assert all(f.shape[0] == B and f.shape[1] >= 1 for f in feas)
    packed, dims = pack_abmil_params(att_params, resampler_params)
    x_cat, m_cat, meta = pack_patch_inputs(feas, masks, tile_n)
    return _abmil_resampler_call(x_cat, m_cat, meta, packed, dims, B,
                                 tile_n=tile_n, vmem_limit_bytes=vmem_limit_bytes)


# -----------------------------------------------------------------------------
# Pure-JAX reference (one level) for correctness check
# -----------------------------------------------------------------------------
def abmil_resampler_ref(x, mask, level_params, resampler_params):
    wa, ba, wb, bb, wc, bc = level_params
    lng, lnb, wr = resampler_params
    B, N, E = x.shape
    xf = x.reshape(B * N, E)
    a = jnp.tanh(xf @ wa + ba)
    b = jax.nn.sigmoid(xf @ wb + bb)
    A = (a * b) @ wc + bc
    mf = mask.reshape(B * N, 1)
    A = jnp.where(mf == 0, 1e-9, A)
    A = A.reshape(B, N, -1)
    A = jax.nn.softmax(A, axis=1)
    agg = jnp.einsum('bnh,bne->bhe', A, x)
    mu = jnp.mean(agg, axis=-1, keepdims=True)
    var = jnp.mean((agg - mu) ** 2, axis=-1, keepdims=True)
    normed = (agg - mu) / jnp.sqrt(var + 1e-5) * lng + lnb
    return jax.nn.relu(normed @ wr)


# -----------------------------------------------------------------------------
# WPathVLM.forward glue (up to the LLM call)
# -----------------------------------------------------------------------------
def wpathvlm_forward(params, feas, masks, input_ids, attention_mask, labels,
                     image_token_id, use_pallas=True, tile_n=1024):
    if use_pallas:
        agged = wpath_abmil_resampler(feas, masks, params['att_net'],
                                      params['resampler'], tile_n=tile_n)
    else:
        agged = [abmil_resampler_ref(feas[l], masks[l], params['att_net'][l],
                                     params['resampler'])
                 for l in range(len(feas))]

    emb = params['emb_table']
    token_embs = jnp.take(emb, input_ids, axis=0)                     # (B, T, hidden)
    B = input_ids.shape[0]
    img_tok = jnp.broadcast_to(emb[image_token_id][None, None, :],
                               (B, 1, emb.shape[1]))
    agged_cat = jnp.concatenate(agged, axis=1)                        # (B, sum(H), hidden)
    fusion = jnp.concatenate([img_tok, agged_cat, token_embs], axis=1)

    new_len = fusion.shape[1]
    pad_len = new_len - attention_mask.shape[1]
    att = jnp.concatenate(
        [jnp.ones((B, pad_len), dtype=attention_mask.dtype), attention_mask], axis=1)
    lab = jnp.concatenate(
        [jnp.full((B, pad_len), -100, dtype=labels.dtype), labels], axis=1)

    # TODO(synk): the downstream AutoModelForCausalLM forward (self.llm(...)) has no
    # clean Pallas equivalent here; we return the fused embeddings / padded mask / labels.
    return fusion, att, lab


# -----------------------------------------------------------------------------
# Deterministic parameter construction + demo
# -----------------------------------------------------------------------------
def make_params(key, embed_dim, attn_dim, heads_per_level, hidden, vocab):
    n_level = len(heads_per_level)
    keys = jax.random.split(key, 6 * n_level + 4)
    ki = iter(range(len(keys)))
    att_net = []
    for H in heads_per_level:
        wa = jax.random.normal(keys[next(ki)], (embed_dim, attn_dim), jnp.float32) * 0.02
        ba = jax.random.normal(keys[next(ki)], (attn_dim,), jnp.float32) * 0.02
        wb = jax.random.normal(keys[next(ki)], (embed_dim, attn_dim), jnp.float32) * 0.02
        bb = jax.random.normal(keys[next(ki)], (attn_dim,), jnp.float32) * 0.02
        wc = jax.random.normal(keys[next(ki)], (attn_dim, H), jnp.float32) * 0.02
        bc = jax.random.normal(keys[next(ki)], (H,), jnp.float32) * 0.02
        att_net.append((wa, ba, wb, bb, wc, bc))
    lng = 1.0 + 0.1 * jax.random.normal(keys[next(ki)], (embed_dim,), jnp.float32)
    lnb = 0.05 * jax.random.normal(keys[next(ki)], (embed_dim,), jnp.float32)
    wr = jax.random.normal(keys[next(ki)], (embed_dim, hidden), jnp.float32) * 0.02
    emb_table = jax.random.normal(keys[next(ki)], (vocab, hidden), jnp.float32) * 0.02
    return {'att_net': att_net, 'resampler': (lng, lnb, wr), 'emb_table': emb_table}


if __name__ == "__main__":
    key = jax.random.PRNGKey(0)

    # WPathVLM defaults: embed_dim=512, D=embed_dim/2=256, n_heads='32,16,8', n_level=3.
    # Small-but-representative ragged patch counts; llm hidden kept small (128).
    B, T = 2, 8
    EMBED_DIM, ATTN_DIM, HIDDEN, VOCAB = 512, 256, 128, 64
    HEADS = [32, 16, 8]
    N_PATCHES = [640, 384, 160]     # ragged levels: exercises multi-tile + partial tiles
    TILE_N = 256                    # small demo tile; production default is 1024
    IMAGE_TOKEN_ID = 5

    kp, kf0, kf1, kf2, kid = jax.random.split(key, 5)
    params = make_params(kp, EMBED_DIM, ATTN_DIM, HEADS, HIDDEN, VOCAB)

    feas = [jax.random.normal(k, (B, n, EMBED_DIM), jnp.float32)
            for k, n in zip((kf0, kf1, kf2), N_PATCHES)]
    # masks: 1 for real patches, 0 for padded patches (batch 1: last quarter padded)
    masks = []
    for n in N_PATCHES:
        m = jnp.ones((B, n), jnp.int32)
        m = m.at[1, n - n // 4:].set(0)
        masks.append(m)

    input_ids = jax.random.randint(kid, (B, T), 0, VOCAB, dtype=jnp.int32)
    attention_mask = jnp.ones((B, T), jnp.int32)
    labels = jnp.where(attention_mask == 1, input_ids, -100).astype(jnp.int32)

    fusion, att, lab = wpathvlm_forward(params, feas, masks, input_ids,
                                        attention_mask, labels, IMAGE_TOKEN_ID,
                                        use_pallas=True, tile_n=TILE_N)
    jax.block_until_ready(fusion)

    # correctness check vs pure-JAX f32 reference (kernel uses bf16 MXU operands)
    fusion_ref, att_ref, lab_ref = wpathvlm_forward(params, feas, masks, input_ids,
                                                    attention_mask, labels,
                                                    IMAGE_TOKEN_ID, use_pallas=False)
    assert fusion.shape == (B, 1 + sum(HEADS) + T, HIDDEN)
    max_err = jnp.max(jnp.abs(fusion - fusion_ref))
    assert jnp.allclose(fusion, fusion_ref, rtol=3e-2, atol=3e-2), f"max|diff|={max_err}"
    assert jnp.array_equal(att, att_ref) and jnp.array_equal(lab, lab_ref)

    print("KERNEL_OK")
</pallas_src>

<mosaic_0001>
module attributes {stable_mosaic.version = 11 : i64} {
  func.func @fused_abmil_resampler_kernel(%arg0: i32, %arg1: i32, %arg2: memref<4x6xi32, #tpu.memory_space<smem>>, %arg3: memref<1x256x512xbf16, #tpu.memory_space<vmem>>, %arg4: memref<1x1x256xbf16, #tpu.memory_space<vmem>>, %arg5: memref<1x512x512xbf16, #tpu.memory_space<vmem>>, %arg6: memref<1x1x512xf32, #tpu.memory_space<vmem>>, %arg7: memref<1x128x256xbf16, #tpu.memory_space<vmem>>, %arg8: memref<1x128x1xf32, #tpu.memory_space<vmem>>, %arg9: memref<512x128xbf16, #tpu.memory_space<vmem>>, %arg10: memref<1x128xf32, #tpu.memory_space<vmem>>, %arg11: memref<1x1x128x128xf32, #tpu.memory_space<vmem>>, %arg12: memref<128x1xf32, #tpu.memory_space<vmem>>, %arg13: memref<128x1xf32, #tpu.memory_space<vmem>>, %arg14: memref<128x512xf32, #tpu.memory_space<vmem>>) attributes {dimension_semantics = [#tpu.dimension_semantics<parallel>, #tpu.dimension_semantics<arbitrary>], iteration_bounds = array<i64: 2, 6>, scalar_prefetch = 1 : i64, scratch_operands = 3 : i64, tpu.core_type = #tpu.core_type<tc>, window_params = [{transform_indices = @transform_0, window_bounds = array<i64: 1, 256, 512>}, {transform_indices = @transform_1, window_bounds = array<i64: 1, 1, 256>}, {transform_indices = @transform_2, window_bounds = array<i64: 1, 512, 512>}, {transform_indices = @transform_3, window_bounds = array<i64: 1, 1, 512>}, {transform_indices = @transform_4, window_bounds = array<i64: 1, 128, 256>}, {transform_indices = @transform_5, window_bounds = array<i64: 1, 128, 1>}, {pipeline_mode = #tpu.pipeline_mode<synchronous>, transform_indices = @transform_6, window_bounds = array<i64: 512, 128>}, {pipeline_mode = #tpu.pipeline_mode<synchronous>, transform_indices = @transform_7, window_bounds = array<i64: 1, 128>}, {transform_indices = @transform_8, window_bounds = array<i64: 1, 1, 128, 128>}]} {
    %c1 = arith.constant 1 : index
    %0 = arith.index_cast %arg1 : i32 to index
    %1 = memref.load %arg2[%c1, %0] : memref<4x6xi32, #tpu.memory_space<smem>>
    %c2 = arith.constant 2 : index
    %2 = arith.index_cast %arg1 : i32 to index
    %3 = memref.load %arg2[%c2, %2] : memref<4x6xi32, #tpu.memory_space<smem>>
    %c1_i32 = arith.constant 1 : i32
    %4 = arith.cmpi eq, %3, %c1_i32 : i32
    %5 = arith.extui %4 : i1 to i32
    %c0_i32 = arith.constant 0 : i32
    %6 = arith.cmpi ne, %5, %c0_i32 : i32
    scf.if %6 {
      %cst_44 = arith.constant -1.000000e+30 : f32
      %83 = vector.broadcast %cst_44 : f32 to vector<128x1xf32>
      %c0_45 = arith.constant 0 : index
      %c0_46 = arith.constant 0 : index
      %84 = vector.load %arg12[%c0_45, %c0_46] : memref<128x1xf32, #tpu.memory_space<vmem>>, vector<128x1xf32>
      tpu.vector_store %arg12[%c0_45, %c0_46], %83 {strides = array<i32>} : memref<128x1xf32, #tpu.memory_space<vmem>>, vector<128x1xf32>,
      %cst_47 = arith.constant 0.000000e+00 : f32
      %85 = vector.broadcast %cst_47 : f32 to vector<128x1xf32>
      %c0_48 = arith.constant 0 : index
      %c0_49 = arith.constant 0 : index
      %86 = vector.load %arg13[%c0_48, %c0_49] : memref<128x1xf32, #tpu.memory_space<vmem>>, vector<128x1xf32>
      tpu.vector_store %arg13[%c0_48, %c0_49], %85 {strides = array<i32>} : memref<128x1xf32, #tpu.memory_space<vmem>>, vector<128x1xf32>,
      %cst_50 = arith.constant 0.000000e+00 : f32
      %87 = vector.broadcast %cst_50 : f32 to vector<128x512xf32>
      %c0_51 = arith.constant 0 : index
      %c0_52 = arith.constant 0 : index
      %88 = vector.load %arg14[%c0_51, %c0_52] : memref<128x512xf32, #tpu.memory_space<vmem>>, vector<128x512xf32>
      tpu.vector_store %arg14[%c0_51, %c0_52], %87 {strides = array<i32>} : memref<128x512xf32, #tpu.memory_space<vmem>>, vector<128x512xf32>,
    } else {
    }
    %c0 = arith.constant 0 : index
    %c0_0 = arith.constant 0 : index
    %c0_1 = arith.constant 0 : index
    %7 = vector.load %arg3[%c0, %c0_0, %c0_1] : memref<1x256x512xbf16, #tpu.memory_space<vmem>>, vector<1x256x512xbf16>
    %8 = vector.shape_cast %7 : vector<1x256x512xbf16> to vector<256x512xbf16>
    %c0_2 = arith.constant 0 : index
    %c0_3 = arith.constant 0 : index
    %c0_4 = arith.constant 0 : index
    %9 = vector.load %arg4[%c0_2, %c0_3, %c0_4] : memref<1x1x256xbf16, #tpu.memory_space<vmem>>, vector<1x1x256xbf16>
    %10 = vector.shape_cast %9 : vector<1x1x256xbf16> to vector<1x256xbf16>
    %c0_5 = arith.constant 0 : index
    %c0_6 = arith.constant 0 : index
    %c0_7 = arith.constant 0 : index
    %11 = vector.load %arg5[%c0_5, %c0_6, %c0_7] : memref<1x512x512xbf16, #tpu.memory_space<vmem>>, vector<1x512x512xbf16>
    %12 = vector.shape_cast %11 : vector<1x512x512xbf16> to vector<512x512xbf16>
    %cst = arith.constant dense<0.000000e+00> : vector<256x512xf32>
    %13 = tpu.matmul %8, %12, %cst {dimension_numbers = #tpu.dot_dimension_numbers<[1], [0], [0], [1], [0, 0, 1, 1], [], []>} : vector<256x512xbf16>, vector<512x512xbf16>, vector<256x512xf32> -> vector<256x512xf32>
    %c0_8 = arith.constant 0 : index
    %c0_9 = arith.constant 0 : index
    %c0_10 = arith.constant 0 : index
    %14 = vector.load %arg6[%c0_8, %c0_9, %c0_10] : memref<1x1x512xf32, #tpu.memory_space<vmem>>, vector<1x1x512xf32>
    %15 = vector.shape_cast %14 : vector<1x1x512xf32> to vector<1x512xf32>
    %16 = vector.broadcast %15 : vector<1x512xf32> to vector<256x512xf32>
    %17 = arith.addf %13, %16 : vector<256x512xf32>
    %18 = vector.extract_strided_slice %17 {offsets = [0, 0], sizes = [256, 256], strides = [1, 1]} : vector<256x512xf32> to vector<256x256xf32>
    %19 = math.tanh %18 : vector<256x256xf32>
    %20 = vector.extract_strided_slice %17 {offsets = [0, 256], sizes = [256, 256], strides = [1, 1]} : vector<256x512xf32> to vector<256x256xf32>
    %cst_11 = arith.constant 5.000000e-01 : f32
    %21 = vector.broadcast %cst_11 : f32 to vector<256x256xf32>
    %22 = arith.mulf %21, %20 : vector<256x256xf32>
    %23 = math.tanh %22 : vector<256x256xf32>
    %cst_12 = arith.constant 1.000000e+00 : f32
    %24 = vector.broadcast %cst_12 : f32 to vector<256x256xf32>
    %25 = arith.addf %23, %24 : vector<256x256xf32>
    %cst_13 = arith.constant 5.000000e-01 : f32
    %26 = vector.broadcast %cst_13 : f32 to vector<256x256xf32>
    %27 = arith.mulf %26, %25 : vector<256x256xf32>
    %28 = arith.mulf %19, %27 : vector<256x256xf32>
    %29 = arith.truncf %28 : vector<256x256xf32> to vector<256x256xbf16>
    %c0_14 = arith.constant 0 : index
    %c0_15 = arith.constant 0 : index
    %c0_16 = arith.constant 0 : index
    %30 = vector.load %arg7[%c0_14, %c0_15, %c0_16] : memref<1x128x256xbf16, #tpu.memory_space<vmem>>, vector<1x128x256xbf16>
    %31 = vector.shape_cast %30 : vector<1x128x256xbf16> to vector<128x256xbf16>
    %cst_17 = arith.constant dense<0.000000e+00> : vector<128x256xf32>
    %32 = tpu.matmul %31, %29, %cst_17 {dimension_numbers = #tpu.dot_dimension_numbers<[1], [1], [0], [0], [0, 0, 1, 0], [], []>} : vector<128x256xbf16>, vector<256x256xbf16>, vector<128x256xf32> -> vector<128x256xf32>
    %c0_18 = arith.constant 0 : index
    %c0_19 = arith.constant 0 : index
    %c0_20 = arith.constant 0 : index
    %33 = vector.load %arg8[%c0_18, %c0_19, %c0_20] : memref<1x128x1xf32, #tpu.memory_space<vmem>>, vector<1x128x1xf32>
    %34 = vector.shape_cast %33 : vector<1x128x1xf32> to vector<128x1xf32>
    %35 = vector.broadcast %34 : vector<128x1xf32> to vector<128x256xf32>
    %36 = arith.addf %32, %35 : vector<128x256xf32>
    %cst_21 = arith.constant 0.000000e+00 : bf16
    %37 = vector.broadcast %cst_21 : bf16 to vector<1x256xbf16>
    %38 = arith.cmpf oeq, %10, %37 : vector<1x256xbf16>
    %cst_22 = arith.constant 9.99999971E-10 : f32
    %39 = vector.shape_cast %38 : vector<1x256xi1> to vector<1x256xi1>
    %40 = vector.broadcast %39 : vector<1x256xi1> to vector<128x256xi1>
    %41 = vector.broadcast %cst_22 : f32 to vector<128x256xf32>
    %42 = arith.select %40, %41, %36 : vector<128x256xi1>, vector<128x256xf32>
    %43 = tpu.iota {dimensions = array<i32: 1>} : vector<1x256xi32>
    %44 = vector.broadcast %1 : i32 to vector<1x256xi32>
    %45 = arith.cmpi sge, %43, %44 : vector<1x256xi32>
    %cst_23 = arith.constant -1.000000e+30 : f32
    %46 = vector.shape_cast %45 : vector<1x256xi1> to vector<1x256xi1>
    %47 = vector.broadcast %46 : vector<1x256xi1> to vector<128x256xi1>
    %48 = vector.broadcast %cst_23 : f32 to vector<128x256xf32>
    %49 = arith.select %47, %48, %42 : vector<128x256xi1>, vector<128x256xf32>
    %c0_24 = arith.constant 0 : index
    %c0_25 = arith.constant 0 : index
    %50 = vector.load %arg12[%c0_24, %c0_25] : memref<128x1xf32, #tpu.memory_space<vmem>>, vector<128x1xf32>
    %cst_26 = arith.constant dense<0xFF800000> : vector<128xf32>
    %51 = vector.multi_reduction <maximumf>, %49, %cst_26 [1] : vector<128x256xf32> to vector<128xf32>
    %52 = vector.shape_cast %51 : vector<128xf32> to vector<128x1xf32>
    %53 = arith.maximumf %50, %52 : vector<128x1xf32>
    %54 = vector.broadcast %53 : vector<128x1xf32> to vector<128x256xf32>
    %55 = arith.subf %49, %54 : vector<128x256xf32>
    %56 = math.exp %55 : vector<128x256xf32>
    %57 = arith.cmpf ogt, %52, %50 : vector<128x1xf32>
    %cst_27 = arith.constant 1.000000e+00 : f32
    %cst_28 = arith.constant 0.000000e+00 : f32
    %58 = vector.broadcast %cst_27 : f32 to vector<128x1xf32>
    %59 = vector.broadcast %cst_28 : f32 to vector<128x1xf32>
    %60 = arith.select %57, %58, %59 : vector<128x1xi1>, vector<128x1xf32>
    %61 = vector.shape_cast %60 : vector<128x1xf32> to vector<1x128x1xf32>
    %cst_29 = arith.constant dense<0.000000e+00> : vector<1xf32>
    %62 = vector.multi_reduction <add>, %61, %cst_29 [1, 2] : vector<1x128x1xf32> to vector<1xf32>
    %63 = vector.shape_cast %62 : vector<1xf32> to vector<1x1x1xf32>
    %64 = vector.extract %63[0, 0, 0] : f32 from vector<1x1x1xf32>
    %cst_30 = arith.constant 0.000000e+00 : f32
    %65 = arith.cmpf ogt, %64, %cst_30 : f32
    %66 = arith.extui %65 : i1 to i32
    %c0_i32_31 = arith.constant 0 : i32
    %67 = arith.cmpi ne, %66, %c0_i32_31 : i32
    scf.if %67 {
      %83 = arith.subf %50, %53 : vector<128x1xf32>
      %84 = math.exp %83 : vector<128x1xf32>
      %c0_44 = arith.constant 0 : index
      %c0_45 = arith.constant 0 : index
      %85 = vector.load %arg13[%c0_44, %c0_45] : memref<128x1xf32, #tpu.memory_space<vmem>>, vector<128x1xf32>
      %86 = arith.mulf %84, %85 : vector<128x1xf32>
      %c0_46 = arith.constant 0 : index
      %c0_47 = arith.constant 0 : index
      %87 = vector.load %arg13[%c0_46, %c0_47] : memref<128x1xf32, #tpu.memory_space<vmem>>, vector<128x1xf32>
      tpu.vector_store %arg13[%c0_46, %c0_47], %86 {strides = array<i32>} : memref<128x1xf32, #tpu.memory_space<vmem>>, vector<128x1xf32>,
      %c0_48 = arith.constant 0 : index
      %c0_49 = arith.constant 0 : index
      %88 = vector.load %arg14[%c0_48, %c0_49] : memref<128x512xf32, #tpu.memory_space<vmem>>, vector<128x512xf32>
      %89 = vector.broadcast %84 : vector<128x1xf32> to vector<128x512xf32>
      %90 = arith.mulf %89, %88 : vector<128x512xf32>
      %c0_50 = arith.constant 0 : index
      %c0_51 = arith.constant 0 : index
      %91 = vector.load %arg14[%c0_50, %c0_51] : memref<128x512xf32, #tpu.memory_space<vmem>>, vector<128x512xf32>
      tpu.vector_store %arg14[%c0_50, %c0_51], %90 {strides = array<i32>} : memref<128x512xf32, #tpu.memory_space<vmem>>, vector<128x512xf32>,
      %c0_52 = arith.constant 0 : index
      %c0_53 = arith.constant 0 : index
      %92 = vector.load %arg12[%c0_52, %c0_53] : memref<128x1xf32, #tpu.memory_space<vmem>>, vector<128x1xf32>
      tpu.vector_store %arg12[%c0_52, %c0_53], %53 {strides = array<i32>} : memref<128x1xf32, #tpu.memory_space<vmem>>, vector<128x1xf32>,
    } else {
    }
    %c0_32 = arith.constant 0 : index
    %c0_33 = arith.constant 0 : index
    %68 = vector.load %arg13[%c0_32, %c0_33] : memref<128x1xf32, #tpu.memory_space<vmem>>, vector<128x1xf32>
    %cst_34 = arith.constant dense<0.000000e+00> : vector<128xf32>
    %69 = vector.multi_reduction <add>, %56, %cst_34 [1] : vector<128x256xf32> to vector<128xf32>
    %70 = vector.shape_cast %69 : vector<128xf32> to vector<128x1xf32>
    %71 = arith.addf %68, %70 : vector<128x1xf32>
    %c0_35 = arith.constant 0 : index
    %c0_36 = arith.constant 0 : index
    %72 = vector.load %arg13[%c0_35, %c0_36] : memref<128x1xf32, #tpu.memory_space<vmem>>, vector<128x1xf32>
    tpu.vector_store %arg13[%c0_35, %c0_36], %71 {strides = array<i32>} : memref<128x1xf32, #tpu.memory_space<vmem>>, vector<128x1xf32>,
    %c0_37 = arith.constant 0 : index
    %c0_38 = arith.constant 0 : index
    %73 = vector.load %arg14[%c0_37, %c0_38] : memref<128x512xf32, #tpu.memory_space<vmem>>, vector<128x512xf32>
    %74 = arith.truncf %56 : vector<128x256xf32> to vector<128x256xbf16>
    %cst_39 = arith.constant dense<0.000000e+00> : vector<128x512xf32>
    %75 = tpu.matmul %74, %8, %cst_39 {dimension_numbers = #tpu.dot_dimension_numbers<[1], [0], [0], [1], [0, 0, 1, 1], [], []>} : vector<128x256xbf16>, vector<256x512xbf16>, vector<128x512xf32> -> vector<128x512xf32>
    %76 = arith.addf %73, %75 : vector<128x512xf32>
    %c0_40 = arith.constant 0 : index
    %c0_41 = arith.constant 0 : index
    %77 = vector.load %arg14[%c0_40, %c0_41] : memref<128x512xf32, #tpu.memory_space<vmem>>, vector<128x512xf32>
    tpu.vector_store %arg14[%c0_40, %c0_41], %76 {strides = array<i32>} : memref<128x512xf32, #tpu.memory_space<vmem>>, vector<128x512xf32>,
    %c3 = arith.constant 3 : index
    %78 = arith.index_cast %arg1 : i32 to index
    %79 = memref.load %arg2[%c3, %78] : memref<4x6xi32, #tpu.memory_space<smem>>
    %c1_i32_42 = arith.constant 1 : i32
    %80 = arith.cmpi eq, %79, %c1_i32_42 : i32
    %81 = arith.extui %80 : i1 to i32
    %c0_i32_43 = arith.constant 0 : i32
    %82 = arith.cmpi ne, %81, %c0_i32_43 : i32
    scf.if %82 {
      %c0_44 = arith.constant 0 : index
      %c0_45 = arith.constant 0 : index
      %83 = vector.load %arg14[%c0_44, %c0_45] : memref<128x512xf32, #tpu.memory_space<vmem>>, vector<128x512xf32>
      %c0_46 = arith.constant 0 : index
      %c0_47 = arith.constant 0 : index
      %84 = vector.load %arg13[%c0_46, %c0_47] : memref<128x1xf32, #tpu.memory_space<vmem>>, vector<128x1xf32>
      %85 = tpu.reciprocal %84 {approx = true} : vector<128x1xf32> -> vector<128x1xf32>
      %86 = vector.broadcast %85 : vector<128x1xf32> to vector<128x512xf32>
      %87 = arith.mulf %83, %86 : vector<128x512xf32>
      %cst_48 = arith.constant dense<0.000000e+00> : vector<128xf32>
      %88 = vector.multi_reduction <add>, %87, %cst_48 [1] : vector<128x512xf32> to vector<128xf32>
      %89 = vector.shape_cast %88 : vector<128xf32> to vector<128x1xf32>
      %cst_49 = arith.constant 5.120000e+02 : f32
      %90 = vector.broadcast %cst_49 : f32 to vector<128x1xf32>
      %91 = arith.divf %89, %90 : vector<128x1xf32>
      %92 = vector.broadcast %91 : vector<128x1xf32> to vector<128x512xf32>
      %93 = arith.subf %87, %92 : vector<128x512xf32>
      %94 = arith.mulf %93, %93 : vector<128x512xf32>
      %cst_50 = arith.constant dense<0.000000e+00> : vector<128xf32>
      %95 = vector.multi_reduction <add>, %94, %cst_50 [1] : vector<128x512xf32> to vector<128xf32>
      %96 = vector.shape_cast %95 : vector<128xf32> to vector<128x1xf32>
      %cst_51 = arith.constant 5.120000e+02 : f32
      %97 = vector.broadcast %cst_51 : f32 to vector<128x1xf32>
      %98 = arith.divf %96, %97 : vector<128x1xf32>
      %99 = vector.broadcast %91 : vector<128x1xf32> to vector<128x512xf32>
      %100 = arith.subf %87, %99 : vector<128x512xf32>
      %cst_52 = arith.constant 9.99999974E-6 : f32
      %101 = vector.broadcast %cst_52 : f32 to vector<128x1xf32>
      %102 = arith.addf %98, %101 : vector<128x1xf32>
      %103 = math.rsqrt %102 : vector<128x1xf32>
      %104 = vector.broadcast %103 : vector<128x1xf32> to vector<128x512xf32>
      %105 = arith.mulf %100, %104 : vector<128x512xf32>
      %106 = arith.truncf %105 : vector<128x512xf32> to vector<128x512xbf16>
      %c0_53 = arith.constant 0 : index
      %c0_54 = arith.constant 0 : index
      %107 = vector.load %arg9[%c0_53, %c0_54] : memref<512x128xbf16, #tpu.memory_space<vmem>>, vector<512x128xbf16>
      %cst_55 = arith.constant dense<0.000000e+00> : vector<128x128xf32>
      %108 = tpu.matmul %106, %107, %cst_55 {dimension_numbers = #tpu.dot_dimension_numbers<[1], [0], [0], [1], [0, 0, 1, 1], [], []>} : vector<128x512xbf16>, vector<512x128xbf16>, vector<128x128xf32> -> vector<128x128xf32>
      %c0_56 = arith.constant 0 : index
      %c0_57 = arith.constant 0 : index
      %109 = vector.load %arg10[%c0_56, %c0_57] : memref<1x128xf32, #tpu.memory_space<vmem>>, vector<1x128xf32>
      %110 = vector.broadcast %109 : vector<1x128xf32> to vector<128x128xf32>
      %111 = arith.addf %108, %110 : vector<128x128xf32>
      %cst_58 = arith.constant 0.000000e+00 : f32
      %112 = vector.broadcast %cst_58 : f32 to vector<128x128xf32>
      %113 = arith.maximumf %111, %112 : vector<128x128xf32>
      %c0_59 = arith.constant 0 : index
      %c0_60 = arith.constant 0 : index
      %c0_61 = arith.constant 0 : index
      %c0_62 = arith.constant 0 : index
      %114 = vector.load %arg11[%c0_59, %c0_60, %c0_61, %c0_62] : memref<1x1x128x128xf32, #tpu.memory_space<vmem>>, vector<1x1x128x128xf32>
      %115 = vector.shape_cast %114 : vector<1x1x128x128xf32> to vector<128x128xf32>
      %116 = vector.shape_cast %113 : vector<128x128xf32> to vector<1x1x128x128xf32>
      tpu.vector_store %arg11[%c0_59, %c0_60, %c0_61, %c0_62], %116 {strides = array<i32>} : memref<1x1x128x128xf32, #tpu.memory_space<vmem>>, vector<1x1x128x128xf32>,
    } else {
    }
    return
  }
  func.func @transform_0(%arg0: i32, %arg1: i32, %arg2: memref<4x6xi32, #tpu.memory_space<smem>>) -> (i32, i32, i32) {
    %c0_i32 = arith.constant 0 : i32
    %c0_i32_0 = arith.constant 0 : i32
    return %arg0, %arg1, %c0_i32 : i32, i32, i32
  }
  func.func @transform_1(%arg0: i32, %arg1: i32, %arg2: memref<4x6xi32, #tpu.memory_space<smem>>) -> (i32, i32, i32) {
    %c0_i32 = arith.constant 0 : i32
    %c0_i32_0 = arith.constant 0 : i32
    return %arg0, %c0_i32, %arg1 : i32, i32, i32
  }
  func.func @transform_2(%arg0: i32, %arg1: i32, %arg2: memref<4x6xi32, #tpu.memory_space<smem>>) -> (i32, i32, i32) {
    %c0 = arith.constant 0 : index
    %0 = arith.index_cast %arg1 : i32 to index
    %1 = memref.load %arg2[%c0, %0] : memref<4x6xi32, #tpu.memory_space<smem>>
    %c0_i32 = arith.constant 0 : i32
    %c0_i32_0 = arith.constant 0 : i32
    %c0_i32_1 = arith.constant 0 : i32
    return %1, %c0_i32, %c0_i32_0 : i32, i32, i32
  }
  func.func @transform_3(%arg0: i32, %arg1: i32, %arg2: memref<4x6xi32, #tpu.memory_space<smem>>) -> (i32, i32, i32) {
    %c0 = arith.constant 0 : index
    %0 = arith.index_cast %arg1 : i32 to index
    %1 = memref.load %arg2[%c0, %0] : memref<4x6xi32, #tpu.memory_space<smem>>
    %c0_i32 = arith.constant 0 : i32
    %c0_i32_0 = arith.constant 0 : i32
    %c0_i32_1 = arith.constant 0 : i32
    return %1, %c0_i32, %c0_i32_0 : i32, i32, i32
  }
  func.func @transform_4(%arg0: i32, %arg1: i32, %arg2: memref<4x6xi32, #tpu.memory_space<smem>>) -> (i32, i32, i32) {
    %c0 = arith.constant 0 : index
    %0 = arith.index_cast %arg1 : i32 to index
    %1 = memref.load %arg2[%c0, %0] : memref<4x6xi32, #tpu.memory_space<smem>>
    %c0_i32 = arith.constant 0 : i32
    %c0_i32_0 = arith.constant 0 : i32
    %c0_i32_1 = arith.constant 0 : i32
    return %1, %c0_i32, %c0_i32_0 : i32, i32, i32
  }
  func.func @transform_5(%arg0: i32, %arg1: i32, %arg2: memref<4x6xi32, #tpu.memory_space<smem>>) -> (i32, i32, i32) {
    %c0 = arith.constant 0 : index
    %0 = arith.index_cast %arg1 : i32 to index
    %1 = memref.load %arg2[%c0, %0] : memref<4x6xi32, #tpu.memory_space<smem>>
    %c0_i32 = arith.constant 0 : i32
    %c0_i32_0 = arith.constant 0 : i32
    %c0_i32_1 = arith.constant 0 : i32
    return %1, %c0_i32, %c0_i32_0 : i32, i32, i32
  }
  func.func @transform_6(%arg0: i32, %arg1: i32, %arg2: memref<4x6xi32, #tpu.memory_space<smem>>) -> (i32, i32) {
    %c0_i32 = arith.constant 0 : i32
    %c0_i32_0 = arith.constant 0 : i32
    %c0_i32_1 = arith.constant 0 : i32
    return %c0_i32, %c0_i32_0 : i32, i32
  }
  func.func @transform_7(%arg0: i32, %arg1: i32, %arg2: memref<4x6xi32, #tpu.memory_space<smem>>) -> (i32, i32) {
    %c0_i32 = arith.constant 0 : i32
    %c0_i32_0 = arith.constant 0 : i32
    %c0_i32_1 = arith.constant 0 : i32
    return %c0_i32, %c0_i32_0 : i32, i32
  }
  func.func @transform_8(%arg0: i32, %arg1: i32, %arg2: memref<4x6xi32, #tpu.memory_space<smem>>) -> (i32, i32, i32, i32) {
    %c0 = arith.constant 0 : index
    %0 = arith.index_cast %arg1 : i32 to index
    %1 = memref.load %arg2[%c0, %0] : memref<4x6xi32, #tpu.memory_space<smem>>
    %c0_i32 = arith.constant 0 : i32
    %c0_i32_0 = arith.constant 0 : i32
    %c0_i32_1 = arith.constant 0 : i32
    return %1, %arg0, %c0_i32, %c0_i32_0 : i32, i32, i32, i32
  }
}

</mosaic_0001>

<llo_original>
// kernel: tpu_custom_call.1
$region0: #{tpu_custom_call.1}
  #allocation0 [shape = 'u32[]', space=smem, size = 0x4, offset = 0x4, fixed_abs, tag = 'smem constant byte address 0x4 - core index']
  #allocation1 [shape = 'u32[144,128]{1,0:T(1,128)}', space=vmem, size = 0x12000, scoped, tag = 'internal scratch']
  #allocation2 [shape = 'f32[128,1]{1,0:T(8,128)}', space=vmem, size = 0x10000, scoped, tag = 'scratch operand']
  #allocation3 [shape = 'f32[128,1]{1,0:T(8,128)}', space=vmem, size = 0x10000, scoped, tag = 'scratch operand']
  #allocation4 [shape = 'f32[128,512]{1,0:T(8,128)}', space=vmem, size = 0x40000, scoped, tag = 'scratch operand']
  #allocation5 [shape = 's32[1]{0}', space=sflag, size = 0x4, scoped, tag = 'scoped memory for tpu_custom_call.1']
  #allocation6 [shape = 'u8[2048]{0}', space=smem, size = 0x800, scoped, tag = 'prefetched SMEM operand 0']
  %s0 = inlined_call_operand.hbm [shape: s32[4,6], index: 0, kind: input, shape index: {}]
  %s1 = inlined_call_operand.hbm [shape: bf16[2,1536,512], index: 1, kind: input, shape index: {}]
  %s2 = inlined_call_operand.vmem [shape: bf16[2,1,1536], index: 2, kind: input, shape index: {}]
  %s3 = inlined_call_operand.hbm [shape: bf16[3,512,512], index: 3, kind: input, shape index: {}]
  %s4 = inlined_call_operand.hbm [shape: f32[3,1,512], index: 4, kind: input, shape index: {}]
  %s5 = inlined_call_operand.hbm [shape: bf16[3,128,256], index: 5, kind: input, shape index: {}]
  %s6 = inlined_call_operand.vmem [shape: f32[3,128,1], index: 6, kind: input, shape index: {}]
  %s7 = inlined_call_operand.hbm [shape: bf16[512,128], index: 7, kind: input, shape index: {}]
  %s8 = inlined_call_operand.hbm [shape: f32[1,128], index: 8, kind: input, shape index: {}]
  %s9 = inlined_call_operand.hbm [shape: f32[3,2,128,128], index: 9, kind: output, shape index: {}]
  %s10 = sld [smem:[#allocation0]]
  $region101: #{tpu_custom_call.1} parent=0
    _
  %s12 = ssub.s32 1, %s10
  %s13 = scalar_select 0, %s12, %s10
  %15 = dma.hbm_to_smem %s0, 64, [#allocation6], [#allocation5]
  %16 = dma.done [#allocation5], 64
  %17 = sfence
  $region1: #{tpu_custom_call.1} parent=0
    #allocation7 [shape = 'u8[524288]{0}', space=vmem, size = 0x80000, scoped, tag = 'input window, operand 1']
    #allocation8 [shape = 's32[2]{0}', space=sflag, size = 0x8, scoped, tag = 'scoped memory for tpu_custom_call.1']
    #allocation9 [shape = 's32[2]{0}', space=sflag, size = 0x8, scoped, tag = 'scoped memory for tpu_custom_call.1']
    #allocation10 [shape = 'u8[1048576]{0}', space=vmem, size = 0x100000, scoped, tag = 'input window, operand 3']
    #allocation11 [shape = 's32[2]{0}', space=sflag, size = 0x8, scoped, tag = 'scoped memory for tpu_custom_call.1']
    #allocation12 [shape = 'u8[4096]{0}', space=vmem, size = 0x1000, scoped, tag = 'input window, operand 4']
    #allocation13 [shape = 'u8[131072]{0}', space=vmem, size = 0x20000, scoped, tag = 'input window, operand 5']
    #allocation14 [shape = 's32[2]{0}', space=sflag, size = 0x8, scoped, tag = 'scoped memory for tpu_custom_call.1']
    #allocation15 [shape = 'u8[131072]{0}', space=vmem, size = 0x20000, scoped, tag = 'input window, operand 7, single buffered']
    #allocation16 [shape = 'u8[512]{0}', space=vmem, size = 0x400, scoped, tag = 'input window, operand 8, single buffered']
    #allocation17 [shape = 's32[1]{0}', space=sflag, size = 0x4, scoped, tag = 'scoped memory for tpu_custom_call.1']
    #allocation18 [shape = 'u8[131072]{0}', space=vmem, size = 0x20000, scoped, tag = 'output window, operand 0']
    %18 = vsyncpa [#allocation8], 0
    %s19 = scalar_lea.sflag [#allocation8], 1
    %20 = vsyncpa %s19, 0
    %21 = vsyncpa [#allocation11], 0
    %s22 = scalar_lea.sflag [#allocation11], 1
    %23 = vsyncpa %s22, 0
    %24 = vsyncpa [#allocation14], 0
    %s25 = scalar_lea.sflag [#allocation14], 1
    %26 = vsyncpa %s25, 0
    %27 = vsyncpa [#allocation17], 0
    %28 = vsyncpa [#allocation9], 0
    %s29 = scalar_lea.sflag [#allocation9], 1
    %30 = vsyncpa %s29, 0
    loop: start=0, step=1, limit=14
    $region2: #{tpu_custom_call.1} parent=1 // loop_pre_header
      _
    $region3: #{tpu_custom_call.1} parent=1 // loop_header
      %s32 = sphi 0, %s36
      %p33 = scmp.ge.s32.totalorder %s32, 14
      %s39 = sphi 0, %s51
      %s40 = sphi 0, %s47
      %s41 = sphi 0, %s39
      %s42 = sphi 0, %s40
      %s43 = sphi 0, %s41
      %s44 = sphi 0, %s42
      %s56 = sphi 0, %s58
      %s59 = sphi 0, %s56
      %s60 = sphi 0, %s59
      %s76 = sphi 0, %s60
      %s84 = sphi 0, %s86
      %s87 = sphi 0, %s84
      %s88 = sphi 0, %s87
      %s104 = sphi 0, %s88
      %s112 = sphi 0, %s114
      %s115 = sphi 0, %s112
      %s116 = sphi 0, %s115
      %s132 = sphi 0, %s116
      %s140 = sphi 0, %s142
      %s143 = sphi 0, %s140
      %s144 = sphi 0, %s143
      %s160 = sphi 0, %s144
      %s168 = sphi 0, %s170
      %s171 = sphi 0, %s168
      %s172 = sphi 0, %s171
      %s188 = sphi 0, %s172
      %s196 = sphi 0, %s198
      %s199 = sphi 0, %s196
      %s200 = sphi 0, %s199
      %s216 = sphi 0, %s200
      %s220 = sphi 0, %s220
      %s222 = sphi 0, %s220
      %s223 = sphi 0, %s222
      %s237 = sphi 0, %s223
      %s241 = sphi 0, %s241
      %s243 = sphi 0, %s241
      %s244 = sphi 0, %s243
      %s258 = sphi 0, %s244
      %s268 = sphi 0, %s270
      %s271 = sphi 0, %s268
      %s272 = sphi 0, %s271
      %s288 = sphi 0, %s272
    $region4: #{tpu_custom_call.1} parent=1 // loop_header_branch
      %35 = sbr.rel (%p33) target = $region8
    $region5: #{tpu_custom_call.1} parent=1 // loop_body
      %s37 = ssub.s32 %s32, 1
      %s38 = ssub.s32 %s32, 2
      %s45 = sadd.s32 1, %s40
      %p46 = scmp.ge.s32.totalorder %s45, 6
      %s47 = scalar_select %p46, 0, %s45
      %s48 = sadd.s32 1, %s39
      %s49 = scalar_select %p46, %s48, %s39
      %p50 = scmp.ge.s32.totalorder %s49, 2
      %s51 = scalar_select %p50, 0, %s49
      %s52 = ssub.s32 %s39, %s51
      %s53 = ssub.s32 %s40, %s47
      %s54 = sor.u32 %s52, %s53
      %p55 = scmp.eq.s32.totalorder %s54, 0
      %s57 = sadd.s32 %s56, 1
      %s58 = scalar_select %p55, %s56, %s57
      %p61 = pneg %p55
      %p62 = scmp.eq.s32.totalorder %s32, 11
      %p63 = por %p61, %p62
      %p64 = scmp.ne.s32.totalorder %s56, %s59
      %p65 = scmp.eq.s32.totalorder %s32, 0
      %p66 = por %p64, %p65
      %p67 = scmp.ne.s32.totalorder %s56, %s59
      %p68 = scmp.eq.s32.totalorder %s37, 11
      %p69 = por %p67, %p68
      %p70 = scmp.ne.s32.totalorder %s59, %s60
      %p71 = scmp.eq.s32.totalorder %s37, 0
      %p72 = por %p70, %p71
      %p73 = scmp.ne.s32.totalorder %s59, %s60
      %p74 = scmp.eq.s32.totalorder %s38, 11
      %p75 = por %p73, %p74
      %p77 = scmp.ne.s32.totalorder %s60, %s76
      %p78 = scmp.eq.s32.totalorder %s38, 0
      %p79 = por %p77, %p78
      %s80 = ssub.s32 %s39, %s51
      %s81 = ssub.s32 %s40, %s47
      %s82 = sor.u32 %s80, %s81
      %p83 = scmp.eq.s32.totalorder %s82, 0
      %s85 = sadd.s32 %s84, 1
      %s86 = scalar_select %p83, %s84, %s85
      %p89 = pneg %p83
      %p90 = scmp.eq.s32.totalorder %s32, 11
      %p91 = por %p89, %p90
      %p92 = scmp.ne.s32.totalorder %s84, %s87
      %p93 = scmp.eq.s32.totalorder %s32, 0
      %p94 = por %p92, %p93
      %p95 = scmp.ne.s32.totalorder %s84, %s87
      %p96 = scmp.eq.s32.totalorder %s37, 11
      %p97 = por %p95, %p96
      %p98 = scmp.ne.s32.totalorder %s87, %s88
      %p99 = scmp.eq.s32.totalorder %s37, 0
      %p100 = por %p98, %p99
      %p101 = scmp.ne.s32.totalorder %s87, %s88
      %p102 = scmp.eq.s32.totalorder %s38, 11
      %p103 = por %p101, %p102
      %p105 = scmp.ne.s32.totalorder %s88, %s104
      %p106 = scmp.eq.s32.totalorder %s38, 0
      %p107 = por %p105, %p106
      %s108 = sld [smem:[#allocation6 + %s40]]
      %s109 = sld [smem:[#allocation6 + %s47]]
      %s110 = ssub.s32 %s108, %s109
      %p111 = scmp.eq.s32.totalorder %s110, 0
      %s113 = sadd.s32 %s112, 1
      %s114 = scalar_select %p111, %s112, %s113
      %p117 = pneg %p111
      %p118 = scmp.eq.s32.totalorder %s32, 11
      %p119 = por %p117, %p118
      %p120 = scmp.ne.s32.totalorder %s112, %s115
      %p121 = scmp.eq.s32.totalorder %s32, 0
      %p122 = por %p120, %p121
      %p123 = scmp.ne.s32.totalorder %s112, %s115
      %p124 = scmp.eq.s32.totalorder %s37, 11
      %p125 = por %p123, %p124
      %p126 = scmp.ne.s32.totalorder %s115, %s116
      %p127 = scmp.eq.s32.totalorder %s37, 0
      %p128 = por %p126, %p127
      %p129 = scmp.ne.s32.totalorder %s115, %s116
      %p130 = scmp.eq.s32.totalorder %s38, 11
      %p131 = por %p129, %p130
      %p133 = scmp.ne.s32.totalorder %s116, %s132
      %p134 = scmp.eq.s32.totalorder %s38, 0
      %p135 = por %p133, %p134
      %s136 = sld [smem:[#allocation6 + %s40]]
      %s137 = sld [smem:[#allocation6 + %s47]]
      %s138 = ssub.s32 %s136, %s137
      %p139 = scmp.eq.s32.totalorder %s138, 0
      %s141 = sadd.s32 %s140, 1
      %s142 = scalar_select %p139, %s140, %s141
      %p145 = pneg %p139
      %p146 = scmp.eq.s32.totalorder %s32, 11
      %p147 = por %p145, %p146
      %p148 = scmp.ne.s32.totalorder %s140, %s143
      %p149 = scmp.eq.s32.totalorder %s32, 0
      %p150 = por %p148, %p149
      %p151 = scmp.ne.s32.totalorder %s140, %s143
      %p152 = scmp.eq.s32.totalorder %s37, 11
      %p153 = por %p151, %p152
      %p154 = scmp.ne.s32.totalorder %s143, %s144
      %p155 = scmp.eq.s32.totalorder %s37, 0
      %p156 = por %p154, %p155
      %p157 = scmp.ne.s32.totalorder %s143, %s144
      %p158 = scmp.eq.s32.totalorder %s38, 11
      %p159 = por %p157, %p158
      %p161 = scmp.ne.s32.totalorder %s144, %s160
      %p162 = scmp.eq.s32.totalorder %s38, 0
      %p163 = por %p161, %p162
      %s164 = sld [smem:[#allocation6 + %s40]]
      %s165 = sld [smem:[#allocation6 + %s47]]
      %s166 = ssub.s32 %s164, %s165
      %p167 = scmp.eq.s32.totalorder %s166, 0
      %s169 = sadd.s32 %s168, 1
      %s170 = scalar_select %p167, %s168, %s169
      %p173 = pneg %p167
      %p174 = scmp.eq.s32.totalorder %s32, 11
      %p175 = por %p173, %p174
      %p176 = scmp.ne.s32.totalorder %s168, %s171
      %p177 = scmp.eq.s32.totalorder %s32, 0
      %p178 = por %p176, %p177
      %p179 = scmp.ne.s32.totalorder %s168, %s171
      %p180 = scmp.eq.s32.totalorder %s37, 11
      %p181 = por %p179, %p180
      %p182 = scmp.ne.s32.totalorder %s171, %s172
      %p183 = scmp.eq.s32.totalorder %s37, 0
      %p184 = por %p182, %p183
      %p185 = scmp.ne.s32.totalorder %s171, %s172
      %p186 = scmp.eq.s32.totalorder %s38, 11
      %p187 = por %p185, %p186
      %p189 = scmp.ne.s32.totalorder %s172, %s188
      %p190 = scmp.eq.s32.totalorder %s38, 0
      %p191 = por %p189, %p190
      %s192 = sld [smem:[#allocation6 + %s40]]
      %s193 = sld [smem:[#allocation6 + %s47]]
      %s194 = ssub.s32 %s192, %s193
      %p195 = scmp.eq.s32.totalorder %s194, 0
      %s197 = sadd.s32 %s196, 1
      %s198 = scalar_select %p195, %s196, %s197
      %p201 = pneg %p195
      %p202 = scmp.eq.s32.totalorder %s32, 11
      %p203 = por %p201, %p202
      %p204 = scmp.ne.s32.totalorder %s196, %s199
      %p205 = scmp.eq.s32.totalorder %s32, 0
      %p206 = por %p204, %p205
      %p207 = scmp.ne.s32.totalorder %s196, %s199
      %p208 = scmp.eq.s32.totalorder %s37, 11
      %p209 = por %p207, %p208
      %p210 = scmp.ne.s32.totalorder %s199, %s200
      %p211 = scmp.eq.s32.totalorder %s37, 0
      %p212 = por %p210, %p211
      %p213 = scmp.ne.s32.totalorder %s199, %s200
      %p214 = scmp.eq.s32.totalorder %s38, 11
      %p215 = por %p213, %p214
      %p217 = scmp.ne.s32.totalorder %s200, %s216
      %p218 = scmp.eq.s32.totalorder %s38, 0
      %p219 = por %p217, %p218
      %s221 = sadd.s32 %s220, 1
      %p224 = scmp.eq.s32.totalorder %s32, 11
      %p225 = scmp.ne.s32.totalorder %s220, %s222
      %p226 = scmp.eq.s32.totalorder %s32, 0
      %p227 = por %p225, %p226
      %p228 = scmp.ne.s32.totalorder %s220, %s222
      %p229 = scmp.eq.s32.totalorder %s37, 11
      %p230 = por %p228, %p229
      %p231 = scmp.ne.s32.totalorder %s222, %s223
      %p232 = scmp.eq.s32.totalorder %s37, 0
      %p233 = por %p231, %p232
      %p234 = scmp.ne.s32.totalorder %s222, %s223
      %p235 = scmp.eq.s32.totalorder %s38, 11
      %p236 = por %p234, %p235
      %p238 = scmp.ne.s32.totalorder %s223, %s237
      %p239 = scmp.eq.s32.totalorder %s38, 0
      %p240 = por %p238, %p239
      %s242 = sadd.s32 %s241, 1
      %p245 = scmp.eq.s32.totalorder %s32, 11
      %p246 = scmp.ne.s32.totalorder %s241, %s243
      %p247 = scmp.eq.s32.totalorder %s32, 0
      %p248 = por %p246, %p247
      %p249 = scmp.ne.s32.totalorder %s241, %s243
      %p250 = scmp.eq.s32.totalorder %s37, 11
      %p251 = por %p249, %p250
      %p252 = scmp.ne.s32.totalorder %s243, %s244
      %p253 = scmp.eq.s32.totalorder %s37, 0
      %p254 = por %p252, %p253
      %p255 = scmp.ne.s32.totalorder %s243, %s244
      %p256 = scmp.eq.s32.totalorder %s38, 11
      %p257 = por %p255, %p256
      %p259 = scmp.ne.s32.totalorder %s244, %s258
      %p260 = scmp.eq.s32.totalorder %s38, 0
      %p261 = por %p259, %p260
      %s262 = sld [smem:[#allocation6 + %s40]]
      %s263 = sld [smem:[#allocation6 + %s47]]
      %s264 = ssub.s32 %s262, %s263
      %s265 = ssub.s32 %s39, %s51
      %s266 = sor.u32 %s264, %s265
      %p267 = scmp.eq.s32.totalorder %s266, 0
      %s269 = sadd.s32 %s268, 1
      %s270 = scalar_select %p267, %s268, %s269
      %p273 = pneg %p267
      %p274 = scmp.eq.s32.totalorder %s32, 11
      %p275 = por %p273, %p274
      %p276 = scmp.ne.s32.totalorder %s268, %s271
      %p277 = scmp.eq.s32.totalorder %s32, 0
      %p278 = por %p276, %p277
      %p279 = scmp.ne.s32.totalorder %s268, %s271
      %p280 = scmp.eq.s32.totalorder %s37, 11
      %p281 = por %p279, %p280
      %p282 = scmp.ne.s32.totalorder %s271, %s272
      %p283 = scmp.eq.s32.totalorder %s37, 0
      %p284 = por %p282, %p283
      %p285 = scmp.ne.s32.totalorder %s271, %s272
      %p286 = scmp.eq.s32.totalorder %s38, 11
      %p287 = por %p285, %p286
      %p289 = scmp.ne.s32.totalorder %s272, %s288
      %p290 = scmp.eq.s32.totalorder %s38, 0
      %p291 = por %p289, %p290
      %p292 = scmp.le.s32.totalorder 1, %s32
      %p293 = scmp.lt.s32.totalorder %s32, 13
      %p294 = pnand %p292, %p293
      %p295 = pneg %p294
      // Predicated region
      $region9: #{tpu_custom_call.1} parent=5 // pred_check
        _
      $region10: #{tpu_custom_call.1} parent=5 // pred_check_branch
        %297 = sbr.rel (%p294) target = $region12
      $region11: #{tpu_custom_call.1} parent=5 // pred_region
        %s298 = ssub.s32 %s32, 1
        // Predicated region
        $region13: #{tpu_custom_call.1} parent=11 // pred_check
          %p299 = pneg %p233
        $region14: #{tpu_custom_call.1} parent=11 // pred_check_branch
          %301 = sbr.rel (%p299) target = $region16
        $region15: #{tpu_custom_call.1} parent=11 // pred_region
          %s303 = ssub.s32 4096, 4096
          %304 = vsyncadd [#allocation14], %s303
          %s305 = sshll.u32 [#allocation15], 4
          %s306 = int_to_ptr.vmem [resolvable:$true] %s305
          %311 = dma.hbm_to_vmem [thread:$0]  %s7, 4096, %s306, [#allocation14], 64, 64, 4
        $region16: #{tpu_custom_call.1} parent=11 // pred_fallthru
          _
        // Predicated region
        $region17: #{tpu_custom_call.1} parent=11 // pred_check
          %p312 = pneg %p254
        $region18: #{tpu_custom_call.1} parent=11 // pred_check_branch
          %314 = sbr.rel (%p312) target = $region20
        $region19: #{tpu_custom_call.1} parent=11 // pred_region
          %s316 = ssub.s32 16, 16
          %317 = vsyncadd [#allocation17], %s316
          %s319 = sshll.u32 [#allocation16], 4
          %s320 = int_to_ptr.vmem [resolvable:$true] %s319
          %322 = dma.hbm_to_vmem [thread:$0]  %s8, 16, %s320, [#allocation17]
        $region20: #{tpu_custom_call.1} parent=11 // pred_fallthru
          _
      $region12: #{tpu_custom_call.1} parent=5 // pred_fallthru
        _
      %p323 = scmp.lt.s32.totalorder %s32, 12
      // Predicated region
      $region21: #{tpu_custom_call.1} parent=5 // pred_check
        %p324 = pneg %p323
      $region22: #{tpu_custom_call.1} parent=5 // pred_check_branch
        %326 = sbr.rel (%p324) target = $region24
      $region23: #{tpu_custom_call.1} parent=5 // pred_region
        // Predicated region
        $region25: #{tpu_custom_call.1} parent=23 // pred_check
          %p327 = pneg %p66
        $region26: #{tpu_custom_call.1} parent=23 // pred_check_branch
          %329 = sbr.rel (%p327) target = $region28
        $region27: #{tpu_custom_call.1} parent=23 // pred_region
          %s330 = sand.u32 %s56, 1
          %s331 = scalar_lea.sflag [#allocation8], %s330
          %s332 = sand.u32 %s56, 1
          %s333 = smul.addr %s332, 512
          %s334 = scalar_lea.vmem [#allocation7], %s333
          %s335 = smul.u32 32, %s40
          %s337 = ssub.s32 8192, 8192
          %338 = vsyncadd %s331, %s337
          %s339 = smul.addr %s335, 4
          %s340 = smul.addr %s39, 768
          %s341 = sadd.s32 %s339, %s340
          %s342 = smul.addr %s341, 64
          %s343 = scalar_lea.hbm %s1, %s342
          %s344 = sshll.u32 %s334, 4
          %s345 = int_to_ptr.vmem [resolvable:$true] %s344
          %350 = dma.hbm_to_vmem [thread:$0]  %s343, 8192, %s345, %s331, 256, 256, 16
        $region28: #{tpu_custom_call.1} parent=23 // pred_fallthru
          _
        // Predicated region
        $region29: #{tpu_custom_call.1} parent=23 // pred_check
          %p351 = pneg %p94
        $region30: #{tpu_custom_call.1} parent=23 // pred_check_branch
          %353 = sbr.rel (%p351) target = $region32
        $region31: #{tpu_custom_call.1} parent=23 // pred_region
          %s354 = smul.u32 2, %s40
          %p355 = scmp.lt.s32.totalorder %s39, 1
          %s356 = scalar_select %p355, %s39, 1
          %p357 = scmp.lt.s32.totalorder %s354, 11
          %s358 = scalar_select %p357, %s354, 11
          %s359 = smul.addr %s356, 12
          %s360 = sadd.s32 %s358, %s359
          %s361 = scalar_lea.vmem %s2, %s360
          %s362 = smul.u32 2, %s40
        $region32: #{tpu_custom_call.1} parent=23 // pred_fallthru
          _
        // Predicated region
        $region33: #{tpu_custom_call.1} parent=23 // pred_check
          %p363 = pneg %p122
        $region34: #{tpu_custom_call.1} parent=23 // pred_check_branch
          %365 = sbr.rel (%p363) target = $region36
        $region35: #{tpu_custom_call.1} parent=23 // pred_region
          %s366 = sand.u32 %s32, 1
          %s367 = scalar_lea.sflag [#allocation11], %s366
          %s368 = sand.u32 %s112, 1
          %s369 = smul.addr %s368, 1024
          %s370 = scalar_lea.vmem [#allocation10], %s369
          %s371 = sld [smem:[#allocation6 + %s40]]
          %s373 = ssub.s32 16384, 16384
          %374 = vsyncadd %s367, %s373
          %s375 = smul.addr %s371, 256
          %s376 = smul.addr %s375, 64
          %s377 = scalar_lea.hbm %s3, %s376
          %s378 = sshll.u32 %s370, 4
          %s379 = int_to_ptr.vmem [resolvable:$true] %s378
          %384 = dma.hbm_to_vmem [thread:$0]  %s377, 16384, %s379, %s367, 256, 256, 16
        $region36: #{tpu_custom_call.1} parent=23 // pred_fallthru
          _
        // Predicated region
        $region37: #{tpu_custom_call.1} parent=23 // pred_check
          %p385 = pneg %p150
        $region38: #{tpu_custom_call.1} parent=23 // pred_check_branch
          %387 = sbr.rel (%p385) target = $region40
        $region39: #{tpu_custom_call.1} parent=23 // pred_region
          %s388 = sand.u32 %s32, 1
          %s389 = scalar_lea.sflag [#allocation11], %s388
          %s390 = sand.u32 %s140, 1
          %s391 = smul.addr %s390, 4
          %s392 = scalar_lea.vmem [#allocation12], %s391
          %s393 = sld [smem:[#allocation6 + %s40]]
          %s395 = ssub.s32 64, 64
          %396 = vsyncadd %s389, %s395
          %s397 = smul.addr %s393, 4
          %s398 = smul.addr %s397, 16
          %s399 = scalar_lea.hbm %s4, %s398
          %s401 = sshll.u32 %s392, 4
          %s402 = int_to_ptr.vmem [resolvable:$true] %s401
          %404 = dma.hbm_to_vmem [thread:$0]  %s399, 64, %s402, %s389
        $region40: #{tpu_custom_call.1} parent=23 // pred_fallthru
          _
        // Predicated region
        $region41: #{tpu_custom_call.1} parent=23 // pred_check
          %p405 = pneg %p178
        $region42: #{tpu_custom_call.1} parent=23 // pred_check_branch
          %407 = sbr.rel (%p405) target = $region44
        $region43: #{tpu_custom_call.1} parent=23 // pred_region
          %s408 = sand.u32 %s32, 1
          %s409 = scalar_lea.sflag [#allocation14], %s408
          %s410 = sand.u32 %s168, 1
          %s411 = smul.addr %s410, 128
          %s412 = scalar_lea.vmem [#allocation13], %s411
          %s413 = sld [smem:[#allocation6 + %s40]]
          %s415 = ssub.s32 2048, 2048
          %416 = vsyncadd %s409, %s415
          %s417 = smul.addr %s413, 32
          %s418 = smul.addr %s417, 64
          %s419 = scalar_lea.hbm %s5, %s418
          %s420 = sshll.u32 %s412, 4
          %s421 = int_to_ptr.vmem [resolvable:$true] %s420
          %426 = dma.hbm_to_vmem [thread:$0]  %s419, 2048, %s421, %s409, 128, 128, 8
        $region44: #{tpu_custom_call.1} parent=23 // pred_fallthru
          _
        // Predicated region
        $region45: #{tpu_custom_call.1} parent=23 // pred_check
          %p427 = pneg %p206
        $region46: #{tpu_custom_call.1} parent=23 // pred_check_branch
          %429 = sbr.rel (%p427) target = $region48
        $region47: #{tpu_custom_call.1} parent=23 // pred_region
          %s430 = sld [smem:[#allocation6 + %s40]]
          %p431 = scmp.lt.s32.totalorder %s430, 2
          %s432 = scalar_select %p431, %s430, 2
          %s433 = smul.addr %s432, 16
          %s434 = smul.addr %s433, 8
          %s435 = scalar_lea.vmem %s6, %s434
          %s436 = sld [smem:[#allocation6 + %s40]]
        $region48: #{tpu_custom_call.1} parent=23 // pred_fallthru
          _
      $region24: #{tpu_custom_call.1} parent=5 // pred_fallthru
        _
      %p437 = scmp.le.s32.totalorder 1, %s32
      %p438 = scmp.lt.s32.totalorder %s32, 13
      %p439 = pnand %p437, %p438
      %p440 = pneg %p439
      // Predicated region
      $region49: #{tpu_custom_call.1} parent=5 // pred_check
        _
      $region50: #{tpu_custom_call.1} parent=5 // pred_check_branch
        %442 = sbr.rel (%p439) target = $region52
      $region51: #{tpu_custom_call.1} parent=5 // pred_region
        %s443 = ssub.s32 %s32, 1
        %s444 = sand.u32 %s59, 1
        %s445 = scalar_lea.sflag [#allocation8], %s444
        %s446 = sand.u32 %s59, 1
        %s447 = smul.addr %s446, 512
        %s448 = scalar_lea.vmem [#allocation7], %s447
        // Predicated region
        $region53: #{tpu_custom_call.1} parent=51 // pred_check
          %p449 = pneg %p72
        $region54: #{tpu_custom_call.1} parent=51 // pred_check_branch
          %451 = sbr.rel (%p449) target = $region56
        $region55: #{tpu_custom_call.1} parent=51 // pred_region
          %452 = dma.done %s445, 8192
        $region56: #{tpu_custom_call.1} parent=51 // pred_fallthru
          _
        %s453 = sand.u32 %s37, 1
        %s454 = scalar_lea.sflag [#allocation11], %s453
        %s455 = sand.u32 %s115, 1
        %s456 = smul.addr %s455, 1024
        %s457 = scalar_lea.vmem [#allocation10], %s456
        // Predicated region
        $region57: #{tpu_custom_call.1} parent=51 // pred_check
          %p458 = pneg %p128
        $region58: #{tpu_custom_call.1} parent=51 // pred_check_branch
          %460 = sbr.rel (%p458) target = $region60
        $region59: #{tpu_custom_call.1} parent=51 // pred_region
          %461 = dma.done %s454, 16384
        $region60: #{tpu_custom_call.1} parent=51 // pred_fallthru
          _
        %s462 = sand.u32 %s37, 1
        %s463 = scalar_lea.sflag [#allocation11], %s462
        %s464 = sand.u32 %s143, 1
        %s465 = smul.addr %s464, 4
        %s466 = scalar_lea.vmem [#allocation12], %s465
        // Predicated region
        $region61: #{tpu_custom_call.1} parent=51 // pred_check
          %p467 = pneg %p156
        $region62: #{tpu_custom_call.1} parent=51 // pred_check_branch
          %469 = sbr.rel (%p467) target = $region64
        $region63: #{tpu_custom_call.1} parent=51 // pred_region
          %470 = dma.done %s463, 64
        $region64: #{tpu_custom_call.1} parent=51 // pred_fallthru
          _
        %s471 = sand.u32 %s37, 1
        %s472 = scalar_lea.sflag [#allocation14], %s471
        %s473 = sand.u32 %s171, 1
        %s474 = smul.addr %s473, 128
        %s475 = scalar_lea.vmem [#allocation13], %s474
        // Predicated region
        $region65: #{tpu_custom_call.1} parent=51 // pred_check
          %p476 = pneg %p184
        $region66: #{tpu_custom_call.1} parent=51 // pred_check_branch
          %478 = sbr.rel (%p476) target = $region68
        $region67: #{tpu_custom_call.1} parent=51 // pred_region
          %479 = dma.done %s472, 2048
        $region68: #{tpu_custom_call.1} parent=51 // pred_fallthru
          _
        // Predicated region
        $region69: #{tpu_custom_call.1} parent=51 // pred_check
          %p480 = pneg %p233
        $region70: #{tpu_custom_call.1} parent=51 // pred_check_branch
          %482 = sbr.rel (%p480) target = $region72
        $region71: #{tpu_custom_call.1} parent=51 // pred_region
          %483 = dma.done [#allocation14], 4096
        $region72: #{tpu_custom_call.1} parent=51 // pred_fallthru
          _
        // Predicated region
        $region73: #{tpu_custom_call.1} parent=51 // pred_check
          %p484 = pneg %p254
        $region74: #{tpu_custom_call.1} parent=51 // pred_check_branch
          %486 = sbr.rel (%p484) target = $region76
        $region75: #{tpu_custom_call.1} parent=51 // pred_region
          %487 = dma.done [#allocation17], 16
        $region76: #{tpu_custom_call.1} parent=51 // pred_fallthru
          _
        %s488 = sand.u32 %s59, 1
        %s489 = scalar_lea.sflag [#allocation8], %s488
        %s490 = sand.u32 %s59, 1
        %s491 = smul.addr %s490, 512
        %s492 = scalar_lea.vmem [#allocation7], %s491
        %p493 = pneg %p72
        %p494 = pneg %p69
        %s495 = smul.u32 2, %s42
        %p496 = scmp.lt.s32.totalorder %s41, 1
        %s497 = scalar_select %p496, %s41, 1
        %p498 = scmp.lt.s32.totalorder %s495, 11
        %s499 = scalar_select %p498, %s495, 11
        %s500 = smul.addr %s497, 12
        %s501 = sadd.s32 %s499, %s500
        %s502 = scalar_lea.vmem %s2, %s501
        %p503 = pneg %p100
        %p504 = pneg %p97
        %s505 = sand.u32 %s37, 1
        %s506 = scalar_lea.sflag [#allocation11], %s505
        %s507 = sand.u32 %s115, 1
        %s508 = smul.addr %s507, 1024
        %s509 = scalar_lea.vmem [#allocation10], %s508
        %p510 = pneg %p128
        %p511 = pneg %p125
        %s512 = sand.u32 %s37, 1
        %s513 = scalar_lea.sflag [#allocation11], %s512
        %s514 = sand.u32 %s143, 1
        %s515 = smul.addr %s514, 4
        %s516 = scalar_lea.vmem [#allocation12], %s515
        %p517 = pneg %p156
        %p518 = pneg %p153
        %s519 = sand.u32 %s37, 1
        %s520 = scalar_lea.sflag [#allocation14], %s519
        %s521 = sand.u32 %s171, 1
        %s522 = smul.addr %s521, 128
        %s523 = scalar_lea.vmem [#allocation13], %s522
        %p524 = pneg %p184
        %p525 = pneg %p181
        %s526 = sld [smem:[#allocation6 + %s42]]
        %p527 = scmp.lt.s32.totalorder %s526, 2
        %s528 = scalar_select %p527, %s526, 2
        %s529 = smul.addr %s528, 16
        %s530 = smul.addr %s529, 8
        %s531 = scalar_lea.vmem %s6, %s530
        %p532 = pneg %p212
        %p533 = pneg %p209
        %p534 = pneg %p233
        %p535 = pneg %p230
        %p536 = pneg %p254
        %p537 = pneg %p251
        %p538 = pneg %p284
        %p539 = pneg %p281
        %s540 = sand.u32 %s271, 1
        %s541 = scalar_lea.sflag [#allocation9], %s540
        %s542 = sand.u32 %s271, 1
        %s543 = smul.addr %s542, 128
        %s544 = scalar_lea.vmem [#allocation18], %s543
        %s545 = smul.u32 32, %s42
        %s546 = smul.u32 2, %s42
        %p547 = scmp.lt.s32.totalorder %s41, 1
        %s548 = scalar_select %p547, %s41, 1
        %p549 = scmp.lt.s32.totalorder %s546, 11
        %s550 = scalar_select %p549, %s546, 11
        %s551 = smul.addr %s548, 12
        %s552 = sadd.s32 %s550, %s551
        %s553 = scalar_lea.vmem %s2, %s552
        %s554 = smul.u32 2, %s42
        %s555 = sld [smem:[#allocation6 + %s42]]
        %s556 = sld [smem:[#allocation6 + %s42]]
        %s557 = sld [smem:[#allocation6 + %s42]]
        %s558 = sld [smem:[#allocation6 + %s42]]
        %p559 = scmp.lt.s32.totalorder %s558, 2
        %s560 = scalar_select %p559, %s558, 2
        %s561 = smul.addr %s560, 16
        %s562 = smul.addr %s561, 8
        %s563 = scalar_lea.vmem %s6, %s562
        %s564 = sld [smem:[#allocation6 + %s42]]
        %s565 = sld [smem:[#allocation6 + %s42]]
        %s569 = sshra.s32 %s42, 7
        %s570 = sand.u32 %s42, 127
        %s571 = sadd.s32 %s569, 1
        %s572 = smul.u32 %s571, 128
        %s573 = sshra.s32 %s42, 7
        %s574 = sand.u32 %s42, 127
        %s575 = sadd.s32 %s572, %s574
        %s576 = sld [smem:[#allocation6 + %s575]]
        %s577 = sadd.s32 %s569, 2
        %s578 = smul.u32 %s577, 128
        %s579 = sadd.s32 %s578, %s574
        %s580 = sld [smem:[#allocation6 + %s579]]
        %p581 = scmp.eq.s32.totalorder %s580, 1
        // Predicated region
        $region77: #{tpu_custom_call.1} parent=51 // pred_check
          %p582 = pneg %p581
        $region78: #{tpu_custom_call.1} parent=51 // pred_check_branch
          %584 = sbr.rel (%p582) target = $region80
        $region79: #{tpu_custom_call.1} parent=51 // pred_region
          %vm585 = vcmask 7168
          %586 = vst.msk [vmem:[#allocation2] sm:$0xff] %vm585, -1e+30
          %587 = vst.msk [vmem:[#allocation2 + $0x8] sm:$0xff] %vm585, -1e+30
          %588 = vst.msk [vmem:[#allocation2 + $0x10] sm:$0xff] %vm585, -1e+30
          %589 = vst.msk [vmem:[#allocation2 + $0x18] sm:$0xff] %vm585, -1e+30
          %590 = vst.msk [vmem:[#allocation2 + $0x20] sm:$0xff] %vm585, -1e+30
          %591 = vst.msk [vmem:[#allocation2 + $0x28] sm:$0xff] %vm585, -1e+30
          %592 = vst.msk [vmem:[#allocation2 + $0x30] sm:$0xff] %vm585, -1e+30
          %593 = vst.msk [vmem:[#allocation2 + $0x38] sm:$0xff] %vm585, -1e+30
          %594 = vst.msk [vmem:[#allocation2 + $0x40] sm:$0xff] %vm585, -1e+30
          %595 = vst.msk [vmem:[#allocation2 + $0x48] sm:$0xff] %vm585, -1e+30
          %596 = vst.msk [vmem:[#allocation2 + $0x50] sm:$0xff] %vm585, -1e+30
          %597 = vst.msk [vmem:[#allocation2 + $0x58] sm:$0xff] %vm585, -1e+30
          %598 = vst.msk [vmem:[#allocation2 + $0x60] sm:$0xff] %vm585, -1e+30
          %599 = vst.msk [vmem:[#allocation2 + $0x68] sm:$0xff] %vm585, -1e+30
          %600 = vst.msk [vmem:[#allocation2 + $0x70] sm:$0xff] %vm585, -1e+30
          %601 = vst.msk [vmem:[#allocation2 + $0x78] sm:$0xff] %vm585, -1e+30
          %602 = vst.msk [vmem:[#allocation3] sm:$0xff] %vm585, 0.0
          %603 = vst.msk [vmem:[#allocation3 + $0x8] sm:$0xff] %vm585, 0.0
          %604 = vst.msk [vmem:[#allocation3 + $0x10] sm:$0xff] %vm585, 0.0
          %605 = vst.msk [vmem:[#allocation3 + $0x18] sm:$0xff] %vm585, 0.0
          %606 = vst.msk [vmem:[#allocation3 + $0x20] sm:$0xff] %vm585, 0.0
          %607 = vst.msk [vmem:[#allocation3 + $0x28] sm:$0xff] %vm585, 0.0
          %608 = vst.msk [vmem:[#allocation3 + $0x30] sm:$0xff] %vm585, 0.0
          %609 = vst.msk [vmem:[#allocation3 + $0x38] sm:$0xff] %vm585, 0.0
          %610 = vst.msk [vmem:[#allocation3 + $0x40] sm:$0xff] %vm585, 0.0
          %611 = vst.msk [vmem:[#allocation3 + $0x48] sm:$0xff] %vm585, 0.0
          %612 = vst.msk [vmem:[#allocation3 + $0x50] sm:$0xff] %vm585, 0.0
          %613 = vst.msk [vmem:[#allocation3 + $0x58] sm:$0xff] %vm585, 0.0
          %614 = vst.msk [vmem:[#allocation3 + $0x60] sm:$0xff] %vm585, 0.0
          %615 = vst.msk [vmem:[#allocation3 + $0x68] sm:$0xff] %vm585, 0.0
          %616 = vst.msk [vmem:[#allocation3 + $0x70] sm:$0xff] %vm585, 0.0
          %617 = vst.msk [vmem:[#allocation3 + $0x78] sm:$0xff] %vm585, 0.0
          %618 = vst [vmem:[#allocation4] sm:$0xff] 0.0
          %619 = vst [vmem:[#allocation4 + $0x8] sm:$0xff] 0.0
          %620 = vst [vmem:[#allocation4 + $0x10] sm:$0xff] 0.0
          %621 = vst [vmem:[#allocation4 + $0x18] sm:$0xff] 0.0
          %622 = vst [vmem:[#allocation4 + $0x20] sm:$0xff] 0.0
          %623 = vst [vmem:[#allocation4 + $0x28] sm:$0xff] 0.0
          %624 = vst [vmem:[#allocation4 + $0x30] sm:$0xff] 0.0
          %625 = vst [vmem:[#allocation4 + $0x38] sm:$0xff] 0.0
          %626 = vst [vmem:[#allocation4 + $0x40] sm:$0xff] 0.0
          %627 = vst [vmem:[#allocation4 + $0x48] sm:$0xff] 0.0
          %628 = vst [vmem:[#allocation4 + $0x50] sm:$0xff] 0.0
          %629 = vst [vmem:[#allocation4 + $0x58] sm:$0xff] 0.0
          %630 = vst [vmem:[#allocation4 + $0x60] sm:$0xff] 0.0
          %631 = vst [vmem:[#allocation4 + $0x68] sm:$0xff] 0.0
          %632 = vst [vmem:[#allocation4 + $0x70] sm:$0xff] 0.0
          %633 = vst [vmem:[#allocation4 + $0x78] sm:$0xff] 0.0
          %634 = vst [vmem:[#allocation4 + $0x80] sm:$0xff] 0.0
          %635 = vst [vmem:[#allocation4 + $0x88] sm:$0xff] 0.0
          %636 = vst [vmem:[#allocation4 + $0x90] sm:$0xff] 0.0
          %637 = vst [vmem:[#allocation4 + $0x98] sm:$0xff] 0.0
          %638 = vst [vmem:[#allocation4 + $0xa0] sm:$0xff] 0.0
          %639 = vst [vmem:[#allocation4 + $0xa8] sm:$0xff] 0.0
          %640 = vst [vmem:[#allocation4 + $0xb0] sm:$0xff] 0.0
          %641 = vst [vmem:[#allocation4 + $0xb8] sm:$0xff] 0.0
          %642 = vst [vmem:[#allocation4 + $0xc0] sm:$0xff] 0.0
          %643 = vst [vmem:[#allocation4 + $0xc8] sm:$0xff] 0.0
          %644 = vst [vmem:[#allocation4 + $0xd0] sm:$0xff] 0.0
          %645 = vst [vmem:[#allocation4 + $0xd8] sm:$0xff] 0.0
          %646 = vst [vmem:[#allocation4 + $0xe0] sm:$0xff] 0.0
          %647 = vst [vmem:[#allocation4 + $0xe8] sm:$0xff] 0.0
          %648 = vst [vmem:[#allocation4 + $0xf0] sm:$0xff] 0.0
          %649 = vst [vmem:[#allocation4 + $0xf8] sm:$0xff] 0.0
          %650 = vst [vmem:[#allocation4 + $0x100] sm:$0xff] 0.0
          %651 = vst [vmem:[#allocation4 + $0x108] sm:$0xff] 0.0
          %652 = vst [vmem:[#allocation4 + $0x110] sm:$0xff] 0.0
          %653 = vst [vmem:[#allocation4 + $0x118] sm:$0xff] 0.0
          %654 = vst [vmem:[#allocation4 + $0x120] sm:$0xff] 0.0
          %655 = vst [vmem:[#allocation4 + $0x128] sm:$0xff] 0.0
          %656 = vst [vmem:[#allocation4 + $0x130] sm:$0xff] 0.0
          %657 = vst [vmem:[#allocation4 + $0x138] sm:$0xff] 0.0
          %658 = vst [vmem:[#allocation4 + $0x140] sm:$0xff] 0.0
          %659 = vst [vmem:[#allocation4 + $0x148] sm:$0xff] 0.0
          %660 = vst [vmem:[#allocation4 + $0x150] sm:$0xff] 0.0
          %661 = vst [vmem:[#allocation4 + $0x158] sm:$0xff] 0.0
          %662 = vst [vmem:[#allocation4 + $0x160] sm:$0xff] 0.0
          %663 = vst [vmem:[#allocation4 + $0x168] sm:$0xff] 0.0
          %664 = vst [vmem:[#allocation4 + $0x170] sm:$0xff] 0.0
          %665 = vst [vmem:[#allocation4 + $0x178] sm:$0xff] 0.0
          %666 = vst [vmem:[#allocation4 + $0x180] sm:$0xff] 0.0
          %667 = vst [vmem:[#allocation4 + $0x188] sm:$0xff] 0.0
          %668 = vst [vmem:[#allocation4 + $0x190] sm:$0xff] 0.0
          %669 = vst [vmem:[#allocation4 + $0x198] sm:$0xff] 0.0
          %670 = vst [vmem:[#allocation4 + $0x1a0] sm:$0xff] 0.0
          %671 = vst [vmem:[#allocation4 + $0x1a8] sm:$0xff] 0.0
          %672 = vst [vmem:[#allocation4 + $0x1b0] sm:$0xff] 0.0
          %673 = vst [vmem:[#allocation4 + $0x1b8] sm:$0xff] 0.0
          %674 = vst [vmem:[#allocation4 + $0x1c0] sm:$0xff] 0.0
          %675 = vst [vmem:[#allocation4 + $0x1c8] sm:$0xff] 0.0
          %676 = vst [vmem:[#allocation4 + $0x1d0] sm:$0xff] 0.0
          %677 = vst [vmem:[#allocation4 + $0x1d8] sm:$0xff] 0.0
          %678 = vst [vmem:[#allocation4 + $0x1e0] sm:$0xff] 0.0
          %679 = vst [vmem:[#allocation4 + $0x1e8] sm:$0xff] 0.0
          %680 = vst [vmem:[#allocation4 + $0x1f0] sm:$0xff] 0.0
          %681 = vst [vmem:[#allocation4 + $0x1f8] sm:$0xff] 0.0
        $region80: #{tpu_custom_call.1} parent=51 // pred_fallthru
          _
        %v682 = vld [vmem:[%s448] sm:$0xff]
        %v683 = vld [vmem:[%s448 + $0x8] sm:$0xff]
        %v684 = vld [vmem:[%s448 + $0x10] sm:$0xff]
        %v685 = vld [vmem:[%s448 + $0x18] sm:$0xff]
        %v686 = vld [vmem:[%s448 + $0x20] sm:$0xff]
        %v687 = vld [vmem:[%s448 + $0x28] sm:$0xff]
        %v688 = vld [vmem:[%s448 + $0x30] sm:$0xff]
        %v689 = vld [vmem:[%s448 + $0x38] sm:$0xff]
        %v690 = vld [vmem:[%s448 + $0x40] sm:$0xff]
        %v691 = vld [vmem:[%s448 + $0x48] sm:$0xff]
        %v692 = vld [vmem:[%s448 + $0x50] sm:$0xff]
        %v693 = vld [vmem:[%s448 + $0x58] sm:$0xff]
        %v694 = vld [vmem:[%s448 + $0x60] sm:$0xff]
        %v695 = vld [vmem:[%s448 + $0x68] sm:$0xff]
        %v696 = vld [vmem:[%s448 + $0x70] sm:$0xff]
        %v697 = vld [vmem:[%s448 + $0x78] sm:$0xff]
        %v698 = vld [vmem:[%s448 + $0x80] sm:$0xff]
        %v699 = vld [vmem:[%s448 + $0x88] sm:$0xff]
        %v700 = vld [vmem:[%s448 + $0x90] sm:$0xff]
        %v701 = vld [vmem:[%s448 + $0x98] sm:$0xff]
        %v702 = vld [vmem:[%s448 + $0xa0] sm:$0xff]
        %v703 = vld [vmem:[%s448 + $0xa8] sm:$0xff]
        %v704 = vld [vmem:[%s448 + $0xb0] sm:$0xff]
        %v705 = vld [vmem:[%s448 + $0xb8] sm:$0xff]
        %v706 = vld [vmem:[%s448 + $0xc0] sm:$0xff]
        %v707 = vld [vmem:[%s448 + $0xc8] sm:$0xff]
        %v708 = vld [vmem:[%s448 + $0xd0] sm:$0xff]
        %v709 = vld [vmem:[%s448 + $0xd8] sm:$0xff]
        %v710 = vld [vmem:[%s448 + $0xe0] sm:$0xff]
        %v711 = vld [vmem:[%s448 + $0xe8] sm:$0xff]
        %v712 = vld [vmem:[%s448 + $0xf0] sm:$0xff]
        %v713 = vld [vmem:[%s448 + $0xf8] sm:$0xff]
        %v714 = vld [vmem:[%s448 + $0x100] sm:$0xff]
        %v715 = vld [vmem:[%s448 + $0x108] sm:$0xff]
        %v716 = vld [vmem:[%s448 + $0x110] sm:$0xff]
        %v717 = vld [vmem:[%s448 + $0x118] sm:$0xff]
        %v718 = vld [vmem:[%s448 + $0x120] sm:$0xff]
        %v719 = vld [vmem:[%s448 + $0x128] sm:$0xff]
        %v720 = vld [vmem:[%s448 + $0x130] sm:$0xff]
        %v721 = vld [vmem:[%s448 + $0x138] sm:$0xff]
        %v722 = vld [vmem:[%s448 + $0x140] sm:$0xff]
        %v723 = vld [vmem:[%s448 + $0x148] sm:$0xff]
        %v724 = vld [vmem:[%s448 + $0x150] sm:$0xff]
        %v725 = vld [vmem:[%s448 + $0x158] sm:$0xff]
        %v726 = vld [vmem:[%s448 + $0x160] sm:$0xff]
        %v727 = vld [vmem:[%s448 + $0x168] sm:$0xff]
        %v728 = vld [vmem:[%s448 + $0x170] sm:$0xff]
        %v729 = vld [vmem:[%s448 + $0x178] sm:$0xff]
        %v730 = vld [vmem:[%s448 + $0x180] sm:$0xff]
        %v731 = vld [vmem:[%s448 + $0x188] sm:$0xff]
        %v732 = vld [vmem:[%s448 + $0x190] sm:$0xff]
        %v733 = vld [vmem:[%s448 + $0x198] sm:$0xff]
        %v734 = vld [vmem:[%s448 + $0x1a0] sm:$0xff]
        %v735 = vld [vmem:[%s448 + $0x1a8] sm:$0xff]
        %v736 = vld [vmem:[%s448 + $0x1b0] sm:$0xff]
        %v737 = vld [vmem:[%s448 + $0x1b8] sm:$0xff]
        %v738 = vld [vmem:[%s448 + $0x1c0] sm:$0xff]
        %v739 = vld [vmem:[%s448 + $0x1c8] sm:$0xff]
        %v740 = vld [vmem:[%s448 + $0x1d0] sm:$0xff]
        %v741 = vld [vmem:[%s448 + $0x1d8] sm:$0xff]
        %v742 = vld [vmem:[%s448 + $0x1e0] sm:$0xff]
        %v743 = vld [vmem:[%s448 + $0x1e8] sm:$0xff]
        %v744 = vld [vmem:[%s448 + $0x1f0] sm:$0xff]
        %v745 = vld [vmem:[%s448 + $0x1f8] sm:$0xff]
        %v746 = vld [vmem:[%s553] sm:$0x3]
        %v747 = vld [vmem:[%s457] sm:$0xff]
        %v748 = vld [vmem:[%s457 + $0x8] sm:$0xff]
        %v749 = vld [vmem:[%s457 + $0x10] sm:$0xff]
        %v750 = vld [vmem:[%s457 + $0x18] sm:$0xff]
        %v751 = vld [vmem:[%s457 + $0x20] sm:$0xff]
        %v752 = vld [vmem:[%s457 + $0x28] sm:$0xff]
        %v753 = vld [vmem:[%s457 + $0x30] sm:$0xff]
        %v754 = vld [vmem:[%s457 + $0x38] sm:$0xff]
        %v755 = vld [vmem:[%s457 + $0x40] sm:$0xff]
        %v756 = vld [vmem:[%s457 + $0x48] sm:$0xff]
        %v757 = vld [vmem:[%s457 + $0x50] sm:$0xff]
        %v758 = vld [vmem:[%s457 + $0x58] sm:$0xff]
        %v759 = vld [vmem:[%s457 + $0x60] sm:$0xff]
        %v760 = vld [vmem:[%s457 + $0x68] sm:$0xff]
        %v761 = vld [vmem:[%s457 + $0x70] sm:$0xff]
        %v762 = vld [vmem:[%s457 + $0x78] sm:$0xff]
        %v763 = vld [vmem:[%s457 + $0x80] sm:$0xff]
        %v764 = vld [vmem:[%s457 + $0x88] sm:$0xff]
        %v765 = vld [vmem:[%s457 + $0x90] sm:$0xff]
        %v766 = vld [vmem:[%s457 + $0x98] sm:$0xff]
        %v767 = vld [vmem:[%s457 + $0xa0] sm:$0xff]
        %v768 = vld [vmem:[%s457 + $0xa8] sm:$0xff]
        %v769 = vld [vmem:[%s457 + $0xb0] sm:$0xff]
        %v770 = vld [vmem:[%s457 + $0xb8] sm:$0xff]
        %v771 = vld [vmem:[%s457 + $0xc0] sm:$0xff]
        %v772 = vld [vmem:[%s457 + $0xc8] sm:$0xff]
        %v773 = vld [vmem:[%s457 + $0xd0] sm:$0xff]
        %v774 = vld [vmem:[%s457 + $0xd8] sm:$0xff]
        %v775 = vld [vmem:[%s457 + $0xe0] sm:$0xff]
        %v776 = vld [vmem:[%s457 + $0xe8] sm:$0xff]
        %v777 = vld [vmem:[%s457 + $0xf0] sm:$0xff]
        %v778 = vld [vmem:[%s457 + $0xf8] sm:$0xff]
        %v779 = vld [vmem:[%s457 + $0x100] sm:$0xff]
        %v780 = vld [vmem:[%s457 + $0x108] sm:$0xff]
        %v781 = vld [vmem:[%s457 + $0x110] sm:$0xff]
        %v782 = vld [vmem:[%s457 + $0x118] sm:$0xff]
        %v783 = vld [vmem:[%s457 + $0x120] sm:$0xff]
        %v784 = vld [vmem:[%s457 + $0x128] sm:$0xff]
        %v785 = vld [vmem:[%s457 + $0x130] sm:$0xff]
        %v786 = vld [vmem:[%s457 + $0x138] sm:$0xff]
        %v787 = vld [vmem:[%s457 + $0x140] sm:$0xff]
        %v788 = vld [vmem:[%s457 + $0x148] sm:$0xff]
        %v789 = vld [vmem:[%s457 + $0x150] sm:$0xff]
        %v790 = vld [vmem:[%s457 + $0x158] sm:$0xff]
        %v791 = vld [vmem:[%s457 + $0x160] sm:$0xff]
        %v792 = vld [vmem:[%s457 + $0x168] sm:$0xff]
        %v793 = vld [vmem:[%s457 + $0x170] sm:$0xff]
        %v794 = vld [vmem:[%s457 + $0x178] sm:$0xff]
        %v795 = vld [vmem:[%s457 + $0x180] sm:$0xff]
        %v796 = vld [vmem:[%s457 + $0x188] sm:$0xff]
        %v797 = vld [vmem:[%s457 + $0x190] sm:$0xff]
        %v798 = vld [vmem:[%s457 + $0x198] sm:$0xff]
        %v799 = vld [vmem:[%s457 + $0x1a0] sm:$0xff]
        %v800 = vld [vmem:[%s457 + $0x1a8] sm:$0xff]
        %v801 = vld [vmem:[%s457 + $0x1b0] sm:$0xff]
        %v802 = vld [vmem:[%s457 + $0x1b8] sm:$0xff]
        %v803 = vld [vmem:[%s457 + $0x1c0] sm:$0xff]
        %v804 = vld [vmem:[%s457 + $0x1c8] sm:$0xff]
        %v805 = vld [vmem:[%s457 + $0x1d0] sm:$0xff]
        %v806 = vld [vmem:[%s457 + $0x1d8] sm:$0xff]
        %v807 = vld [vmem:[%s457 + $0x1e0] sm:$0xff]
        %v808 = vld [vmem:[%s457 + $0x1e8] sm:$0xff]
        %v809 = vld [vmem:[%s457 + $0x1f0] sm:$0xff]
        %v810 = vld [vmem:[%s457 + $0x1f8] sm:$0xff]
        %v811 = vld [vmem:[%s457 + $0x200] sm:$0xff]
        %v812 = vld [vmem:[%s457 + $0x208] sm:$0xff]
        %v813 = vld [vmem:[%s457 + $0x210] sm:$0xff]
        %v814 = vld [vmem:[%s457 + $0x218] sm:$0xff]
        %v815 = vld [vmem:[%s457 + $0x220] sm:$0xff]
        %v816 = vld [vmem:[%s457 + $0x228] sm:$0xff]
        %v817 = vld [vmem:[%s457 + $0x230] sm:$0xff]
        %v818 = vld [vmem:[%s457 + $0x238] sm:$0xff]
        %v819 = vld [vmem:[%s457 + $0x240] sm:$0xff]
        %v820 = vld [vmem:[%s457 + $0x248] sm:$0xff]
        %v821 = vld [vmem:[%s457 + $0x250] sm:$0xff]
        %v822 = vld [vmem:[%s457 + $0x258] sm:$0xff]
        %v823 = vld [vmem:[%s457 + $0x260] sm:$0xff]
        %v824 = vld [vmem:[%s457 + $0x268] sm:$0xff]
        %v825 = vld [vmem:[%s457 + $0x270] sm:$0xff]
        %v826 = vld [vmem:[%s457 + $0x278] sm:$0xff]
        %v827 = vld [vmem:[%s457 + $0x280] sm:$0xff]
        %v828 = vld [vmem:[%s457 + $0x288] sm:$0xff]
        %v829 = vld [vmem:[%s457 + $0x290] sm:$0xff]
        %v830 = vld [vmem:[%s457 + $0x298] sm:$0xff]
        %v831 = vld [vmem:[%s457 + $0x2a0] sm:$0xff]
        %v832 = vld [vmem:[%s457 + $0x2a8] sm:$0xff]
        %v833 = vld [vmem:[%s457 + $0x2b0] sm:$0xff]
        %v834 = vld [vmem:[%s457 + $0x2b8] sm:$0xff]
        %v835 = vld [vmem:[%s457 + $0x2c0] sm:$0xff]
        %v836 = vld [vmem:[%s457 + $0x2c8] sm:$0xff]
        %v837 = vld [vmem:[%s457 + $0x2d0] sm:$0xff]
        %v838 = vld [vmem:[%s457 + $0x2d8] sm:$0xff]
        %v839 = vld [vmem:[%s457 + $0x2e0] sm:$0xff]
        %v840 = vld [vmem:[%s457 + $0x2e8] sm:$0xff]
        %v841 = vld [vmem:[%s457 + $0x2f0] sm:$0xff]
        %v842 = vld [vmem:[%s457 + $0x2f8] sm:$0xff]
        %v843 = vld [vmem:[%s457 + $0x300] sm:$0xff]
        %v844 = vld [vmem:[%s457 + $0x308] sm:$0xff]
        %v845 = vld [vmem:[%s457 + $0x310] sm:$0xff]
        %v846 = vld [vmem:[%s457 + $0x318] sm:$0xff]
        %v847 = vld [vmem:[%s457 + $0x320] sm:$0xff]
        %v848 = vld [vmem:[%s457 + $0x328] sm:$0xff]
        %v849 = vld [vmem:[%s457 + $0x330] sm:$0xff]
        %v850 = vld [vmem:[%s457 + $0x338] sm:$0xff]
        %v851 = vld [vmem:[%s457 + $0x340] sm:$0xff]
        %v852 = vld [vmem:[%s457 + $0x348] sm:$0xff]
        %v853 = vld [vmem:[%s457 + $0x350] sm:$0xff]
        %v854 = vld [vmem:[%s457 + $0x358] sm:$0xff]
        %v855 = vld [vmem:[%s457 + $0x360] sm:$0xff]
        %v856 = vld [vmem:[%s457 + $0x368] sm:$0xff]
        %v857 = vld [vmem:[%s457 + $0x370] sm:$0xff]
        %v858 = vld [vmem:[%s457 + $0x378] sm:$0xff]
        %v859 = vld [vmem:[%s457 + $0x380] sm:$0xff]
        %v860 = vld [vmem:[%s457 + $0x388] sm:$0xff]
        %v861 = vld [vmem:[%s457 + $0x390] sm:$0xff]
        %v862 = vld [vmem:[%s457 + $0x398] sm:$0xff]
        %v863 = vld [vmem:[%s457 + $0x3a0] sm:$0xff]
        %v864 = vld [vmem:[%s457 + $0x3a8] sm:$0xff]
        %v865 = vld [vmem:[%s457 + $0x3b0] sm:$0xff]
        %v866 = vld [vmem:[%s457 + $0x3b8] sm:$0xff]
        %v867 = vld [vmem:[%s457 + $0x3c0] sm:$0xff]
        %v868 = vld [vmem:[%s457 + $0x3c8] sm:$0xff]
        %v869 = vld [vmem:[%s457 + $0x3d0] sm:$0xff]
        %v870 = vld [vmem:[%s457 + $0x3d8] sm:$0xff]
        %v871 = vld [vmem:[%s457 + $0x3e0] sm:$0xff]
        %v872 = vld [vmem:[%s457 + $0x3e8] sm:$0xff]
        %v873 = vld [vmem:[%s457 + $0x3f0] sm:$0xff]
        %v874 = vld [vmem:[%s457 + $0x3f8] sm:$0xff]
        %v875 = vld [vmem:[%s466] sm:$0xf]
        %v877 = vlaneseq
        %v878 = vshrl.u32 %v877, 7
        %v879 = vsub.s32 0, %v878
        %v880 = vrot.slane %v875, %v879
        %v881 = vlaneseq
        %v882 = vshrl.u32 %v881, 7
        %v883 = vsub.s32 1, %v882
        %v884 = vrot.slane %v875, %v883
        %v885 = vlaneseq
        %v886 = vshrl.u32 %v885, 7
        %v887 = vsub.s32 2, %v886
        %v888 = vrot.slane %v875, %v887
        %v889 = vlaneseq
        %v890 = vshrl.u32 %v889, 7
        %v891 = vsub.s32 3, %v890
        %v892 = vrot.slane %v875, %v891
        %v961 = vunpack.c.l.b16 %v682
        %v962 = vunpack.c.h.b16 %v682
        %v963 = vunpack.c.l.b16 %v683
        %v964 = vunpack.c.h.b16 %v683
        %v965 = vunpack.c.l.b16 %v684
        %v966 = vunpack.c.h.b16 %v684
        %v967 = vunpack.c.l.b16 %v685
        %v968 = vunpack.c.h.b16 %v685
        %v969 = vunpack.c.l.b16 %v686
        %v970 = vunpack.c.h.b16 %v686
        %v971 = vunpack.c.l.b16 %v687
        %v972 = vunpack.c.h.b16 %v687
        %v973 = vunpack.c.l.b16 %v688
        %v974 = vunpack.c.h.b16 %v688
        %v975 = vunpack.c.l.b16 %v689
        %v976 = vunpack.c.h.b16 %v689
        %v977 = vunpack.c.l.b16 %v690
        %v978 = vunpack.c.h.b16 %v690
        %v979 = vunpack.c.l.b16 %v691
        %v980 = vunpack.c.h.b16 %v691
        %v981 = vunpack.c.l.b16 %v692
        %v982 = vunpack.c.h.b16 %v692
        %v983 = vunpack.c.l.b16 %v693
        %v984 = vunpack.c.h.b16 %v693
        %v985 = vunpack.c.l.b16 %v694
        %v986 = vunpack.c.h.b16 %v694
        %v987 = vunpack.c.l.b16 %v695
        %v988 = vunpack.c.h.b16 %v695
        %v989 = vunpack.c.l.b16 %v696
        %v990 = vunpack.c.h.b16 %v696
        %v991 = vunpack.c.l.b16 %v697
        %v992 = vunpack.c.h.b16 %v697
        %v993 = vunpack.c.l.b16 %v698
        %v994 = vunpack.c.h.b16 %v698
        %v995 = vunpack.c.l.b16 %v699
        %v996 = vunpack.c.h.b16 %v699
        %v997 = vunpack.c.l.b16 %v700
        %v998 = vunpack.c.h.b16 %v700
        %v999 = vunpack.c.l.b16 %v701
        %v1000 = vunpack.c.h.b16 %v701
        %v1001 = vunpack.c.l.b16 %v702
        %v1002 = vunpack.c.h.b16 %v702
        %v1003 = vunpack.c.l.b16 %v703
        %v1004 = vunpack.c.h.b16 %v703
        %v1005 = vunpack.c.l.b16 %v704
        %v1006 = vunpack.c.h.b16 %v704
        %v1007 = vunpack.c.l.b16 %v705
        %v1008 = vunpack.c.h.b16 %v705
        %v1009 = vunpack.c.l.b16 %v706
        %v1010 = vunpack.c.h.b16 %v706
        %v1011 = vunpack.c.l.b16 %v707
        %v1012 = vunpack.c.h.b16 %v707
        %v1013 = vunpack.c.l.b16 %v708
        %v1014 = vunpack.c.h.b16 %v708
        %v1015 = vunpack.c.l.b16 %v709
        %v1016 = vunpack.c.h.b16 %v709
        %v1017 = vunpack.c.l.b16 %v710
        %v1018 = vunpack.c.h.b16 %v710
        %v1019 = vunpack.c.l.b16 %v711
        %v1020 = vunpack.c.h.b16 %v711
        %v1021 = vunpack.c.l.b16 %v712
        %v1022 = vunpack.c.h.b16 %v712
        %v1023 = vunpack.c.l.b16 %v713
        %v1024 = vunpack.c.h.b16 %v713
        %v1025 = vunpack.c.l.b16 %v714
        %v1026 = vunpack.c.h.b16 %v714
        %v1027 = vunpack.c.l.b16 %v715
        %v1028 = vunpack.c.h.b16 %v715
        %v1029 = vunpack.c.l.b16 %v716
        %v1030 = vunpack.c.h.b16 %v716
        %v1031 = vunpack.c.l.b16 %v717
        %v1032 = vunpack.c.h.b16 %v717
        %v1033 = vunpack.c.l.b16 %v718
        %v1034 = vunpack.c.h.b16 %v718
        %v1035 = vunpack.c.l.b16 %v719
        %v1036 = vunpack.c.h.b16 %v719
        %v1037 = vunpack.c.l.b16 %v720
        %v1038 = vunpack.c.h.b16 %v720
        %v1039 = vunpack.c.l.b16 %v721
        %v1040 = vunpack.c.h.b16 %v721
        %v1041 = vunpack.c.l.b16 %v722
        %v1042 = vunpack.c.h.b16 %v722
        %v1043 = vunpack.c.l.b16 %v723
        %v1044 = vunpack.c.h.b16 %v723
        %v1045 = vunpack.c.l.b16 %v724
        %v1046 = vunpack.c.h.b16 %v724
        %v1047 = vunpack.c.l.b16 %v725
        %v1048 = vunpack.c.h.b16 %v725
        %v1049 = vunpack.c.l.b16 %v726
        %v1050 = vunpack.c.h.b16 %v726
        %v1051 = vunpack.c.l.b16 %v727
        %v1052 = vunpack.c.h.b16 %v727
        %v1053 = vunpack.c.l.b16 %v728
        %v1054 = vunpack.c.h.b16 %v728
        %v1055 = vunpack.c.l.b16 %v729
        %v1056 = vunpack.c.h.b16 %v729
        %v1057 = vunpack.c.l.b16 %v730
        %v1058 = vunpack.c.h.b16 %v730
        %v1059 = vunpack.c.l.b16 %v731
        %v1060 = vunpack.c.h.b16 %v731
        %v1061 = vunpack.c.l.b16 %v732
        %v1062 = vunpack.c.h.b16 %v732
        %v1063 = vunpack.c.l.b16 %v733
        %v1064 = vunpack.c.h.b16 %v733
        %v1065 = vunpack.c.l.b16 %v734
        %v1066 = vunpack.c.h.b16 %v734
        %v1067 = vunpack.c.l.b16 %v735
        %v1068 = vunpack.c.h.b16 %v735
        %v1069 = vunpack.c.l.b16 %v736
        %v1070 = vunpack.c.h.b16 %v736
        %v1071 = vunpack.c.l.b16 %v737
        %v1072 = vunpack.c.h.b16 %v737
        %v1073 = vunpack.c.l.b16 %v738
        %v1074 = vunpack.c.h.b16 %v738
        %v1075 = vunpack.c.l.b16 %v739
        %v1076 = vunpack.c.h.b16 %v739
        %v1077 = vunpack.c.l.b16 %v740
        %v1078 = vunpack.c.h.b16 %v740
        %v1079 = vunpack.c.l.b16 %v741
        %v1080 = vunpack.c.h.b16 %v741
        %v1081 = vunpack.c.l.b16 %v742
        %v1082 = vunpack.c.h.b16 %v742
        %v1083 = vunpack.c.l.b16 %v743
        %v1084 = vunpack.c.h.b16 %v743
        %v1085 = vunpack.c.l.b16 %v744
        %v1086 = vunpack.c.h.b16 %v744
        %v1087 = vunpack.c.l.b16 %v745
        %v1088 = vunpack.c.h.b16 %v745
        %v1089 = vpack.c.b16 %v965, %v961
        %v1090 = vpack.c.b16 %v966, %v962
        %v1091 = vpack.c.b16 %v967, %v963
        %v1092 = vpack.c.b16 %v968, %v964
        %v1093 = vpack.c.b16 %v973, %v969
        %v1094 = vpack.c.b16 %v974, %v970
        %v1095 = vpack.c.b16 %v975, %v971
        %v1096 = vpack.c.b16 %v976, %v972
        %v1097 = vpack.c.b16 %v981, %v977
        %v1098 = vpack.c.b16 %v982, %v978
        %v1099 = vpack.c.b16 %v983, %v979
        %v1100 = vpack.c.b16 %v984, %v980
        %v1101 = vpack.c.b16 %v989, %v985
        %v1102 = vpack.c.b16 %v990, %v986
        %v1103 = vpack.c.b16 %v991, %v987
        %v1104 = vpack.c.b16 %v992, %v988
        %v1105 = vpack.c.b16 %v997, %v993
        %v1106 = vpack.c.b16 %v998, %v994
        %v1107 = vpack.c.b16 %v999, %v995
        %v1108 = vpack.c.b16 %v1000, %v996
        %v1109 = vpack.c.b16 %v1005, %v1001
        %v1110 = vpack.c.b16 %v1006, %v1002
        %v1111 = vpack.c.b16 %v1007, %v1003
        %v1112 = vpack.c.b16 %v1008, %v1004
        %v1113 = vpack.c.b16 %v1013, %v1009
        %v1114 = vpack.c.b16 %v1014, %v1010
        %v1115 = vpack.c.b16 %v1015, %v1011
        %v1116 = vpack.c.b16 %v1016, %v1012
        %v1117 = vpack.c.b16 %v1021, %v1017
        %v1118 = vpack.c.b16 %v1022, %v1018
        %v1119 = vpack.c.b16 %v1023, %v1019
        %v1120 = vpack.c.b16 %v1024, %v1020
        %v1121 = vpack.c.b16 %v1029, %v1025
        %v1122 = vpack.c.b16 %v1030, %v1026
        %v1123 = vpack.c.b16 %v1031, %v1027
        %v1124 = vpack.c.b16 %v1032, %v1028
        %v1125 = vpack.c.b16 %v1037, %v1033
        %v1126 = vpack.c.b16 %v1038, %v1034
        %v1127 = vpack.c.b16 %v1039, %v1035
        %v1128 = vpack.c.b16 %v1040, %v1036
        %v1129 = vpack.c.b16 %v1045, %v1041
        %v1130 = vpack.c.b16 %v1046, %v1042
        %v1131 = vpack.c.b16 %v1047, %v1043
        %v1132 = vpack.c.b16 %v1048, %v1044
        %v1133 = vpack.c.b16 %v1053, %v1049
        %v1134 = vpack.c.b16 %v1054, %v1050
        %v1135 = vpack.c.b16 %v1055, %v1051
        %v1136 = vpack.c.b16 %v1056, %v1052
        %v1137 = vpack.c.b16 %v1061, %v1057
        %v1138 = vpack.c.b16 %v1062, %v1058
        %v1139 = vpack.c.b16 %v1063, %v1059
        %v1140 = vpack.c.b16 %v1064, %v1060
        %v1141 = vpack.c.b16 %v1069, %v1065
        %v1142 = vpack.c.b16 %v1070, %v1066
        %v1143 = vpack.c.b16 %v1071, %v1067
        %v1144 = vpack.c.b16 %v1072, %v1068
        %v1145 = vpack.c.b16 %v1077, %v1073
        %v1146 = vpack.c.b16 %v1078, %v1074
        %v1147 = vpack.c.b16 %v1079, %v1075
        %v1148 = vpack.c.b16 %v1080, %v1076
        %v1149 = vpack.c.b16 %v1085, %v1081
        %v1150 = vpack.c.b16 %v1086, %v1082
        %v1151 = vpack.c.b16 %v1087, %v1083
        %v1152 = vpack.c.b16 %v1088, %v1084
        %v1345 = vunpack.c.l.b16 %v747
        %v1346 = vunpack.c.h.b16 %v747
        %v1347 = vunpack.c.l.b16 %v748
        %v1348 = vunpack.c.h.b16 %v748
        %v1349 = vunpack.c.l.b16 %v749
        %v1350 = vunpack.c.h.b16 %v749
        %v1351 = vunpack.c.l.b16 %v750
        %v1352 = vunpack.c.h.b16 %v750
        %v1353 = vunpack.c.l.b16 %v751
        %v1354 = vunpack.c.h.b16 %v751
        %v1355 = vunpack.c.l.b16 %v752
        %v1356 = vunpack.c.h.b16 %v752
        %v1357 = vunpack.c.l.b16 %v753
        %v1358 = vunpack.c.h.b16 %v753
        %v1359 = vunpack.c.l.b16 %v754
        %v1360 = vunpack.c.h.b16 %v754
        %v1361 = vunpack.c.l.b16 %v755
        %v1362 = vunpack.c.h.b16 %v755
        %v1363 = vunpack.c.l.b16 %v756
        %v1364 = vunpack.c.h.b16 %v756
        %v1365 = vunpack.c.l.b16 %v757
        %v1366 = vunpack.c.h.b16 %v757
        %v1367 = vunpack.c.l.b16 %v758
        %v1368 = vunpack.c.h.b16 %v758
        %v1369 = vunpack.c.l.b16 %v759
        %v1370 = vunpack.c.h.b16 %v759
        %v1371 = vunpack.c.l.b16 %v760
        %v1372 = vunpack.c.h.b16 %v760
        %v1373 = vunpack.c.l.b16 %v761
        %v1374 = vunpack.c.h.b16 %v761
        %v1375 = vunpack.c.l.b16 %v762
        %v1376 = vunpack.c.h.b16 %v762
        %v1377 = vunpack.c.l.b16 %v763
        %v1378 = vunpack.c.h.b16 %v763
        %v1379 = vunpack.c.l.b16 %v764
        %v1380 = vunpack.c.h.b16 %v764
        %v1381 = vunpack.c.l.b16 %v765
        %v1382 = vunpack.c.h.b16 %v765
        %v1383 = vunpack.c.l.b16 %v766
        %v1384 = vunpack.c.h.b16 %v766
        %v1385 = vunpack.c.l.b16 %v767
        %v1386 = vunpack.c.h.b16 %v767
        %v1387 = vunpack.c.l.b16 %v768
        %v1388 = vunpack.c.h.b16 %v768
        %v1389 = vunpack.c.l.b16 %v769
        %v1390 = vunpack.c.h.b16 %v769
        %v1391 = vunpack.c.l.b16 %v770
        %v1392 = vunpack.c.h.b16 %v770
        %v1393 = vunpack.c.l.b16 %v771
        %v1394 = vunpack.c.h.b16 %v771
        %v1395 = vunpack.c.l.b16 %v772
        %v1396 = vunpack.c.h.b16 %v772
        %v1397 = vunpack.c.l.b16 %v773
        %v1398 = vunpack.c.h.b16 %v773
        %v1399 = vunpack.c.l.b16 %v774
        %v1400 = vunpack.c.h.b16 %v774
        %v1401 = vunpack.c.l.b16 %v775
        %v1402 = vunpack.c.h.b16 %v775
        %v1403 = vunpack.c.l.b16 %v776
        %v1404 = vunpack.c.h.b16 %v776
        %v1405 = vunpack.c.l.b16 %v777
        %v1406 = vunpack.c.h.b16 %v777
        %v1407 = vunpack.c.l.b16 %v778
        %v1408 = vunpack.c.h.b16 %v778
        %v1409 = vunpack.c.l.b16 %v779
        %v1410 = vunpack.c.h.b16 %v779
        %v1411 = vunpack.c.l.b16 %v780
        %v1412 = vunpack.c.h.b16 %v780
        %v1413 = vunpack.c.l.b16 %v781
        %v1414 = vunpack.c.h.b16 %v781
        %v1415 = vunpack.c.l.b16 %v782
        %v1416 = vunpack.c.h.b16 %v782
        %v1417 = vunpack.c.l.b16 %v783
        %v1418 = vunpack.c.h.b16 %v783
        %v1419 = vunpack.c.l.b16 %v784
        %v1420 = vunpack.c.h.b16 %v784
        %v1421 = vunpack.c.l.b16 %v785
        %v1422 = vunpack.c.h.b16 %v785
        %v1423 = vunpack.c.l.b16 %v786
        %v1424 = vunpack.c.h.b16 %v786
        %v1425 = vunpack.c.l.b16 %v787
        %v1426 = vunpack.c.h.b16 %v787
        %v1427 = vunpack.c.l.b16 %v788
        %v1428 = vunpack.c.h.b16 %v788
        %v1429 = vunpack.c.l.b16 %v789
        %v1430 = vunpack.c.h.b16 %v789
        %v1431 = vunpack.c.l.b16 %v790
        %v1432 = vunpack.c.h.b16 %v790
        %v1433 = vunpack.c.l.b16 %v791
        %v1434 = vunpack.c.h.b16 %v791
        %v1435 = vunpack.c.l.b16 %v792
        %v1436 = vunpack.c.h.b16 %v792
        %v1437 = vunpack.c.l.b16 %v793
        %v1438 = vunpack.c.h.b16 %v793
        %v1439 = vunpack.c.l.b16 %v794
        %v1440 = vunpack.c.h.b16 %v794
        %v1441 = vunpack.c.l.b16 %v795
        %v1442 = vunpack.c.h.b16 %v795
        %v1443 = vunpack.c.l.b16 %v796
        %v1444 = vunpack.c.h.b16 %v796
        %v1445 = vunpack.c.l.b16 %v797
        %v1446 = vunpack.c.h.b16 %v797
        %v1447 = vunpack.c.l.b16 %v798
        %v1448 = vunpack.c.h.b16 %v798
        %v1449 = vunpack.c.l.b16 %v799
        %v1450 = vunpack.c.h.b16 %v799
        %v1451 = vunpack.c.l.b16 %v800
        %v1452 = vunpack.c.h.b16 %v800
        %v1453 = vunpack.c.l.b16 %v801
        %v1454 = vunpack.c.h.b16 %v801
        %v1455 = vunpack.c.l.b16 %v802
        %v1456 = vunpack.c.h.b16 %v802
        %v1457 = vunpack.c.l.b16 %v803
        %v1458 = vunpack.c.h.b16 %v803
        %v1459 = vunpack.c.l.b16 %v804
        %v1460 = vunpack.c.h.b16 %v804
        %v1461 = vunpack.c.l.b16 %v805
        %v1462 = vunpack.c.h.b16 %v805
        %v1463 = vunpack.c.l.b16 %v806
        %v1464 = vunpack.c.h.b16 %v806
        %v1465 = vunpack.c.l.b16 %v807
        %v1466 = vunpack.c.h.b16 %v807
        %v1467 = vunpack.c.l.b16 %v808
        %v1468 = vunpack.c.h.b16 %v808
        %v1469 = vunpack.c.l.b16 %v809
        %v1470 = vunpack.c.h.b16 %v809
        %v1471 = vunpack.c.l.b16 %v810
        %v1472 = vunpack.c.h.b16 %v810
        %v1473 = vunpack.c.l.b16 %v811
        %v1474 = vunpack.c.h.b16 %v811
        %v1475 = vunpack.c.l.b16 %v812
        %v1476 = vunpack.c.h.b16 %v812
        %v1477 = vunpack.c.l.b16 %v813
        %v1478 = vunpack.c.h.b16 %v813
        %v1479 = vunpack.c.l.b16 %v814
        %v1480 = vunpack.c.h.b16 %v814
        %v1481 = vunpack.c.l.b16 %v815
        %v1482 = vunpack.c.h.b16 %v815
        %v1483 = vunpack.c.l.b16 %v816
        %v1484 = vunpack.c.h.b16 %v816
        %v1485 = vunpack.c.l.b16 %v817
        %v1486 = vunpack.c.h.b16 %v817
        %v1487 = vunpack.c.l.b16 %v818
        %v1488 = vunpack.c.h.b16 %v818
        %v1489 = vunpack.c.l.b16 %v819
        %v1490 = vunpack.c.h.b16 %v819
        %v1491 = vunpack.c.l.b16 %v820
        %v1492 = vunpack.c.h.b16 %v820
        %v1493 = vunpack.c.l.b16 %v821
        %v1494 = vunpack.c.h.b16 %v821
        %v1495 = vunpack.c.l.b16 %v822
        %v1496 = vunpack.c.h.b16 %v822
        %v1497 = vunpack.c.l.b16 %v823
        %v1498 = vunpack.c.h.b16 %v823
        %v1499 = vunpack.c.l.b16 %v824
        %v1500 = vunpack.c.h.b16 %v824
        %v1501 = vunpack.c.l.b16 %v825
        %v1502 = vunpack.c.h.b16 %v825
        %v1503 = vunpack.c.l.b16 %v826
        %v1504 = vunpack.c.h.b16 %v826
        %v1505 = vunpack.c.l.b16 %v827
        %v1506 = vunpack.c.h.b16 %v827
        %v1507 = vunpack.c.l.b16 %v828
        %v1508 = vunpack.c.h.b16 %v828
        %v1509 = vunpack.c.l.b16 %v829
        %v1510 = vunpack.c.h.b16 %v829
        %v1511 = vunpack.c.l.b16 %v830
        %v1512 = vunpack.c.h.b16 %v830
        %v1513 = vunpack.c.l.b16 %v831
        %v1514 = vunpack.c.h.b16 %v831
        %v1515 = vunpack.c.l.b16 %v832
        %v1516 = vunpack.c.h.b16 %v832
        %v1517 = vunpack.c.l.b16 %v833
        %v1518 = vunpack.c.h.b16 %v833
        %v1519 = vunpack.c.l.b16 %v834
        %v1520 = vunpack.c.h.b16 %v834
        %v1521 = vunpack.c.l.b16 %v835
        %v1522 = vunpack.c.h.b16 %v835
        %v1523 = vunpack.c.l.b16 %v836
        %v1524 = vunpack.c.h.b16 %v836
        %v1525 = vunpack.c.l.b16 %v837
        %v1526 = vunpack.c.h.b16 %v837
        %v1527 = vunpack.c.l.b16 %v838
        %v1528 = vunpack.c.h.b16 %v838
        %v1529 = vunpack.c.l.b16 %v839
        %v1530 = vunpack.c.h.b16 %v839
        %v1531 = vunpack.c.l.b16 %v840
        %v1532 = vunpack.c.h.b16 %v840
        %v1533 = vunpack.c.l.b16 %v841
        %v1534 = vunpack.c.h.b16 %v841
        %v1535 = vunpack.c.l.b16 %v842
        %v1536 = vunpack.c.h.b16 %v842
        %v1537 = vunpack.c.l.b16 %v843
        %v1538 = vunpack.c.h.b16 %v843
        %v1539 = vunpack.c.l.b16 %v844
        %v1540 = vunpack.c.h.b16 %v844
        %v1541 = vunpack.c.l.b16 %v845
        %v1542 = vunpack.c.h.b16 %v845
        %v1543 = vunpack.c.l.b16 %v846
        %v1544 = vunpack.c.h.b16 %v846
        %v1545 = vunpack.c.l.b16 %v847
        %v1546 = vunpack.c.h.b16 %v847
        %v1547 = vunpack.c.l.b16 %v848
        %v1548 = vunpack.c.h.b16 %v848
        %v1549 = vunpack.c.l.b16 %v849
        %v1550 = vunpack.c.h.b16 %v849
        %v1551 = vunpack.c.l.b16 %v850
        %v1552 = vunpack.c.h.b16 %v850
        %v1553 = vunpack.c.l.b16 %v851
        %v1554 = vunpack.c.h.b16 %v851
        %v1555 = vunpack.c.l.b16 %v852
        %v1556 = vunpack.c.h.b16 %v852
        %v1557 = vunpack.c.l.b16 %v853
        %v1558 = vunpack.c.h.b16 %v853
        %v1559 = vunpack.c.l.b16 %v854
        %v1560 = vunpack.c.h.b16 %v854
        %v1561 = vunpack.c.l.b16 %v855
        %v1562 = vunpack.c.h.b16 %v855
        %v1563 = vunpack.c.l.b16 %v856
        %v1564 = vunpack.c.h.b16 %v856
        %v1565 = vunpack.c.l.b16 %v857
        %v1566 = vunpack.c.h.b16 %v857
        %v1567 = vunpack.c.l.b16 %v858
        %v1568 = vunpack.c.h.b16 %v858
        %v1569 = vunpack.c.l.b16 %v859
        %v1570 = vunpack.c.h.b16 %v859
        %v1571 = vunpack.c.l.b16 %v860
        %v1572 = vunpack.c.h.b16 %v860
        %v1573 = vunpack.c.l.b16 %v861
        %v1574 = vunpack.c.h.b16 %v861
        %v1575 = vunpack.c.l.b16 %v862
        %v1576 = vunpack.c.h.b16 %v862
        %v1577 = vunpack.c.l.b16 %v863
        %v1578 = vunpack.c.h.b16 %v863
        %v1579 = vunpack.c.l.b16 %v864
        %v1580 = vunpack.c.h.b16 %v864
        %v1581 = vunpack.c.l.b16 %v865
        %v1582 = vunpack.c.h.b16 %v865
        %v1583 = vunpack.c.l.b16 %v866
        %v1584 = vunpack.c.h.b16 %v866
        %v1585 = vunpack.c.l.b16 %v867
        %v1586 = vunpack.c.h.b16 %v867
        %v1587 = vunpack.c.l.b16 %v868
        %v1588 = vunpack.c.h.b16 %v868
        %v1589 = vunpack.c.l.b16 %v869
        %v1590 = vunpack.c.h.b16 %v869
        %v1591 = vunpack.c.l.b16 %v870
        %v1592 = vunpack.c.h.b16 %v870
        %v1593 = vunpack.c.l.b16 %v871
        %v1594 = vunpack.c.h.b16 %v871
        %v1595 = vunpack.c.l.b16 %v872
        %v1596 = vunpack.c.h.b16 %v872
        %v1597 = vunpack.c.l.b16 %v873
        %v1598 = vunpack.c.h.b16 %v873
        %v1599 = vunpack.c.l.b16 %v874
        %v1600 = vunpack.c.h.b16 %v874
        %v1601 = vpack.c.b16 %v1349, %v1345
        %v1602 = vpack.c.b16 %v1350, %v1346
        %v1603 = vpack.c.b16 %v1351, %v1347
        %v1604 = vpack.c.b16 %v1352, %v1348
        %v1605 = vpack.c.b16 %v1357, %v1353
        %v1606 = vpack.c.b16 %v1358, %v1354
        %v1607 = vpack.c.b16 %v1359, %v1355
        %v1608 = vpack.c.b16 %v1360, %v1356
        %v1609 = vpack.c.b16 %v1365, %v1361
        %v1610 = vpack.c.b16 %v1366, %v1362
        %v1611 = vpack.c.b16 %v1367, %v1363
        %v1612 = vpack.c.b16 %v1368, %v1364
        %v1613 = vpack.c.b16 %v1373, %v1369
        %v1614 = vpack.c.b16 %v1374, %v1370
        %v1615 = vpack.c.b16 %v1375, %v1371
        %v1616 = vpack.c.b16 %v1376, %v1372
        %v1617 = vpack.c.b16 %v1381, %v1377
        %v1618 = vpack.c.b16 %v1382, %v1378
        %v1619 = vpack.c.b16 %v1383, %v1379
        %v1620 = vpack.c.b16 %v1384, %v1380
        %v1621 = vpack.c.b16 %v1389, %v1385
        %v1622 = vpack.c.b16 %v1390, %v1386
        %v1623 = vpack.c.b16 %v1391, %v1387
        %v1624 = vpack.c.b16 %v1392, %v1388
        %v1625 = vpack.c.b16 %v1397, %v1393
        %v1626 = vpack.c.b16 %v1398, %v1394
        %v1627 = vpack.c.b16 %v1399, %v1395
        %v1628 = vpack.c.b16 %v1400, %v1396
        %v1629 = vpack.c.b16 %v1405, %v1401
        %v1630 = vpack.c.b16 %v1406, %v1402
        %v1631 = vpack.c.b16 %v1407, %v1403
        %v1632 = vpack.c.b16 %v1408, %v1404
        %v1633 = vpack.c.b16 %v1413, %v1409
        %v1634 = vpack.c.b16 %v1414, %v1410
        %v1635 = vpack.c.b16 %v1415, %v1411
        %v1636 = vpack.c.b16 %v1416, %v1412
        %v1637 = vpack.c.b16 %v1421, %v1417
        %v1638 = vpack.c.b16 %v1422, %v1418
        %v1639 = vpack.c.b16 %v1423, %v1419
        %v1640 = vpack.c.b16 %v1424, %v1420
        %v1641 = vpack.c.b16 %v1429, %v1425
        %v1642 = vpack.c.b16 %v1430, %v1426
        %v1643 = vpack.c.b16 %v1431, %v1427
        %v1644 = vpack.c.b16 %v1432, %v1428
        %v1645 = vpack.c.b16 %v1437, %v1433
        %v1646 = vpack.c.b16 %v1438, %v1434
        %v1647 = vpack.c.b16 %v1439, %v1435
        %v1648 = vpack.c.b16 %v1440, %v1436
        %v1649 = vpack.c.b16 %v1445, %v1441
        %v1650 = vpack.c.b16 %v1446, %v1442
        %v1651 = vpack.c.b16 %v1447, %v1443
        %v1652 = vpack.c.b16 %v1448, %v1444
        %v1653 = vpack.c.b16 %v1453, %v1449
        %v1654 = vpack.c.b16 %v1454, %v1450
        %v1655 = vpack.c.b16 %v1455, %v1451
        %v1656 = vpack.c.b16 %v1456, %v1452
        %v1657 = vpack.c.b16 %v1461, %v1457
        %v1658 = vpack.c.b16 %v1462, %v1458
        %v1659 = vpack.c.b16 %v1463, %v1459
        %v1660 = vpack.c.b16 %v1464, %v1460
        %v1661 = vpack.c.b16 %v1469, %v1465
        %v1662 = vpack.c.b16 %v1470, %v1466
        %v1663 = vpack.c.b16 %v1471, %v1467
        %v1664 = vpack.c.b16 %v1472, %v1468
        %v1665 = vpack.c.b16 %v1477, %v1473
        %v1666 = vpack.c.b16 %v1478, %v1474
        %v1667 = vpack.c.b16 %v1479, %v1475
        %v1668 = vpack.c.b16 %v1480, %v1476
        %v1669 = vpack.c.b16 %v1485, %v1481
        %v1670 = vpack.c.b16 %v1486, %v1482
        %v1671 = vpack.c.b16 %v1487, %v1483
        %v1672 = vpack.c.b16 %v1488, %v1484
        %v1673 = vpack.c.b16 %v1493, %v1489
        %v1674 = vpack.c.b16 %v1494, %v1490
        %v1675 = vpack.c.b16 %v1495, %v1491
        %v1676 = vpack.c.b16 %v1496, %v1492
        %v1677 = vpack.c.b16 %v1501, %v1497
        %v1678 = vpack.c.b16 %v1502, %v1498
        %v1679 = vpack.c.b16 %v1503, %v1499
        %v1680 = vpack.c.b16 %v1504, %v1500
        %v1681 = vpack.c.b16 %v1509, %v1505
        %v1682 = vpack.c.b16 %v1510, %v1506
        %v1683 = vpack.c.b16 %v1511, %v1507
        %v1684 = vpack.c.b16 %v1512, %v1508
        %v1685 = vpack.c.b16 %v1517, %v1513
        %v1686 = vpack.c.b16 %v1518, %v1514
        %v1687 = vpack.c.b16 %v1519, %v1515
        %v1688 = vpack.c.b16 %v1520, %v1516
        %v1689 = vpack.c.b16 %v1525, %v1521
        %v1690 = vpack.c.b16 %v1526, %v1522
        %v1691 = vpack.c.b16 %v1527, %v1523
        %v1692 = vpack.c.b16 %v1528, %v1524
        %v1693 = vpack.c.b16 %v1533, %v1529
        %v1694 = vpack.c.b16 %v1534, %v1530
        %v1695 = vpack.c.b16 %v1535, %v1531
        %v1696 = vpack.c.b16 %v1536, %v1532
        %v1697 = vpack.c.b16 %v1541, %v1537
        %v1698 = vpack.c.b16 %v1542, %v1538
        %v1699 = vpack.c.b16 %v1543, %v1539
        %v1700 = vpack.c.b16 %v1544, %v1540
        %v1701 = vpack.c.b16 %v1549, %v1545
        %v1702 = vpack.c.b16 %v1550, %v1546
        %v1703 = vpack.c.b16 %v1551, %v1547
        %v1704 = vpack.c.b16 %v1552, %v1548
        %v1705 = vpack.c.b16 %v1557, %v1553
        %v1706 = vpack.c.b16 %v1558, %v1554
        %v1707 = vpack.c.b16 %v1559, %v1555
        %v1708 = vpack.c.b16 %v1560, %v1556
        %v1709 = vpack.c.b16 %v1565, %v1561
        %v1710 = vpack.c.b16 %v1566, %v1562
        %v1711 = vpack.c.b16 %v1567, %v1563
        %v1712 = vpack.c.b16 %v1568, %v1564
        %v1713 = vpack.c.b16 %v1573, %v1569
        %v1714 = vpack.c.b16 %v1574, %v1570
        %v1715 = vpack.c.b16 %v1575, %v1571
        %v1716 = vpack.c.b16 %v1576, %v1572
        %v1717 = vpack.c.b16 %v1581, %v1577
        %v1718 = vpack.c.b16 %v1582, %v1578
        %v1719 = vpack.c.b16 %v1583, %v1579
        %v1720 = vpack.c.b16 %v1584, %v1580
        %v1721 = vpack.c.b16 %v1589, %v1585
        %v1722 = vpack.c.b16 %v1590, %v1586
        %v1723 = vpack.c.b16 %v1591, %v1587
        %v1724 = vpack.c.b16 %v1592, %v1588
        %v1725 = vpack.c.b16 %v1597, %v1593
        %v1726 = vpack.c.b16 %v1598, %v1594
        %v1727 = vpack.c.b16 %v1599, %v1595
        %v1728 = vpack.c.b16 %v1600, %v1596
        %1857 = vmatprep.subr.bf16.mxu0 %v1602
        %1858 = vmatpush1.bf16.msra.mxu0 %v1601
        %1859 = vmatprep.subr.bf16.mxu0 %v1606
        %1860 = vmatpush1.bf16.msra.mxu0 %v1605
        %1861 = vmatprep.subr.bf16.mxu0 %v1610
        %1862 = vmatpush1.bf16.msra.mxu0 %v1609
        %1863 = vmatprep.subr.bf16.mxu0 %v1614
        %1864 = vmatpush1.bf16.msra.mxu0 %v1613
        %1865 = vmatprep.subr.bf16.mxu0 %v1618
        %1866 = vmatpush1.bf16.msra.mxu0 %v1617
        %1867 = vmatprep.subr.bf16.mxu0 %v1622
        %1868 = vmatpush1.bf16.msra.mxu0 %v1621
        %1869 = vmatprep.subr.bf16.mxu0 %v1626
        %1870 = vmatpush1.bf16.msra.mxu0 %v1625
        %1871 = vmatprep.subr.bf16.mxu0 %v1630
        %1872 = vmatpush1.bf16.msra.mxu0 %v1629
        %1873 = vmatprep.subr.bf16.mxu0 %v1634
        %1874 = vmatpush1.bf16.msra.mxu0 %v1633
        %1875 = vmatprep.subr.bf16.mxu0 %v1638
        %1876 = vmatpush1.bf16.msra.mxu0 %v1637
        %1877 = vmatprep.subr.bf16.mxu0 %v1642
        %1878 = vmatpush1.bf16.msra.mxu0 %v1641
        %1879 = vmatprep.subr.bf16.mxu0 %v1646
        %1880 = vmatpush1.bf16.msra.mxu0 %v1645
        %1881 = vmatprep.subr.bf16.mxu0 %v1650
        %1882 = vmatpush1.bf16.msra.mxu0 %v1649
        %1883 = vmatprep.subr.bf16.mxu0 %v1654
        %1884 = vmatpush1.bf16.msra.mxu0 %v1653
        %1885 = vmatprep.subr.bf16.mxu0 %v1658
        %1886 = vmatpush1.bf16.msra.mxu0 %v1657
        %1887 = vmatprep.subr.bf16.mxu0 %v1662
        %1888 = vmatpush1.bf16.msra.mxu0 %v1661
        %1889 = vmatprep.mubr.bf16.mxu0 %v1090
        %1890 = vmatmul.mubr.bf16.gmra.mrb[0].mxu0 %v1089
        %v1891 = vpop.f32.mrb[0].mxu0
        %v1892 = vadd.f32 %v880, %v1891
        %v1893 = vpop.f32.mrb[0].mxu0
        %v1894 = vadd.f32 %v884, %v1893
        %v1895 = vpop.f32.mrb[0].mxu0
        %v1896 = vadd.f32 %v880, %v1895
        %v1897 = vpop.f32.mrb[0].mxu0
        %v1898 = vadd.f32 %v884, %v1897
        %1899 = vmatprep.mubr.bf16.mxu0 %v1094
        %1900 = vmatmul.mubr.bf16.gmra.mrb[0].mxu0 %v1093
        %v1901 = vpop.f32.mrb[0].mxu0
        %v1902 = vadd.f32 %v880, %v1901
        %v1903 = vpop.f32.mrb[0].mxu0
        %v1904 = vadd.f32 %v884, %v1903
        %v1905 = vpop.f32.mrb[0].mxu0
        %v1906 = vadd.f32 %v880, %v1905
        %v1907 = vpop.f32.mrb[0].mxu0
        %v1908 = vadd.f32 %v884, %v1907
        %1909 = vmatprep.mubr.bf16.mxu0 %v1098
        %1910 = vmatmul.mubr.bf16.gmra.mrb[0].mxu0 %v1097
        %v1911 = vpop.f32.mrb[0].mxu0
        %v1912 = vadd.f32 %v880, %v1911
        %v1913 = vpop.f32.mrb[0].mxu0
        %v1914 = vadd.f32 %v884, %v1913
        %v1915 = vpop.f32.mrb[0].mxu0
        %v1916 = vadd.f32 %v880, %v1915
        %v1917 = vpop.f32.mrb[0].mxu0
        %v1918 = vadd.f32 %v884, %v1917
        %1919 = vmatprep.mubr.bf16.mxu0 %v1102
        %1920 = vmatmul.mubr.bf16.gmra.mrb[0].mxu0 %v1101
        %v1921 = vpop.f32.mrb[0].mxu0
        %v1922 = vadd.f32 %v880, %v1921
        %v1923 = vpop.f32.mrb[0].mxu0
        %v1924 = vadd.f32 %v884, %v1923
        %v1925 = vpop.f32.mrb[0].mxu0
        %v1926 = vadd.f32 %v880, %v1925
        %v1927 = vpop.f32.mrb[0].mxu0
        %v1928 = vadd.f32 %v884, %v1927
        %1929 = vmatprep.mubr.bf16.mxu0 %v1106
        %1930 = vmatmul.mubr.bf16.gmra.mrb[0].mxu0 %v1105
        %v1931 = vpop.f32.mrb[0].mxu0
        %v1932 = vadd.f32 %v880, %v1931
        %v1933 = vpop.f32.mrb[0].mxu0
        %v1934 = vadd.f32 %v884, %v1933
        %v1935 = vpop.f32.mrb[0].mxu0
        %v1936 = vadd.f32 %v880, %v1935
        %v1937 = vpop.f32.mrb[0].mxu0
        %v1938 = vadd.f32 %v884, %v1937
        %1939 = vmatprep.mubr.bf16.mxu0 %v1110
        %1940 = vmatmul.mubr.bf16.gmra.mrb[0].mxu0 %v1109
        %v1941 = vpop.f32.mrb[0].mxu0
        %v1942 = vadd.f32 %v880, %v1941
        %v1943 = vpop.f32.mrb[0].mxu0
        %v1944 = vadd.f32 %v884, %v1943
        %v1945 = vpop.f32.mrb[0].mxu0
        %v1946 = vadd.f32 %v880, %v1945
        %v1947 = vpop.f32.mrb[0].mxu0
        %v1948 = vadd.f32 %v884, %v1947
        %1949 = vmatprep.mubr.bf16.mxu0 %v1114
        %1950 = vmatmul.mubr.bf16.gmra.mrb[0].mxu0 %v1113
        %v1951 = vpop.f32.mrb[0].mxu0
        %v1952 = vadd.f32 %v880, %v1951
        %v1953 = vpop.f32.mrb[0].mxu0
        %v1954 = vadd.f32 %v884, %v1953
        %v1955 = vpop.f32.mrb[0].mxu0
        %v1956 = vadd.f32 %v880, %v1955
        %v1957 = vpop.f32.mrb[0].mxu0
        %v1958 = vadd.f32 %v884, %v1957
        %1959 = vmatprep.mubr.bf16.mxu0 %v1118
        %1960 = vmatmul.mubr.bf16.gmra.mrb[0].mxu0 %v1117
        %v1961 = vpop.f32.mrb[0].mxu0
        %v1962 = vadd.f32 %v880, %v1961
        %v1963 = vpop.f32.mrb[0].mxu0
        %v1964 = vadd.f32 %v884, %v1963
        %v1965 = vpop.f32.mrb[0].mxu0
        %v1966 = vadd.f32 %v880, %v1965
        %v1967 = vpop.f32.mrb[0].mxu0
        %v1968 = vadd.f32 %v884, %v1967
        %1969 = vmatprep.mubr.bf16.mxu0 %v1122
        %1970 = vmatmul.mubr.bf16.gmra.mrb[0].mxu0 %v1121
        %v1971 = vpop.f32.mrb[0].mxu0
        %v1972 = vadd.f32 %v880, %v1971
        %v1973 = vpop.f32.mrb[0].mxu0
        %v1974 = vadd.f32 %v884, %v1973
        %v1975 = vpop.f32.mrb[0].mxu0
        %v1976 = vadd.f32 %v880, %v1975
        %v1977 = vpop.f32.mrb[0].mxu0
        %v1978 = vadd.f32 %v884, %v1977
        %1979 = vmatprep.mubr.bf16.mxu0 %v1126
        %1980 = vmatmul.mubr.bf16.gmra.mrb[0].mxu0 %v1125
        %v1981 = vpop.f32.mrb[0].mxu0
        %v1982 = vadd.f32 %v880, %v1981
        %v1983 = vpop.f32.mrb[0].mxu0
        %v1984 = vadd.f32 %v884, %v1983
        %v1985 = vpop.f32.mrb[0].mxu0
        %v1986 = vadd.f32 %v880, %v1985
        %v1987 = vpop.f32.mrb[0].mxu0
        %v1988 = vadd.f32 %v884, %v1987
        %1989 = vmatprep.mubr.bf16.mxu0 %v1130
        %1990 = vmatmul.mubr.bf16.gmra.mrb[0].mxu0 %v1129
        %v1991 = vpop.f32.mrb[0].mxu0
        %v1992 = vadd.f32 %v880, %v1991
        %v1993 = vpop.f32.mrb[0].mxu0
        %v1994 = vadd.f32 %v884, %v1993
        %v1995 = vpop.f32.mrb[0].mxu0
        %v1996 = vadd.f32 %v880, %v1995
        %v1997 = vpop.f32.mrb[0].mxu0
        %v1998 = vadd.f32 %v884, %v1997
        %1999 = vmatprep.mubr.bf16.mxu0 %v1134
        %2000 = vmatmul.mubr.bf16.gmra.mrb[0].mxu0 %v1133
        %v2001 = vpop.f32.mrb[0].mxu0
        %v2002 = vadd.f32 %v880, %v2001
        %v2003 = vpop.f32.mrb[0].mxu0
        %v2004 = vadd.f32 %v884, %v2003
        %v2005 = vpop.f32.mrb[0].mxu0
        %v2006 = vadd.f32 %v880, %v2005
        %v2007 = vpop.f32.mrb[0].mxu0
        %v2008 = vadd.f32 %v884, %v2007
        %2009 = vmatprep.mubr.bf16.mxu0 %v1138
        %2010 = vmatmul.mubr.bf16.gmra.mrb[0].mxu0 %v1137
        %v2011 = vpop.f32.mrb[0].mxu0
        %v2012 = vadd.f32 %v880, %v2011
        %v2013 = vpop.f32.mrb[0].mxu0
        %v2014 = vadd.f32 %v884, %v2013
        %v2015 = vpop.f32.mrb[0].mxu0
        %v2016 = vadd.f32 %v880, %v2015
        %v2017 = vpop.f32.mrb[0].mxu0
        %v2018 = vadd.f32 %v884, %v2017
        %2019 = vmatprep.mubr.bf16.mxu0 %v1142
        %2020 = vmatmul.mubr.bf16.gmra.mrb[0].mxu0 %v1141
        %v2021 = vpop.f32.mrb[0].mxu0
        %v2022 = vadd.f32 %v880, %v2021
        %v2023 = vpop.f32.mrb[0].mxu0
        %v2024 = vadd.f32 %v884, %v2023
        %v2025 = vpop.f32.mrb[0].mxu0
        %v2026 = vadd.f32 %v880, %v2025
        %v2027 = vpop.f32.mrb[0].mxu0
        %v2028 = vadd.f32 %v884, %v2027
        %2029 = vmatprep.mubr.bf16.mxu0 %v1146
        %2030 = vmatmul.mubr.bf16.gmra.mrb[0].mxu0 %v1145
        %v2031 = vpop.f32.mrb[0].mxu0
        %v2032 = vadd.f32 %v880, %v2031
        %v2033 = vpop.f32.mrb[0].mxu0
        %v2034 = vadd.f32 %v884, %v2033
        %v2035 = vpop.f32.mrb[0].mxu0
        %v2036 = vadd.f32 %v880, %v2035
        %v2037 = vpop.f32.mrb[0].mxu0
        %v2038 = vadd.f32 %v884, %v2037
        %2039 = vmatprep.mubr.bf16.mxu0 %v1150
        %2040 = vmatmul.mubr.bf16.gmra.mrb[0].mxu0 %v1149
        %v2041 = vpop.f32.mrb[0].mxu0
        %v2042 = vadd.f32 %v880, %v2041
        %v2043 = vpop.f32.mrb[0].mxu0
        %v2044 = vadd.f32 %v884, %v2043
        %v2045 = vpop.f32.mrb[0].mxu0
        %v2046 = vadd.f32 %v880, %v2045
        %v2047 = vpop.f32.mrb[0].mxu0
        %v2048 = vadd.f32 %v884, %v2047
        %2049 = vdwg.mxu0
        %2050 = vmatprep.subr.bf16.mxu0 %v1666
        %2051 = vmatpush1.bf16.msra.mxu0 %v1665
        %2052 = vmatprep.subr.bf16.mxu0 %v1670
        %2053 = vmatpush1.bf16.msra.mxu0 %v1669
        %2054 = vmatprep.subr.bf16.mxu0 %v1674
        %2055 = vmatpush1.bf16.msra.mxu0 %v1673
        %2056 = vmatprep.subr.bf16.mxu0 %v1678
        %2057 = vmatpush1.bf16.msra.mxu0 %v1677
        %2058 = vmatprep.subr.bf16.mxu0 %v1682
        %2059 = vmatpush1.bf16.msra.mxu0 %v1681
        %2060 = vmatprep.subr.bf16.mxu0 %v1686
        %2061 = vmatpush1.bf16.msra.mxu0 %v1685
        %2062 = vmatprep.subr.bf16.mxu0 %v1690
        %2063 = vmatpush1.bf16.msra.mxu0 %v1689
        %2064 = vmatprep.subr.bf16.mxu0 %v1694
        %2065 = vmatpush1.bf16.msra.mxu0 %v1693
        %2066 = vmatprep.subr.bf16.mxu0 %v1698
        %2067 = vmatpush1.bf16.msra.mxu0 %v1697
        %2068 = vmatprep.subr.bf16.mxu0 %v1702
        %2069 = vmatpush1.bf16.msra.mxu0 %v1701
        %2070 = vmatprep.subr.bf16.mxu0 %v1706
        %2071 = vmatpush1.bf16.msra.mxu0 %v1705
        %2072 = vmatprep.subr.bf16.mxu0 %v1710
        %2073 = vmatpush1.bf16.msra.mxu0 %v1709
        %2074 = vmatprep.subr.bf16.mxu0 %v1714
        %2075 = vmatpush1.bf16.msra.mxu0 %v1713
        %2076 = vmatprep.subr.bf16.mxu0 %v1718
        %2077 = vmatpush1.bf16.msra.mxu0 %v1717
        %2078 = vmatprep.subr.bf16.mxu0 %v1722
        %2079 = vmatpush1.bf16.msra.mxu0 %v1721
        %2080 = vmatprep.subr.bf16.mxu0 %v1726
        %2081 = vmatpush1.bf16.msra.mxu0 %v1725
        %2082 = vmatprep.mubr.bf16.mxu0 %v1092
        %2083 = vmatmul.mubr.bf16.gmra.mrb[0].mxu0 %v1091
        %v2084 = vpop.f32.mrb[0].mxu0
        %v2085 = vadd.f32 %v1892, %v2084
        %v2086 = vpop.f32.mrb[0].mxu0
        %v2087 = vadd.f32 %v1894, %v2086
        %v2088 = vpop.f32.mrb[0].mxu0
        %v2089 = vadd.f32 %v1896, %v2088
        %v2090 = vpop.f32.mrb[0].mxu0
        %v2091 = vadd.f32 %v1898, %v2090
        %2092 = vmatprep.mubr.bf16.mxu0 %v1096
        %2093 = vmatmul.mubr.bf16.gmra.mrb[0].mxu0 %v1095
        %v2094 = vpop.f32.mrb[0].mxu0
        %v2095 = vadd.f32 %v1902, %v2094
        %v2096 = vpop.f32.mrb[0].mxu0
        %v2097 = vadd.f32 %v1904, %v2096
        %v2098 = vpop.f32.mrb[0].mxu0
        %v2099 = vadd.f32 %v1906, %v2098
        %v2100 = vpop.f32.mrb[0].mxu0
        %v2101 = vadd.f32 %v1908, %v2100
        %2102 = vmatprep.mubr.bf16.mxu0 %v1100
        %2103 = vmatmul.mubr.bf16.gmra.mrb[0].mxu0 %v1099
        %v2104 = vpop.f32.mrb[0].mxu0
        %v2105 = vadd.f32 %v1912, %v2104
        %v2106 = vpop.f32.mrb[0].mxu0
        %v2107 = vadd.f32 %v1914, %v2106
        %v2108 = vpop.f32.mrb[0].mxu0
        %v2109 = vadd.f32 %v1916, %v2108
        %v2110 = vpop.f32.mrb[0].mxu0
        %v2111 = vadd.f32 %v1918, %v2110
        %2112 = vmatprep.mubr.bf16.mxu0 %v1104
        %2113 = vmatmul.mubr.bf16.gmra.mrb[0].mxu0 %v1103
        %v2114 = vpop.f32.mrb[0].mxu0
        %v2115 = vadd.f32 %v1922, %v2114
        %v2116 = vpop.f32.mrb[0].mxu0
        %v2117 = vadd.f32 %v1924, %v2116
        %v2118 = vpop.f32.mrb[0].mxu0
        %v2119 = vadd.f32 %v1926, %v2118
        %v2120 = vpop.f32.mrb[0].mxu0
        %v2121 = vadd.f32 %v1928, %v2120
        %2122 = vmatprep.mubr.bf16.mxu0 %v1108
        %2123 = vmatmul.mubr.bf16.gmra.mrb[0].mxu0 %v1107
        %v2124 = vpop.f32.mrb[0].mxu0
        %v2125 = vadd.f32 %v1932, %v2124
        %v2126 = vpop.f32.mrb[0].mxu0
        %v2127 = vadd.f32 %v1934, %v2126
        %v2128 = vpop.f32.mrb[0].mxu0
        %v2129 = vadd.f32 %v1936, %v2128
        %v2130 = vpop.f32.mrb[0].mxu0
        %v2131 = vadd.f32 %v1938, %v2130
        %2132 = vmatprep.mubr.bf16.mxu0 %v1112
        %2133 = vmatmul.mubr.bf16.gmra.mrb[0].mxu0 %v1111
        %v2134 = vpop.f32.mrb[0].mxu0
        %v2135 = vadd.f32 %v1942, %v2134
        %v2136 = vpop.f32.mrb[0].mxu0
        %v2137 = vadd.f32 %v1944, %v2136
        %v2138 = vpop.f32.mrb[0].mxu0
        %v2139 = vadd.f32 %v1946, %v2138
        %v2140 = vpop.f32.mrb[0].mxu0
        %v2141 = vadd.f32 %v1948, %v2140
        %2142 = vmatprep.mubr.bf16.mxu0 %v1116
        %2143 = vmatmul.mubr.bf16.gmra.mrb[0].mxu0 %v1115
        %v2144 = vpop.f32.mrb[0].mxu0
        %v2145 = vadd.f32 %v1952, %v2144
        %v2146 = vpop.f32.mrb[0].mxu0
        %v2147 = vadd.f32 %v1954, %v2146
        %v2148 = vpop.f32.mrb[0].mxu0
        %v2149 = vadd.f32 %v1956, %v2148
        %v2150 = vpop.f32.mrb[0].mxu0
        %v2151 = vadd.f32 %v1958, %v2150
        %2152 = vmatprep.mubr.bf16.mxu0 %v1120
        %2153 = vmatmul.mubr.bf16.gmra.mrb[0].mxu0 %v1119
        %v2154 = vpop.f32.mrb[0].mxu0
        %v2155 = vadd.f32 %v1962, %v2154
        %v2156 = vpop.f32.mrb[0].mxu0
        %v2157 = vadd.f32 %v1964, %v2156
        %v2158 = vpop.f32.mrb[0].mxu0
        %v2159 = vadd.f32 %v1966, %v2158
        %v2160 = vpop.f32.mrb[0].mxu0
        %v2161 = vadd.f32 %v1968, %v2160
        %2162 = vmatprep.mubr.bf16.mxu0 %v1124
        %2163 = vmatmul.mubr.bf16.gmra.mrb[0].mxu0 %v1123
        %v2164 = vpop.f32.mrb[0].mxu0
        %v2165 = vadd.f32 %v1972, %v2164
        %v2166 = vpop.f32.mrb[0].mxu0
        %v2167 = vadd.f32 %v1974, %v2166
        %v2168 = vpop.f32.mrb[0].mxu0
        %v2169 = vadd.f32 %v1976, %v2168
        %v2170 = vpop.f32.mrb[0].mxu0
        %v2171 = vadd.f32 %v1978, %v2170
        %2172 = vmatprep.mubr.bf16.mxu0 %v1128
        %2173 = vmatmul.mubr.bf16.gmra.mrb[0].mxu0 %v1127
        %v2174 = vpop.f32.mrb[0].mxu0
        %v2175 = vadd.f32 %v1982, %v2174
        %v2176 = vpop.f32.mrb[0].mxu0
        %v2177 = vadd.f32 %v1984, %v2176
        %v2178 = vpop.f32.mrb[0].mxu0
        %v2179 = vadd.f32 %v1986, %v2178
        %v2180 = vpop.f32.mrb[0].mxu0
        %v2181 = vadd.f32 %v1988, %v2180
        %2182 = vmatprep.mubr.bf16.mxu0 %v1132
        %2183 = vmatmul.mubr.bf16.gmra.mrb[0].mxu0 %v1131
        %v2184 = vpop.f32.mrb[0].mxu0
        %v2185 = vadd.f32 %v1992, %v2184
        %v2186 = vpop.f32.mrb[0].mxu0
        %v2187 = vadd.f32 %v1994, %v2186
        %v2188 = vpop.f32.mrb[0].mxu0
        %v2189 = vadd.f32 %v1996, %v2188
        %v2190 = vpop.f32.mrb[0].mxu0
        %v2191 = vadd.f32 %v1998, %v2190
        %2192 = vmatprep.mubr.bf16.mxu0 %v1136
        %2193 = vmatmul.mubr.bf16.gmra.mrb[0].mxu0 %v1135
        %v2194 = vpop.f32.mrb[0].mxu0
        %v2195 = vadd.f32 %v2002, %v2194
        %v2196 = vpop.f32.mrb[0].mxu0
        %v2197 = vadd.f32 %v2004, %v2196
        %v2198 = vpop.f32.mrb[0].mxu0
        %v2199 = vadd.f32 %v2006, %v2198
        %v2200 = vpop.f32.mrb[0].mxu0
        %v2201 = vadd.f32 %v2008, %v2200
        %2202 = vmatprep.mubr.bf16.mxu0 %v1140
        %2203 = vmatmul.mubr.bf16.gmra.mrb[0].mxu0 %v1139
        %v2204 = vpop.f32.mrb[0].mxu0
        %v2205 = vadd.f32 %v2012, %v2204
        %v2206 = vpop.f32.mrb[0].mxu0
        %v2207 = vadd.f32 %v2014, %v2206
        %v2208 = vpop.f32.mrb[0].mxu0
        %v2209 = vadd.f32 %v2016, %v2208
        %v2210 = vpop.f32.mrb[0].mxu0
        %v2211 = vadd.f32 %v2018, %v2210
        %2212 = vmatprep.mubr.bf16.mxu0 %v1144
        %2213 = vmatmul.mubr.bf16.gmra.mrb[0].mxu0 %v1143
        %v2214 = vpop.f32.mrb[0].mxu0
        %v2215 = vadd.f32 %v2022, %v2214
        %v2216 = vpop.f32.mrb[0].mxu0
        %v2217 = vadd.f32 %v2024, %v2216
        %v2218 = vpop.f32.mrb[0].mxu0
        %v2219 = vadd.f32 %v2026, %v2218
        %v2220 = vpop.f32.mrb[0].mxu0
        %v2221 = vadd.f32 %v2028, %v2220
        %2222 = vmatprep.mubr.bf16.mxu0 %v1148
        %2223 = vmatmul.mubr.bf16.gmra.mrb[0].mxu0 %v1147
        %v2224 = vpop.f32.mrb[0].mxu0
        %v2225 = vadd.f32 %v2032, %v2224
        %v2226 = vpop.f32.mrb[0].mxu0
        %v2227 = vadd.f32 %v2034, %v2226
        %v2228 = vpop.f32.mrb[0].mxu0
        %v2229 = vadd.f32 %v2036, %v2228
        %v2230 = vpop.f32.mrb[0].mxu0
        %v2231 = vadd.f32 %v2038, %v2230
        %2232 = vmatprep.mubr.bf16.mxu0 %v1152
        %2233 = vmatmul.mubr.bf16.gmra.mrb[0].mxu0 %v1151
        %v2234 = vpop.f32.mrb[0].mxu0
        %v2235 = vadd.f32 %v2042, %v2234
        %v2236 = vpop.f32.mrb[0].mxu0
        %v2237 = vadd.f32 %v2044, %v2236
        %v2238 = vpop.f32.mrb[0].mxu0
        %v2239 = vadd.f32 %v2046, %v2238
        %v2240 = vpop.f32.mrb[0].mxu0
        %v2241 = vadd.f32 %v2048, %v2240
        %2242 = vdwg.mxu0
        %2243 = vmatprep.subr.bf16.mxu0 %v1604
        %2244 = vmatpush1.bf16.msra.mxu0 %v1603
        %2245 = vmatprep.subr.bf16.mxu0 %v1608
        %2246 = vmatpush1.bf16.msra.mxu0 %v1607
        %2247 = vmatprep.subr.bf16.mxu0 %v1612
        %2248 = vmatpush1.bf16.msra.mxu0 %v1611
        %2249 = vmatprep.subr.bf16.mxu0 %v1616
        %2250 = vmatpush1.bf16.msra.mxu0 %v1615
        %2251 = vmatprep.subr.bf16.mxu0 %v1620
        %2252 = vmatpush1.bf16.msra.mxu0 %v1619
        %2253 = vmatprep.subr.bf16.mxu0 %v1624
        %2254 = vmatpush1.bf16.msra.mxu0 %v1623
        %2255 = vmatprep.subr.bf16.mxu0 %v1628
        %2256 = vmatpush1.bf16.msra.mxu0 %v1627
        %2257 = vmatprep.subr.bf16.mxu0 %v1632
        %2258 = vmatpush1.bf16.msra.mxu0 %v1631
        %2259 = vmatprep.subr.bf16.mxu0 %v1636
        %2260 = vmatpush1.bf16.msra.mxu0 %v1635
        %2261 = vmatprep.subr.bf16.mxu0 %v1640
        %2262 = vmatpush1.bf16.msra.mxu0 %v1639
        %2263 = vmatprep.subr.bf16.mxu0 %v1644
        %2264 = vmatpush1.bf16.msra.mxu0 %v1643
        %2265 = vmatprep.subr.bf16.mxu0 %v1648
        %2266 = vmatpush1.bf16.msra.mxu0 %v1647
        %2267 = vmatprep.subr.bf16.mxu0 %v1652
        %2268 = vmatpush1.bf16.msra.mxu0 %v1651
        %2269 = vmatprep.subr.bf16.mxu0 %v1656
        %2270 = vmatpush1.bf16.msra.mxu0 %v1655
        %2271 = vmatprep.subr.bf16.mxu0 %v1660
        %2272 = vmatpush1.bf16.msra.mxu0 %v1659
        %2273 = vmatprep.subr.bf16.mxu0 %v1664
        %2274 = vmatpush1.bf16.msra.mxu0 %v1663
        %2275 = vmatprep.mubr.bf16.mxu0 %v1090
        %2276 = vmatmul.mubr.bf16.gmra.mrb[0].mxu0 %v1089
        %v2277 = vpop.f32.mrb[0].mxu0
        %v2278 = vadd.f32 %v888, %v2277
        %v2279 = vpop.f32.mrb[0].mxu0
        %v2280 = vadd.f32 %v892, %v2279
        %v2281 = vpop.f32.mrb[0].mxu0
        %v2282 = vadd.f32 %v888, %v2281
        %v2283 = vpop.f32.mrb[0].mxu0
        %v2284 = vadd.f32 %v892, %v2283
        %2285 = vmatprep.mubr.bf16.mxu0 %v1094
        %2286 = vmatmul.mubr.bf16.gmra.mrb[0].mxu0 %v1093
        %v2287 = vpop.f32.mrb[0].mxu0
        %v2288 = vadd.f32 %v888, %v2287
        %v2289 = vpop.f32.mrb[0].mxu0
        %v2290 = vadd.f32 %v892, %v2289
        %v2291 = vpop.f32.mrb[0].mxu0
        %v2292 = vadd.f32 %v888, %v2291
        %v2293 = vpop.f32.mrb[0].mxu0
        %v2294 = vadd.f32 %v892, %v2293
        %2295 = vmatprep.mubr.bf16.mxu0 %v1098
        %2296 = vmatmul.mubr.bf16.gmra.mrb[0].mxu0 %v1097
        %v2297 = vpop.f32.mrb[0].mxu0
        %v2298 = vadd.f32 %v888, %v2297
        %v2299 = vpop.f32.mrb[0].mxu0
        %v2300 = vadd.f32 %v892, %v2299
        %v2301 = vpop.f32.mrb[0].mxu0
        %v2302 = vadd.f32 %v888, %v2301
        %v2303 = vpop.f32.mrb[0].mxu0
        %v2304 = vadd.f32 %v892, %v2303
        %2305 = vmatprep.mubr.bf16.mxu0 %v1102
        %2306 = vmatmul.mubr.bf16.gmra.mrb[0].mxu0 %v1101
        %v2307 = vpop.f32.mrb[0].mxu0
        %v2308 = vadd.f32 %v888, %v2307
        %v2309 = vpop.f32.mrb[0].mxu0
        %v2310 = vadd.f32 %v892, %v2309
        %v2311 = vpop.f32.mrb[0].mxu0
        %v2312 = vadd.f32 %v888, %v2311
        %v2313 = vpop.f32.mrb[0].mxu0
        %v2314 = vadd.f32 %v892, %v2313
        %2315 = vmatprep.mubr.bf16.mxu0 %v1106
        %2316 = vmatmul.mubr.bf16.gmra.mrb[0].mxu0 %v1105
        %v2317 = vpop.f32.mrb[0].mxu0
        %v2318 = vadd.f32 %v888, %v2317
        %v2319 = vpop.f32.mrb[0].mxu0
        %v2320 = vadd.f32 %v892, %v2319
        %v2321 = vpop.f32.mrb[0].mxu0
        %v2322 = vadd.f32 %v888, %v2321
        %v2323 = vpop.f32.mrb[0].mxu0
        %v2324 = vadd.f32 %v892, %v2323
        %2325 = vmatprep.mubr.bf16.mxu0 %v1110
        %2326 = vmatmul.mubr.bf16.gmra.mrb[0].mxu0 %v1109
        %v2327 = vpop.f32.mrb[0].mxu0
        %v2328 = vadd.f32 %v888, %v2327
        %v2329 = vpop.f32.mrb[0].mxu0
        %v2330 = vadd.f32 %v892, %v2329
        %v2331 = vpop.f32.mrb[0].mxu0
        %v2332 = vadd.f32 %v888, %v2331
        %v2333 = vpop.f32.mrb[0].mxu0
        %v2334 = vadd.f32 %v892, %v2333
        %2335 = vmatprep.mubr.bf16.mxu0 %v1114
        %2336 = vmatmul.mubr.bf16.gmra.mrb[0].mxu0 %v1113
        %v2337 = vpop.f32.mrb[0].mxu0
        %v2338 = vadd.f32 %v888, %v2337
        %v2339 = vpop.f32.mrb[0].mxu0
        %v2340 = vadd.f32 %v892, %v2339
        %v2341 = vpop.f32.mrb[0].mxu0
        %v2342 = vadd.f32 %v888, %v2341
        %v2343 = vpop.f32.mrb[0].mxu0
        %v2344 = vadd.f32 %v892, %v2343
        %2345 = vmatprep.mubr.bf16.mxu0 %v1118
        %2346 = vmatmul.mubr.bf16.gmra.mrb[0].mxu0 %v1117
        %v2347 = vpop.f32.mrb[0].mxu0
        %v2348 = vadd.f32 %v888, %v2347
        %v2349 = vpop.f32.mrb[0].mxu0
        %v2350 = vadd.f32 %v892, %v2349
        %v2351 = vpop.f32.mrb[0].mxu0
        %v2352 = vadd.f32 %v888, %v2351
        %v2353 = vpop.f32.mrb[0].mxu0
        %v2354 = vadd.f32 %v892, %v2353
        %2355 = vmatprep.mubr.bf16.mxu0 %v1122
        %2356 = vmatmul.mubr.bf16.gmra.mrb[0].mxu0 %v1121
        %v2357 = vpop.f32.mrb[0].mxu0
        %v2358 = vadd.f32 %v888, %v2357
        %v2359 = vpop.f32.mrb[0].mxu0
        %v2360 = vadd.f32 %v892, %v2359
        %v2361 = vpop.f32.mrb[0].mxu0
        %v2362 = vadd.f32 %v888, %v2361
        %v2363 = vpop.f32.mrb[0].mxu0
        %v2364 = vadd.f32 %v892, %v2363
        %2365 = vmatprep.mubr.bf16.mxu0 %v1126
        %2366 = vmatmul.mubr.bf16.gmra.mrb[0].mxu0 %v1125
        %v2367 = vpop.f32.mrb[0].mxu0
        %v2368 = vadd.f32 %v888, %v2367
        %v2369 = vpop.f32.mrb[0].mxu0
        %v2370 = vadd.f32 %v892, %v2369
        %v2371 = vpop.f32.mrb[0].mxu0
        %v2372 = vadd.f32 %v888, %v2371
        %v2373 = vpop.f32.mrb[0].mxu0
        %v2374 = vadd.f32 %v892, %v2373
        %2375 = vmatprep.mubr.bf16.mxu0 %v1130
        %2376 = vmatmul.mubr.bf16.gmra.mrb[0].mxu0 %v1129
        %v2377 = vpop.f32.mrb[0].mxu0
        %v2378 = vadd.f32 %v888, %v2377
        %v2379 = vpop.f32.mrb[0].mxu0
        %v2380 = vadd.f32 %v892, %v2379
        %v2381 = vpop.f32.mrb[0].mxu0
        %v2382 = vadd.f32 %v888, %v2381
        %v2383 = vpop.f32.mrb[0].mxu0
        %v2384 = vadd.f32 %v892, %v2383
        %2385 = vmatprep.mubr.bf16.mxu0 %v1134
        %2386 = vmatmul.mubr.bf16.gmra.mrb[0].mxu0 %v1133
        %v2387 = vpop.f32.mrb[0].mxu0
        %v2388 = vadd.f32 %v888, %v2387
        %v2389 = vpop.f32.mrb[0].mxu0
        %v2390 = vadd.f32 %v892, %v2389
        %v2391 = vpop.f32.mrb[0].mxu0
        %v2392 = vadd.f32 %v888, %v2391
        %v2393 = vpop.f32.mrb[0].mxu0
        %v2394 = vadd.f32 %v892, %v2393
        %2395 = vmatprep.mubr.bf16.mxu0 %v1138
        %2396 = vmatmul.mubr.bf16.gmra.mrb[0].mxu0 %v1137
        %v2397 = vpop.f32.mrb[0].mxu0
        %v2398 = vadd.f32 %v888, %v2397
        %v2399 = vpop.f32.mrb[0].mxu0
        %v2400 = vadd.f32 %v892, %v2399
        %v2401 = vpop.f32.mrb[0].mxu0
        %v2402 = vadd.f32 %v888, %v2401
        %v2403 = vpop.f32.mrb[0].mxu0
        %v2404 = vadd.f32 %v892, %v2403
        %2405 = vmatprep.mubr.bf16.mxu0 %v1142
        %2406 = vmatmul.mubr.bf16.gmra.mrb[0].mxu0 %v1141
        %v2407 = vpop.f32.mrb[0].mxu0
        %v2408 = vadd.f32 %v888, %v2407
        %v2409 = vpop.f32.mrb[0].mxu0
        %v2410 = vadd.f32 %v892, %v2409
        %v2411 = vpop.f32.mrb[0].mxu0
        %v2412 = vadd.f32 %v888, %v2411
        %v2413 = vpop.f32.mrb[0].mxu0
        %v2414 = vadd.f32 %v892, %v2413
        %2415 = vmatprep.mubr.bf16.mxu0 %v1146
        %2416 = vmatmul.mubr.bf16.gmra.mrb[0].mxu0 %v1145
        %v2417 = vpop.f32.mrb[0].mxu0
        %v2418 = vadd.f32 %v888, %v2417
        %v2419 = vpop.f32.mrb[0].mxu0
        %v2420 = vadd.f32 %v892, %v2419
        %v2421 = vpop.f32.mrb[0].mxu0
        %v2422 = vadd.f32 %v888, %v2421
        %v2423 = vpop.f32.mrb[0].mxu0
        %v2424 = vadd.f32 %v892, %v2423
        %2425 = vmatprep.mubr.bf16.mxu0 %v1150
        %2426 = vmatmul.mubr.bf16.gmra.mrb[0].mxu0 %v1149
        %v2427 = vpop.f32.mrb[0].mxu0
        %v2428 = vadd.f32 %v888, %v2427
        %v2429 = vpop.f32.mrb[0].mxu0
        %v2430 = vadd.f32 %v892, %v2429
        %v2431 = vpop.f32.mrb[0].mxu0
        %v2432 = vadd.f32 %v888, %v2431
        %v2433 = vpop.f32.mrb[0].mxu0
        %v2434 = vadd.f32 %v892, %v2433
        %2435 = vdwg.mxu0
        %2436 = vmatprep.subr.bf16.mxu0 %v1668
        %2437 = vmatpush1.bf16.msra.mxu0 %v1667
        %2438 = vmatprep.subr.bf16.mxu0 %v1672
        %2439 = vmatpush1.bf16.msra.mxu0 %v1671
        %2440 = vmatprep.subr.bf16.mxu0 %v1676
        %2441 = vmatpush1.bf16.msra.mxu0 %v1675
        %2442 = vmatprep.subr.bf16.mxu0 %v1680
        %2443 = vmatpush1.bf16.msra.mxu0 %v1679
        %2444 = vmatprep.subr.bf16.mxu0 %v1684
        %2445 = vmatpush1.bf16.msra.mxu0 %v1683
        %2446 = vmatprep.subr.bf16.mxu0 %v1688
        %2447 = vmatpush1.bf16.msra.mxu0 %v1687
        %2448 = vmatprep.subr.bf16.mxu0 %v1692
        %2449 = vmatpush1.bf16.msra.mxu0 %v1691
        %2450 = vmatprep.subr.bf16.mxu0 %v1696
        %2451 = vmatpush1.bf16.msra.mxu0 %v1695
        %2452 = vmatprep.subr.bf16.mxu0 %v1700
        %2453 = vmatpush1.bf16.msra.mxu0 %v1699
        %2454 = vmatprep.subr.bf16.mxu0 %v1704
        %2455 = vmatpush1.bf16.msra.mxu0 %v1703
        %2456 = vmatprep.subr.bf16.mxu0 %v1708
        %2457 = vmatpush1.bf16.msra.mxu0 %v1707
        %2458 = vmatprep.subr.bf16.mxu0 %v1712
        %2459 = vmatpush1.bf16.msra.mxu0 %v1711
        %2460 = vmatprep.subr.bf16.mxu0 %v1716
        %2461 = vmatpush1.bf16.msra.mxu0 %v1715
        %2462 = vmatprep.subr.bf16.mxu0 %v1720
        %2463 = vmatpush1.bf16.msra.mxu0 %v1719
        %2464 = vmatprep.subr.bf16.mxu0 %v1724
        %2465 = vmatpush1.bf16.msra.mxu0 %v1723
        %2466 = vmatprep.subr.bf16.mxu0 %v1728
        %2467 = vmatpush1.bf16.msra.mxu0 %v1727
        %2468 = vmatprep.mubr.bf16.mxu0 %v1092
        %2469 = vmatmul.mubr.bf16.gmra.mrb[0].mxu0 %v1091
        %v2470 = vpop.f32.mrb[0].mxu0
        %v2471 = vadd.f32 %v2278, %v2470
        %v2472 = vpop.f32.mrb[0].mxu0
        %v2473 = vadd.f32 %v2280, %v2472
        %v2474 = vpop.f32.mrb[0].mxu0
        %v2475 = vadd.f32 %v2282, %v2474
        %v2476 = vpop.f32.mrb[0].mxu0
        %v2477 = vadd.f32 %v2284, %v2476
        %2478 = vmatprep.mubr.bf16.mxu0 %v1096
        %2479 = vmatmul.mubr.bf16.gmra.mrb[0].mxu0 %v1095
        %v2480 = vpop.f32.mrb[0].mxu0
        %v2481 = vadd.f32 %v2288, %v2480
        %v2482 = vpop.f32.mrb[0].mxu0
        %v2483 = vadd.f32 %v2290, %v2482
        %v2484 = vpop.f32.mrb[0].mxu0
        %v2485 = vadd.f32 %v2292, %v2484
        %v2486 = vpop.f32.mrb[0].mxu0
        %v2487 = vadd.f32 %v2294, %v2486
        %2488 = vmatprep.mubr.bf16.mxu0 %v1100
        %2489 = vmatmul.mubr.bf16.gmra.mrb[0].mxu0 %v1099
        %v2490 = vpop.f32.mrb[0].mxu0
        %v2491 = vadd.f32 %v2298, %v2490
        %v2492 = vpop.f32.mrb[0].mxu0
        %v2493 = vadd.f32 %v2300, %v2492
        %v2494 = vpop.f32.mrb[0].mxu0
        %v2495 = vadd.f32 %v2302, %v2494
        %v2496 = vpop.f32.mrb[0].mxu0
        %v2497 = vadd.f32 %v2304, %v2496
        %2498 = vmatprep.mubr.bf16.mxu0 %v1104
        %2499 = vmatmul.mubr.bf16.gmra.mrb[0].mxu0 %v1103
        %v2500 = vpop.f32.mrb[0].mxu0
        %v2501 = vadd.f32 %v2308, %v2500
        %v2502 = vpop.f32.mrb[0].mxu0
        %v2503 = vadd.f32 %v2310, %v2502
        %v2504 = vpop.f32.mrb[0].mxu0
        %v2505 = vadd.f32 %v2312, %v2504
        %v2506 = vpop.f32.mrb[0].mxu0
        %v2507 = vadd.f32 %v2314, %v2506
        %2508 = vmatprep.mubr.bf16.mxu0 %v1108
        %2509 = vmatmul.mubr.bf16.gmra.mrb[0].mxu0 %v1107
        %v2510 = vpop.f32.mrb[0].mxu0
        %v2511 = vadd.f32 %v2318, %v2510
        %v2512 = vpop.f32.mrb[0].mxu0
        %v2513 = vadd.f32 %v2320, %v2512
        %v2514 = vpop.f32.mrb[0].mxu0
        %v2515 = vadd.f32 %v2322, %v2514
        %v2516 = vpop.f32.mrb[0].mxu0
        %v2517 = vadd.f32 %v2324, %v2516
        %2518 = vmatprep.mubr.bf16.mxu0 %v1112
        %2519 = vmatmul.mubr.bf16.gmra.mrb[0].mxu0 %v1111
        %v2520 = vpop.f32.mrb[0].mxu0
        %v2521 = vadd.f32 %v2328, %v2520
        %v2522 = vpop.f32.mrb[0].mxu0
        %v2523 = vadd.f32 %v2330, %v2522
        %v2524 = vpop.f32.mrb[0].mxu0
        %v2525 = vadd.f32 %v2332, %v2524
        %v2526 = vpop.f32.mrb[0].mxu0
        %v2527 = vadd.f32 %v2334, %v2526
        %2528 = vmatprep.mubr.bf16.mxu0 %v1116
        %2529 = vmatmul.mubr.bf16.gmra.mrb[0].mxu0 %v1115
        %v2530 = vpop.f32.mrb[0].mxu0
        %v2531 = vadd.f32 %v2338, %v2530
        %v2532 = vpop.f32.mrb[0].mxu0
        %v2533 = vadd.f32 %v2340, %v2532
        %v2534 = vpop.f32.mrb[0].mxu0
        %v2535 = vadd.f32 %v2342, %v2534
        %v2536 = vpop.f32.mrb[0].mxu0
        %v2537 = vadd.f32 %v2344, %v2536
        %2538 = vmatprep.mubr.bf16.mxu0 %v1120
        %2539 = vmatmul.mubr.bf16.gmra.mrb[0].mxu0 %v1119
        %v2540 = vpop.f32.mrb[0].mxu0
        %v2541 = vadd.f32 %v2348, %v2540
        %v2542 = vpop.f32.mrb[0].mxu0
        %v2543 = vadd.f32 %v2350, %v2542
        %v2544 = vpop.f32.mrb[0].mxu0
        %v2545 = vadd.f32 %v2352, %v2544
        %v2546 = vpop.f32.mrb[0].mxu0
        %v2547 = vadd.f32 %v2354, %v2546
        %2548 = vmatprep.mubr.bf16.mxu0 %v1124
        %2549 = vmatmul.mubr.bf16.gmra.mrb[0].mxu0 %v1123
        %v2550 = vpop.f32.mrb[0].mxu0
        %v2551 = vadd.f32 %v2358, %v2550
        %v2552 = vpop.f32.mrb[0].mxu0
        %v2553 = vadd.f32 %v2360, %v2552
        %v2554 = vpop.f32.mrb[0].mxu0
        %v2555 = vadd.f32 %v2362, %v2554
        %v2556 = vpop.f32.mrb[0].mxu0
        %v2557 = vadd.f32 %v2364, %v2556
        %2558 = vmatprep.mubr.bf16.mxu0 %v1128
        %2559 = vmatmul.mubr.bf16.gmra.mrb[0].mxu0 %v1127
        %v2560 = vpop.f32.mrb[0].mxu0
        %v2561 = vadd.f32 %v2368, %v2560
        %v2562 = vpop.f32.mrb[0].mxu0
        %v2563 = vadd.f32 %v2370, %v2562
        %v2564 = vpop.f32.mrb[0].mxu0
        %v2565 = vadd.f32 %v2372, %v2564
        %v2566 = vpop.f32.mrb[0].mxu0
        %v2567 = vadd.f32 %v2374, %v2566
        %2568 = vmatprep.mubr.bf16.mxu0 %v1132
        %2569 = vmatmul.mubr.bf16.gmra.mrb[0].mxu0 %v1131
        %v2570 = vpop.f32.mrb[0].mxu0
        %v2571 = vadd.f32 %v2378, %v2570
        %v2572 = vpop.f32.mrb[0].mxu0
        %v2573 = vadd.f32 %v2380, %v2572
        %v2574 = vpop.f32.mrb[0].mxu0
        %v2575 = vadd.f32 %v2382, %v2574
        %v2576 = vpop.f32.mrb[0].mxu0
        %v2577 = vadd.f32 %v2384, %v2576
        %2578 = vmatprep.mubr.bf16.mxu0 %v1136
        %2579 = vmatmul.mubr.bf16.gmra.mrb[0].mxu0 %v1135
        %v2580 = vpop.f32.mrb[0].mxu0
        %v2581 = vadd.f32 %v2388, %v2580
        %v2582 = vpop.f32.mrb[0].mxu0
        %v2583 = vadd.f32 %v2390, %v2582
        %v2584 = vpop.f32.mrb[0].mxu0
        %v2585 = vadd.f32 %v2392, %v2584
        %v2586 = vpop.f32.mrb[0].mxu0
        %v2587 = vadd.f32 %v2394, %v2586
        %2588 = vmatprep.mubr.bf16.mxu0 %v1140
        %2589 = vmatmul.mubr.bf16.gmra.mrb[0].mxu0 %v1139
        %v2590 = vpop.f32.mrb[0].mxu0
        %v2591 = vadd.f32 %v2398, %v2590
        %v2592 = vpop.f32.mrb[0].mxu0
        %v2593 = vadd.f32 %v2400, %v2592
        %v2594 = vpop.f32.mrb[0].mxu0
        %v2595 = vadd.f32 %v2402, %v2594
        %v2596 = vpop.f32.mrb[0].mxu0
        %v2597 = vadd.f32 %v2404, %v2596
        %2598 = vmatprep.mubr.bf16.mxu0 %v1144
        %2599 = vmatmul.mubr.bf16.gmra.mrb[0].mxu0 %v1143
        %v2600 = vpop.f32.mrb[0].mxu0
        %v2601 = vadd.f32 %v2408, %v2600
        %v2602 = vpop.f32.mrb[0].mxu0
        %v2603 = vadd.f32 %v2410, %v2602
        %v2604 = vpop.f32.mrb[0].mxu0
        %v2605 = vadd.f32 %v2412, %v2604
        %v2606 = vpop.f32.mrb[0].mxu0
        %v2607 = vadd.f32 %v2414, %v2606
        %2608 = vmatprep.mubr.bf16.mxu0 %v1148
        %2609 = vmatmul.mubr.bf16.gmra.mrb[0].mxu0 %v1147
        %v2610 = vpop.f32.mrb[0].mxu0
        %v2611 = vadd.f32 %v2418, %v2610
        %v2612 = vpop.f32.mrb[0].mxu0
        %v2613 = vadd.f32 %v2420, %v2612
        %v2614 = vpop.f32.mrb[0].mxu0
        %v2615 = vadd.f32 %v2422, %v2614
        %v2616 = vpop.f32.mrb[0].mxu0
        %v2617 = vadd.f32 %v2424, %v2616
        %2618 = vmatprep.mubr.bf16.mxu0 %v1152
        %2619 = vmatmul.mubr.bf16.gmra.mrb[0].mxu0 %v1151
        %v2620 = vpop.f32.mrb[0].mxu0
        %v2621 = vadd.f32 %v2428, %v2620
        %v2622 = vpop.f32.mrb[0].mxu0
        %v2623 = vadd.f32 %v2430, %v2622
        %v2624 = vpop.f32.mrb[0].mxu0
        %v2625 = vadd.f32 %v2432, %v2624
        %v2626 = vpop.f32.mrb[0].mxu0
        %v2627 = vadd.f32 %v2434, %v2626
        %2628 = vdwg.mxu0
        %v2629 = vtanh.pop %v2085
        %v2630 = vtanh.pop %v2087
        %v2631 = vtanh.pop %v2089
        %v2632 = vtanh.pop %v2091
        %v2633 = vtanh.pop %v2095
        %v2634 = vtanh.pop %v2097
        %v2635 = vtanh.pop %v2099
        %v2636 = vtanh.pop %v2101
        %v2637 = vtanh.pop %v2105
        %v2638 = vtanh.pop %v2107
        %v2639 = vtanh.pop %v2109
        %v2640 = vtanh.pop %v2111
        %v2641 = vtanh.pop %v2115
        %v2642 = vtanh.pop %v2117
        %v2643 = vtanh.pop %v2119
        %v2644 = vtanh.pop %v2121
        %v2645 = vtanh.pop %v2125
        %v2646 = vtanh.pop %v2127
        %v2647 = vtanh.pop %v2129
        %v2648 = vtanh.pop %v2131
        %v2649 = vtanh.pop %v2135
        %v2650 = vtanh.pop %v2137
        %v2651 = vtanh.pop %v2139
        %v2652 = vtanh.pop %v2141
        %v2653 = vtanh.pop %v2145
        %v2654 = vtanh.pop %v2147
        %v2655 = vtanh.pop %v2149
        %v2656 = vtanh.pop %v2151
        %v2657 = vtanh.pop %v2155
        %v2658 = vtanh.pop %v2157
        %v2659 = vtanh.pop %v2159
        %v2660 = vtanh.pop %v2161
        %v2661 = vtanh.pop %v2165
        %v2662 = vtanh.pop %v2167
        %v2663 = vtanh.pop %v2169
        %v2664 = vtanh.pop %v2171
        %v2665 = vtanh.pop %v2175
        %v2666 = vtanh.pop %v2177
        %v2667 = vtanh.pop %v2179
        %v2668 = vtanh.pop %v2181
        %v2669 = vtanh.pop %v2185
        %v2670 = vtanh.pop %v2187
        %v2671 = vtanh.pop %v2189
        %v2672 = vtanh.pop %v2191
        %v2673 = vtanh.pop %v2195
        %v2674 = vtanh.pop %v2197
        %v2675 = vtanh.pop %v2199
        %v2676 = vtanh.pop %v2201
        %v2677 = vtanh.pop %v2205
        %v2678 = vtanh.pop %v2207
        %v2679 = vtanh.pop %v2209
        %v2680 = vtanh.pop %v2211
        %v2681 = vtanh.pop %v2215
        %v2682 = vtanh.pop %v2217
        %v2683 = vtanh.pop %v2219
        %v2684 = vtanh.pop %v2221
        %v2685 = vtanh.pop %v2225
        %v2686 = vtanh.pop %v2227
        %v2687 = vtanh.pop %v2229
        %v2688 = vtanh.pop %v2231
        %v2689 = vtanh.pop %v2235
        %v2690 = vtanh.pop %v2237
        %v2691 = vtanh.pop %v2239
        %v2692 = vtanh.pop %v2241
        %v2693 = vmul.f32 %v2471, 0.5
        %v2694 = vmul.f32 %v2473, 0.5
        %v2695 = vmul.f32 %v2475, 0.5
        %v2696 = vmul.f32 %v2477, 0.5
        %v2697 = vmul.f32 %v2481, 0.5
        %v2698 = vmul.f32 %v2483, 0.5
        %v2699 = vmul.f32 %v2485, 0.5
        %v2700 = vmul.f32 %v2487, 0.5
        %v2701 = vmul.f32 %v2491, 0.5
        %v2702 = vmul.f32 %v2493, 0.5
        %v2703 = vmul.f32 %v2495, 0.5
        %v2704 = vmul.f32 %v2497, 0.5
        %v2705 = vmul.f32 %v2501, 0.5
        %v2706 = vmul.f32 %v2503, 0.5
        %v2707 = vmul.f32 %v2505, 0.5
        %v2708 = vmul.f32 %v2507, 0.5
        %v2709 = vmul.f32 %v2511, 0.5
        %v2710 = vmul.f32 %v2513, 0.5
        %v2711 = vmul.f32 %v2515, 0.5
        %v2712 = vmul.f32 %v2517, 0.5
        %v2713 = vmul.f32 %v2521, 0.5
        %v2714 = vmul.f32 %v2523, 0.5
        %v2715 = vmul.f32 %v2525, 0.5
        %v2716 = vmul.f32 %v2527, 0.5
        %v2717 = vmul.f32 %v2531, 0.5
        %v2718 = vmul.f32 %v2533, 0.5
        %v2719 = vmul.f32 %v2535, 0.5
        %v2720 = vmul.f32 %v2537, 0.5
        %v2721 = vmul.f32 %v2541, 0.5
        %v2722 = vmul.f32 %v2543, 0.5
        %v2723 = vmul.f32 %v2545, 0.5
        %v2724 = vmul.f32 %v2547, 0.5
        %v2725 = vmul.f32 %v2551, 0.5
        %v2726 = vmul.f32 %v2553, 0.5
        %v2727 = vmul.f32 %v2555, 0.5
        %v2728 = vmul.f32 %v2557, 0.5
        %v2729 = vmul.f32 %v2561, 0.5
        %v2730 = vmul.f32 %v2563, 0.5
        %v2731 = vmul.f32 %v2565, 0.5
        %v2732 = vmul.f32 %v2567, 0.5
        %v2733 = vmul.f32 %v2571, 0.5
        %v2734 = vmul.f32 %v2573, 0.5
        %v2735 = vmul.f32 %v2575, 0.5
        %v2736 = vmul.f32 %v2577, 0.5
        %v2737 = vmul.f32 %v2581, 0.5
        %v2738 = vmul.f32 %v2583, 0.5
        %v2739 = vmul.f32 %v2585, 0.5
        %v2740 = vmul.f32 %v2587, 0.5
        %v2741 = vmul.f32 %v2591, 0.5
        %v2742 = vmul.f32 %v2593, 0.5
        %v2743 = vmul.f32 %v2595, 0.5
        %v2744 = vmul.f32 %v2597, 0.5
        %v2745 = vmul.f32 %v2601, 0.5
        %v2746 = vmul.f32 %v2603, 0.5
        %v2747 = vmul.f32 %v2605, 0.5
        %v2748 = vmul.f32 %v2607, 0.5
        %v2749 = vmul.f32 %v2611, 0.5
        %v2750 = vmul.f32 %v2613, 0.5
        %v2751 = vmul.f32 %v2615, 0.5
        %v2752 = vmul.f32 %v2617, 0.5
        %v2753 = vmul.f32 %v2621, 0.5
        %v2754 = vmul.f32 %v2623, 0.5
        %v2755 = vmul.f32 %v2625, 0.5
        %v2756 = vmul.f32 %v2627, 0.5
        %v2757 = vtanh.pop %v2693
        %v2758 = vtanh.pop %v2694
        %v2759 = vtanh.pop %v2695
        %v2760 = vtanh.pop %v2696
        %v2761 = vtanh.pop %v2697
        %v2762 = vtanh.pop %v2698
        %v2763 = vtanh.pop %v2699
        %v2764 = vtanh.pop %v2700
        %v2765 = vtanh.pop %v2701
        %v2766 = vtanh.pop %v2702
        %v2767 = vtanh.pop %v2703
        %v2768 = vtanh.pop %v2704
        %v2769 = vtanh.pop %v2705
        %v2770 = vtanh.pop %v2706
        %v2771 = vtanh.pop %v2707
        %v2772 = vtanh.pop %v2708
        %v2773 = vtanh.pop %v2709
        %v2774 = vtanh.pop %v2710
        %v2775 = vtanh.pop %v2711
        %v2776 = vtanh.pop %v2712
        %v2777 = vtanh.pop %v2713
        %v2778 = vtanh.pop %v2714
        %v2779 = vtanh.pop %v2715
        %v2780 = vtanh.pop %v2716
        %v2781 = vtanh.pop %v2717
        %v2782 = vtanh.pop %v2718
        %v2783 = vtanh.pop %v2719
        %v2784 = vtanh.pop %v2720
        %v2785 = vtanh.pop %v2721
        %v2786 = vtanh.pop %v2722
        %v2787 = vtanh.pop %v2723
        %v2788 = vtanh.pop %v2724
        %v2789 = vtanh.pop %v2725
        %v2790 = vtanh.pop %v2726
        %v2791 = vtanh.pop %v2727
        %v2792 = vtanh.pop %v2728
        %v2793 = vtanh.pop %v2729
        %v2794 = vtanh.pop %v2730
        %v2795 = vtanh.pop %v2731
        %v2796 = vtanh.pop %v2732
        %v2797 = vtanh.pop %v2733
        %v2798 = vtanh.pop %v2734
        %v2799 = vtanh.pop %v2735
        %v2800 = vtanh.pop %v2736
        %v2801 = vtanh.pop %v2737
        %v2802 = vtanh.pop %v2738
        %v2803 = vtanh.pop %v2739
        %v2804 = vtanh.pop %v2740
        %v2805 = vtanh.pop %v2741
        %v2806 = vtanh.pop %v2742
        %v2807 = vtanh.pop %v2743
        %v2808 = vtanh.pop %v2744
        %v2809 = vtanh.pop %v2745
        %v2810 = vtanh.pop %v2746
        %v2811 = vtanh.pop %v2747
        %v2812 = vtanh.pop %v2748
        %v2813 = vtanh.pop %v2749
        %v2814 = vtanh.pop %v2750
        %v2815 = vtanh.pop %v2751
        %v2816 = vtanh.pop %v2752
        %v2817 = vtanh.pop %v2753
        %v2818 = vtanh.pop %v2754
        %v2819 = vtanh.pop %v2755
        %v2820 = vtanh.pop %v2756
        %v2821 = vadd.f32 %v2757, 1.0
        %v2822 = vadd.f32 %v2758, 1.0
        %v2823 = vadd.f32 %v2759, 1.0
        %v2824 = vadd.f32 %v2760, 1.0
        %v2825 = vadd.f32 %v2761, 1.0
        %v2826 = vadd.f32 %v2762, 1.0
        %v2827 = vadd.f32 %v2763, 1.0
        %v2828 = vadd.f32 %v2764, 1.0
        %v2829 = vadd.f32 %v2765, 1.0
        %v2830 = vadd.f32 %v2766, 1.0
        %v2831 = vadd.f32 %v2767, 1.0
        %v2832 = vadd.f32 %v2768, 1.0
        %v2833 = vadd.f32 %v2769, 1.0
        %v2834 = vadd.f32 %v2770, 1.0
        %v2835 = vadd.f32 %v2771, 1.0
        %v2836 = vadd.f32 %v2772, 1.0
        %v2837 = vadd.f32 %v2773, 1.0
        %v2838 = vadd.f32 %v2774, 1.0
        %v2839 = vadd.f32 %v2775, 1.0
        %v2840 = vadd.f32 %v2776, 1.0
        %v2841 = vadd.f32 %v2777, 1.0
        %v2842 = vadd.f32 %v2778, 1.0
        %v2843 = vadd.f32 %v2779, 1.0
        %v2844 = vadd.f32 %v2780, 1.0
        %v2845 = vadd.f32 %v2781, 1.0
        %v2846 = vadd.f32 %v2782, 1.0
        %v2847 = vadd.f32 %v2783, 1.0
        %v2848 = vadd.f32 %v2784, 1.0
        %v2849 = vadd.f32 %v2785, 1.0
        %v2850 = vadd.f32 %v2786, 1.0
        %v2851 = vadd.f32 %v2787, 1.0
        %v2852 = vadd.f32 %v2788, 1.0
        %v2853 = vadd.f32 %v2789, 1.0
        %v2854 = vadd.f32 %v2790, 1.0
        %v2855 = vadd.f32 %v2791, 1.0
        %v2856 = vadd.f32 %v2792, 1.0
        %v2857 = vadd.f32 %v2793, 1.0
        %v2858 = vadd.f32 %v2794, 1.0
        %v2859 = vadd.f32 %v2795, 1.0
        %v2860 = vadd.f32 %v2796, 1.0
        %v2861 = vadd.f32 %v2797, 1.0
        %v2862 = vadd.f32 %v2798, 1.0
        %v2863 = vadd.f32 %v2799, 1.0
        %v2864 = vadd.f32 %v2800, 1.0
        %v2865 = vadd.f32 %v2801, 1.0
        %v2866 = vadd.f32 %v2802, 1.0
        %v2867 = vadd.f32 %v2803, 1.0
        %v2868 = vadd.f32 %v2804, 1.0
        %v2869 = vadd.f32 %v2805, 1.0
        %v2870 = vadd.f32 %v2806, 1.0
        %v2871 = vadd.f32 %v2807, 1.0
        %v2872 = vadd.f32 %v2808, 1.0
        %v2873 = vadd.f32 %v2809, 1.0
        %v2874 = vadd.f32 %v2810, 1.0
        %v2875 = vadd.f32 %v2811, 1.0
        %v2876 = vadd.f32 %v2812, 1.0
        %v2877 = vadd.f32 %v2813, 1.0
        %v2878 = vadd.f32 %v2814, 1.0
        %v2879 = vadd.f32 %v2815, 1.0
        %v2880 = vadd.f32 %v2816, 1.0
        %v2881 = vadd.f32 %v2817, 1.0
        %v2882 = vadd.f32 %v2818, 1.0
        %v2883 = vadd.f32 %v2819, 1.0
        %v2884 = vadd.f32 %v2820, 1.0
        %v2885 = vmul.f32 %v2821, 0.5
        %v2886 = vmul.f32 %v2822, 0.5
        %v2887 = vmul.f32 %v2823, 0.5
        %v2888 = vmul.f32 %v2824, 0.5
        %v2889 = vmul.f32 %v2825, 0.5
        %v2890 = vmul.f32 %v2826, 0.5
        %v2891 = vmul.f32 %v2827, 0.5
        %v2892 = vmul.f32 %v2828, 0.5
        %v2893 = vmul.f32 %v2829, 0.5
        %v2894 = vmul.f32 %v2830, 0.5
        %v2895 = vmul.f32 %v2831, 0.5
        %v2896 = vmul.f32 %v2832, 0.5
        %v2897 = vmul.f32 %v2833, 0.5
        %v2898 = vmul.f32 %v2834, 0.5
        %v2899 = vmul.f32 %v2835, 0.5
        %v2900 = vmul.f32 %v2836, 0.5
        %v2901 = vmul.f32 %v2837, 0.5
        %v2902 = vmul.f32 %v2838, 0.5
        %v2903 = vmul.f32 %v2839, 0.5
        %v2904 = vmul.f32 %v2840, 0.5
        %v2905 = vmul.f32 %v2841, 0.5
        %v2906 = vmul.f32 %v2842, 0.5
        %v2907 = vmul.f32 %v2843, 0.5
        %v2908 = vmul.f32 %v2844, 0.5
        %v2909 = vmul.f32 %v2845, 0.5
        %v2910 = vmul.f32 %v2846, 0.5
        %v2911 = vmul.f32 %v2847, 0.5
        %v2912 = vmul.f32 %v2848, 0.5
        %v2913 = vmul.f32 %v2849, 0.5
        %v2914 = vmul.f32 %v2850, 0.5
        %v2915 = vmul.f32 %v2851, 0.5
        %v2916 = vmul.f32 %v2852, 0.5
        %v2917 = vmul.f32 %v2853, 0.5
        %v2918 = vmul.f32 %v2854, 0.5
        %v2919 = vmul.f32 %v2855, 0.5
        %v2920 = vmul.f32 %v2856, 0.5
        %v2921 = vmul.f32 %v2857, 0.5
        %v2922 = vmul.f32 %v2858, 0.5
        %v2923 = vmul.f32 %v2859, 0.5
        %v2924 = vmul.f32 %v2860, 0.5
        %v2925 = vmul.f32 %v2861, 0.5
        %v2926 = vmul.f32 %v2862, 0.5
        %v2927 = vmul.f32 %v2863, 0.5
        %v2928 = vmul.f32 %v2864, 0.5
        %v2929 = vmul.f32 %v2865, 0.5
        %v2930 = vmul.f32 %v2866, 0.5
        %v2931 = vmul.f32 %v2867, 0.5
        %v2932 = vmul.f32 %v2868, 0.5
        %v2933 = vmul.f32 %v2869, 0.5
        %v2934 = vmul.f32 %v2870, 0.5
        %v2935 = vmul.f32 %v2871, 0.5
        %v2936 = vmul.f32 %v2872, 0.5
        %v2937 = vmul.f32 %v2873, 0.5
        %v2938 = vmul.f32 %v2874, 0.5
        %v2939 = vmul.f32 %v2875, 0.5
        %v2940 = vmul.f32 %v2876, 0.5
        %v2941 = vmul.f32 %v2877, 0.5
        %v2942 = vmul.f32 %v2878, 0.5
        %v2943 = vmul.f32 %v2879, 0.5
        %v2944 = vmul.f32 %v2880, 0.5
        %v2945 = vmul.f32 %v2881, 0.5
        %v2946 = vmul.f32 %v2882, 0.5
        %v2947 = vmul.f32 %v2883, 0.5
        %v2948 = vmul.f32 %v2884, 0.5
        %v2949 = vmul.f32 %v2629, %v2885
        %v2950 = vmul.f32 %v2630, %v2886
        %v2951 = vmul.f32 %v2631, %v2887
        %v2952 = vmul.f32 %v2632, %v2888
        %v2953 = vmul.f32 %v2633, %v2889
        %v2954 = vmul.f32 %v2634, %v2890
        %v2955 = vmul.f32 %v2635, %v2891
        %v2956 = vmul.f32 %v2636, %v2892
        %v2957 = vmul.f32 %v2637, %v2893
        %v2958 = vmul.f32 %v2638, %v2894
        %v2959 = vmul.f32 %v2639, %v2895
        %v2960 = vmul.f32 %v2640, %v2896
        %v2961 = vmul.f32 %v2641, %v2897
        %v2962 = vmul.f32 %v2642, %v2898
        %v2963 = vmul.f32 %v2643, %v2899
        %v2964 = vmul.f32 %v2644, %v2900
        %v2965 = vmul.f32 %v2645, %v2901
        %v2966 = vmul.f32 %v2646, %v2902
        %v2967 = vmul.f32 %v2647, %v2903
        %v2968 = vmul.f32 %v2648, %v2904
        %v2969 = vmul.f32 %v2649, %v2905
        %v2970 = vmul.f32 %v2650, %v2906
        %v2971 = vmul.f32 %v2651, %v2907
        %v2972 = vmul.f32 %v2652, %v2908
        %v2973 = vmul.f32 %v2653, %v2909
        %v2974 = vmul.f32 %v2654, %v2910
        %v2975 = vmul.f32 %v2655, %v2911
        %v2976 = vmul.f32 %v2656, %v2912
        %v2977 = vmul.f32 %v2657, %v2913
        %v2978 = vmul.f32 %v2658, %v2914
        %v2979 = vmul.f32 %v2659, %v2915
        %v2980 = vmul.f32 %v2660, %v2916
        %v2981 = vmul.f32 %v2661, %v2917
        %v2982 = vmul.f32 %v2662, %v2918
        %v2983 = vmul.f32 %v2663, %v2919
        %v2984 = vmul.f32 %v2664, %v2920
        %v2985 = vmul.f32 %v2665, %v2921
        %v2986 = vmul.f32 %v2666, %v2922
        %v2987 = vmul.f32 %v2667, %v2923
        %v2988 = vmul.f32 %v2668, %v2924
        %v2989 = vmul.f32 %v2669, %v2925
        %v2990 = vmul.f32 %v2670, %v2926
        %v2991 = vmul.f32 %v2671, %v2927
        %v2992 = vmul.f32 %v2672, %v2928
        %v2993 = vmul.f32 %v2673, %v2929
        %v2994 = vmul.f32 %v2674, %v2930
        %v2995 = vmul.f32 %v2675, %v2931
        %v2996 = vmul.f32 %v2676, %v2932
        %v2997 = vmul.f32 %v2677, %v2933
        %v2998 = vmul.f32 %v2678, %v2934
        %v2999 = vmul.f32 %v2679, %v2935
        %v3000 = vmul.f32 %v2680, %v2936
        %v3001 = vmul.f32 %v2681, %v2937
        %v3002 = vmul.f32 %v2682, %v2938
        %v3003 = vmul.f32 %v2683, %v2939
        %v3004 = vmul.f32 %v2684, %v2940
        %v3005 = vmul.f32 %v2685, %v2941
        %v3006 = vmul.f32 %v2686, %v2942
        %v3007 = vmul.f32 %v2687, %v2943
        %v3008 = vmul.f32 %v2688, %v2944
        %v3009 = vmul.f32 %v2689, %v2945
        %v3010 = vmul.f32 %v2690, %v2946
        %v3011 = vmul.f32 %v2691, %v2947
        %v3012 = vmul.f32 %v2692, %v2948
        %v3013 = vpack.c.bf16 %v2951, %v2949
        %v3014 = vpack.c.bf16 %v2952, %v2950
        %v3015 = vpack.c.bf16 %v2955, %v2953
        %v3016 = vpack.c.bf16 %v2956, %v2954
        %v3017 = vpack.c.bf16 %v2959, %v2957
        %v3018 = vpack.c.bf16 %v2960, %v2958
        %v3019 = vpack.c.bf16 %v2963, %v2961
        %v3020 = vpack.c.bf16 %v2964, %v2962
        %v3021 = vpack.c.bf16 %v2967, %v2965
        %v3022 = vpack.c.bf16 %v2968, %v2966
        %v3023 = vpack.c.bf16 %v2971, %v2969
        %v3024 = vpack.c.bf16 %v2972, %v2970
        %v3025 = vpack.c.bf16 %v2975, %v2973
        %v3026 = vpack.c.bf16 %v2976, %v2974
        %v3027 = vpack.c.bf16 %v2979, %v2977
        %v3028 = vpack.c.bf16 %v2980, %v2978
        %v3029 = vpack.c.bf16 %v2983, %v2981
        %v3030 = vpack.c.bf16 %v2984, %v2982
        %v3031 = vpack.c.bf16 %v2987, %v2985
        %v3032 = vpack.c.bf16 %v2988, %v2986
        %v3033 = vpack.c.bf16 %v2991, %v2989
        %v3034 = vpack.c.bf16 %v2992, %v2990
        %v3035 = vpack.c.bf16 %v2995, %v2993
        %v3036 = vpack.c.bf16 %v2996, %v2994
        %v3037 = vpack.c.bf16 %v2999, %v2997
        %v3038 = vpack.c.bf16 %v3000, %v2998
        %v3039 = vpack.c.bf16 %v3003, %v3001
        %v3040 = vpack.c.bf16 %v3004, %v3002
        %v3041 = vpack.c.bf16 %v3007, %v3005
        %v3042 = vpack.c.bf16 %v3008, %v3006
        %v3043 = vpack.c.bf16 %v3011, %v3009
        %v3044 = vpack.c.bf16 %v3012, %v3010
        %v3045 = vld [vmem:[%s475] sm:$0xff]
        %v3046 = vld [vmem:[%s475 + $0x8] sm:$0xff]
        %v3047 = vld [vmem:[%s475 + $0x10] sm:$0xff]
        %v3048 = vld [vmem:[%s475 + $0x18] sm:$0xff]
        %v3049 = vld [vmem:[%s475 + $0x20] sm:$0xff]
        %v3050 = vld [vmem:[%s475 + $0x28] sm:$0xff]
        %v3051 = vld [vmem:[%s475 + $0x30] sm:$0xff]
        %v3052 = vld [vmem:[%s475 + $0x38] sm:$0xff]
        %v3053 = vld [vmem:[%s475 + $0x40] sm:$0xff]
        %v3054 = vld [vmem:[%s475 + $0x48] sm:$0xff]
        %v3055 = vld [vmem:[%s475 + $0x50] sm:$0xff]
        %v3056 = vld [vmem:[%s475 + $0x58] sm:$0xff]
        %v3057 = vld [vmem:[%s475 + $0x60] sm:$0xff]
        %v3058 = vld [vmem:[%s475 + $0x68] sm:$0xff]
        %v3059 = vld [vmem:[%s475 + $0x70] sm:$0xff]
        %v3060 = vld [vmem:[%s475 + $0x78] sm:$0xff]
        %v3061 = vld [vmem:[%s563] sm:$0xff]
        %v3062 = vld [vmem:[%s563 + $0x8] sm:$0xff]
        %v3063 = vld [vmem:[%s563 + $0x10] sm:$0xff]
        %v3064 = vld [vmem:[%s563 + $0x18] sm:$0xff]
        %v3065 = vld [vmem:[%s563 + $0x20] sm:$0xff]
        %v3066 = vld [vmem:[%s563 + $0x28] sm:$0xff]
        %v3067 = vld [vmem:[%s563 + $0x30] sm:$0xff]
        %v3068 = vld [vmem:[%s563 + $0x38] sm:$0xff]
        %v3069 = vld [vmem:[%s563 + $0x40] sm:$0xff]
        %v3070 = vld [vmem:[%s563 + $0x48] sm:$0xff]
        %v3071 = vld [vmem:[%s563 + $0x50] sm:$0xff]
        %v3072 = vld [vmem:[%s563 + $0x58] sm:$0xff]
        %v3073 = vld [vmem:[%s563 + $0x60] sm:$0xff]
        %v3074 = vld [vmem:[%s563 + $0x68] sm:$0xff]
        %v3075 = vld [vmem:[%s563 + $0x70] sm:$0xff]
        %v3076 = vld [vmem:[%s563 + $0x78] sm:$0xff]
        %3078 = vset.pattern.permute.xlu0 0
        %3079 = vperm.xlu0 %3078, %v3061
        %v3080 = vpop.permute.xlu0 %3079
        %3083 = vset.pattern.permute.xlu0 0
        %3084 = vperm.xlu0 %3083, %v3062
        %v3085 = vpop.permute.xlu0 %3084
        %3088 = vset.pattern.permute.xlu0 0
        %3089 = vperm.xlu0 %3088, %v3063
        %v3090 = vpop.permute.xlu0 %3089
        %3093 = vset.pattern.permute.xlu0 0
        %3094 = vperm.xlu0 %3093, %v3064
        %v3095 = vpop.permute.xlu0 %3094
        %3098 = vset.pattern.permute.xlu0 0
        %3099 = vperm.xlu0 %3098, %v3065
        %v3100 = vpop.permute.xlu0 %3099
        %3103 = vset.pattern.permute.xlu0 0
        %3104 = vperm.xlu0 %3103, %v3066
        %v3105 = vpop.permute.xlu0 %3104
        %3108 = vset.pattern.permute.xlu0 0
        %3109 = vperm.xlu0 %3108, %v3067
        %v3110 = vpop.permute.xlu0 %3109
        %3113 = vset.pattern.permute.xlu0 0
        %3114 = vperm.xlu0 %3113, %v3068
        %v3115 = vpop.permute.xlu0 %3114
        %3118 = vset.pattern.permute.xlu0 0
        %3119 = vperm.xlu0 %3118, %v3069
        %v3120 = vpop.permute.xlu0 %3119
        %3123 = vset.pattern.permute.xlu0 0
        %3124 = vperm.xlu0 %3123, %v3070
        %v3125 = vpop.permute.xlu0 %3124
        %3128 = vset.pattern.permute.xlu0 0
        %3129 = vperm.xlu0 %3128, %v3071
        %v3130 = vpop.permute.xlu0 %3129
        %3133 = vset.pattern.permute.xlu0 0
        %3134 = vperm.xlu0 %3133, %v3072
        %v3135 = vpop.permute.xlu0 %3134
        %3138 = vset.pattern.permute.xlu0 0
        %3139 = vperm.xlu0 %3138, %v3073
        %v3140 = vpop.permute.xlu0 %3139
        %3143 = vset.pattern.permute.xlu0 0
        %3144 = vperm.xlu0 %3143, %v3074
        %v3145 = vpop.permute.xlu0 %3144
        %3148 = vset.pattern.permute.xlu0 0
        %3149 = vperm.xlu0 %3148, %v3075
        %v3150 = vpop.permute.xlu0 %3149
        %3153 = vset.pattern.permute.xlu0 0
        %3154 = vperm.xlu0 %3153, %v3076
        %v3155 = vpop.permute.xlu0 %3154
        %v3173 = vunpack.c.l.b16 %v3045
        %v3174 = vunpack.c.h.b16 %v3045
        %v3175 = vunpack.c.l.b16 %v3046
        %v3176 = vunpack.c.h.b16 %v3046
        %v3177 = vunpack.c.l.b16 %v3047
        %v3178 = vunpack.c.h.b16 %v3047
        %v3179 = vunpack.c.l.b16 %v3048
        %v3180 = vunpack.c.h.b16 %v3048
        %v3181 = vunpack.c.l.b16 %v3049
        %v3182 = vunpack.c.h.b16 %v3049
        %v3183 = vunpack.c.l.b16 %v3050
        %v3184 = vunpack.c.h.b16 %v3050
        %v3185 = vunpack.c.l.b16 %v3051
        %v3186 = vunpack.c.h.b16 %v3051
        %v3187 = vunpack.c.l.b16 %v3052
        %v3188 = vunpack.c.h.b16 %v3052
        %v3189 = vunpack.c.l.b16 %v3053
        %v3190 = vunpack.c.h.b16 %v3053
        %v3191 = vunpack.c.l.b16 %v3054
        %v3192 = vunpack.c.h.b16 %v3054
        %v3193 = vunpack.c.l.b16 %v3055
        %v3194 = vunpack.c.h.b16 %v3055
        %v3195 = vunpack.c.l.b16 %v3056
        %v3196 = vunpack.c.h.b16 %v3056
        %v3197 = vunpack.c.l.b16 %v3057
        %v3198 = vunpack.c.h.b16 %v3057
        %v3199 = vunpack.c.l.b16 %v3058
        %v3200 = vunpack.c.h.b16 %v3058
        %v3201 = vunpack.c.l.b16 %v3059
        %v3202 = vunpack.c.h.b16 %v3059
        %v3203 = vunpack.c.l.b16 %v3060
        %v3204 = vunpack.c.h.b16 %v3060
        %v3205 = vpack.c.b16 %v3175, %v3173
        %v3206 = vpack.c.b16 %v3176, %v3174
        %v3207 = vpack.c.b16 %v3179, %v3177
        %v3208 = vpack.c.b16 %v3180, %v3178
        %v3209 = vpack.c.b16 %v3183, %v3181
        %v3210 = vpack.c.b16 %v3184, %v3182
        %v3211 = vpack.c.b16 %v3187, %v3185
        %v3212 = vpack.c.b16 %v3188, %v3186
        %v3213 = vpack.c.b16 %v3191, %v3189
        %v3214 = vpack.c.b16 %v3192, %v3190
        %v3215 = vpack.c.b16 %v3195, %v3193
        %v3216 = vpack.c.b16 %v3196, %v3194
        %v3217 = vpack.c.b16 %v3199, %v3197
        %v3218 = vpack.c.b16 %v3200, %v3198
        %v3219 = vpack.c.b16 %v3203, %v3201
        %v3220 = vpack.c.b16 %v3204, %v3202
        %3237 = vmatprep.subr.bf16.mxu0 %v3014
        %3238 = vmatpush1.bf16.xpose.msra.mxu0 %v3013
        %3239 = vmatprep.subr.bf16.mxu0 %v3016
        %3240 = vmatpush1.bf16.xpose.msra.mxu0 %v3015
        %3241 = vmatprep.subr.bf16.mxu0 %v3018
        %3242 = vmatpush1.bf16.xpose.msra.mxu0 %v3017
        %3243 = vmatprep.subr.bf16.mxu0 %v3020
        %3244 = vmatpush1.bf16.xpose.msra.mxu0 %v3019
        %3245 = vmatprep.subr.bf16.mxu0 %v3022
        %3246 = vmatpush1.bf16.xpose.msra.mxu0 %v3021
        %3247 = vmatprep.subr.bf16.mxu0 %v3024
        %3248 = vmatpush1.bf16.xpose.msra.mxu0 %v3023
        %3249 = vmatprep.subr.bf16.mxu0 %v3026
        %3250 = vmatpush1.bf16.xpose.msra.mxu0 %v3025
        %3251 = vmatprep.subr.bf16.mxu0 %v3028
        %3252 = vmatpush1.bf16.xpose.msra.mxu0 %v3027
        %3253 = vmatprep.subr.bf16.mxu0 %v3030
        %3254 = vmatpush1.bf16.xpose.msra.mxu0 %v3029
        %3255 = vmatprep.subr.bf16.mxu0 %v3032
        %3256 = vmatpush1.bf16.xpose.msra.mxu0 %v3031
        %3257 = vmatprep.subr.bf16.mxu0 %v3034
        %3258 = vmatpush1.bf16.xpose.msra.mxu0 %v3033
        %3259 = vmatprep.subr.bf16.mxu0 %v3036
        %3260 = vmatpush1.bf16.xpose.msra.mxu0 %v3035
        %3261 = vmatprep.subr.bf16.mxu0 %v3038
        %3262 = vmatpush1.bf16.xpose.msra.mxu0 %v3037
        %3263 = vmatprep.subr.bf16.mxu0 %v3040
        %3264 = vmatpush1.bf16.xpose.msra.mxu0 %v3039
        %3265 = vmatprep.subr.bf16.mxu0 %v3042
        %3266 = vmatpush1.bf16.xpose.msra.mxu0 %v3041
        %3267 = vmatprep.subr.bf16.mxu0 %v3044
        %3268 = vmatpush1.bf16.xpose.msra.mxu0 %v3043
        %3269 = vmatprep.mubr.bf16.mxu0 %v3206
        %3270 = vmatmul.mubr.bf16.gmra.mrb[0].mxu0 %v3205
        %v3271 = vpop.f32.mrb[0].mxu0
        %v3272 = vadd.f32 %v3080, %v3271
        %v3273 = vpop.f32.mrb[0].mxu0
        %v3274 = vadd.f32 %v3080, %v3273
        %v3275 = vpop.f32.mrb[0].mxu0
        %v3276 = vadd.f32 %v3085, %v3275
        %v3277 = vpop.f32.mrb[0].mxu0
        %v3278 = vadd.f32 %v3085, %v3277
        %3279 = vmatprep.mubr.bf16.mxu0 %v3208
        %3280 = vmatmul.mubr.bf16.gmra.mrb[0].mxu0 %v3207
        %v3281 = vpop.f32.mrb[0].mxu0
        %v3282 = vadd.f32 %v3090, %v3281
        %v3283 = vpop.f32.mrb[0].mxu0
        %v3284 = vadd.f32 %v3090, %v3283
        %v3285 = vpop.f32.mrb[0].mxu0
        %v3286 = vadd.f32 %v3095, %v3285
        %v3287 = vpop.f32.mrb[0].mxu0
        %v3288 = vadd.f32 %v3095, %v3287
        %3289 = vmatprep.mubr.bf16.mxu0 %v3210
        %3290 = vmatmul.mubr.bf16.gmra.mrb[0].mxu0 %v3209
        %v3291 = vpop.f32.mrb[0].mxu0
        %v3292 = vadd.f32 %v3100, %v3291
        %v3293 = vpop.f32.mrb[0].mxu0
        %v3294 = vadd.f32 %v3100, %v3293
        %v3295 = vpop.f32.mrb[0].mxu0
        %v3296 = vadd.f32 %v3105, %v3295
        %v3297 = vpop.f32.mrb[0].mxu0
        %v3298 = vadd.f32 %v3105, %v3297
        %3299 = vmatprep.mubr.bf16.mxu0 %v3212
        %3300 = vmatmul.mubr.bf16.gmra.mrb[0].mxu0 %v3211
        %v3301 = vpop.f32.mrb[0].mxu0
        %v3302 = vadd.f32 %v3110, %v3301
        %v3303 = vpop.f32.mrb[0].mxu0
        %v3304 = vadd.f32 %v3110, %v3303
        %v3305 = vpop.f32.mrb[0].mxu0
        %v3306 = vadd.f32 %v3115, %v3305
        %v3307 = vpop.f32.mrb[0].mxu0
        %v3308 = vadd.f32 %v3115, %v3307
        %3309 = vmatprep.mubr.bf16.mxu0 %v3214
        %3310 = vmatmul.mubr.bf16.gmra.mrb[0].mxu0 %v3213
        %v3311 = vpop.f32.mrb[0].mxu0
        %v3312 = vadd.f32 %v3120, %v3311
        %v3313 = vpop.f32.mrb[0].mxu0
        %v3314 = vadd.f32 %v3120, %v3313
        %v3315 = vpop.f32.mrb[0].mxu0
        %v3316 = vadd.f32 %v3125, %v3315
        %v3317 = vpop.f32.mrb[0].mxu0
        %v3318 = vadd.f32 %v3125, %v3317
        %3319 = vmatprep.mubr.bf16.mxu0 %v3216
        %3320 = vmatmul.mubr.bf16.gmra.mrb[0].mxu0 %v3215
        %v3321 = vpop.f32.mrb[0].mxu0
        %v3322 = vadd.f32 %v3130, %v3321
        %v3323 = vpop.f32.mrb[0].mxu0
        %v3324 = vadd.f32 %v3130, %v3323
        %v3325 = vpop.f32.mrb[0].mxu0
        %v3326 = vadd.f32 %v3135, %v3325
        %v3327 = vpop.f32.mrb[0].mxu0
        %v3328 = vadd.f32 %v3135, %v3327
        %3329 = vmatprep.mubr.bf16.mxu0 %v3218
        %3330 = vmatmul.mubr.bf16.gmra.mrb[0].mxu0 %v3217
        %v3331 = vpop.f32.mrb[0].mxu0
        %v3332 = vadd.f32 %v3140, %v3331
        %v3333 = vpop.f32.mrb[0].mxu0
        %v3334 = vadd.f32 %v3140, %v3333
        %v3335 = vpop.f32.mrb[0].mxu0
        %v3336 = vadd.f32 %v3145, %v3335
        %v3337 = vpop.f32.mrb[0].mxu0
        %v3338 = vadd.f32 %v3145, %v3337
        %3339 = vmatprep.mubr.bf16.mxu0 %v3220
        %3340 = vmatmul.mubr.bf16.gmra.mrb[0].mxu0 %v3219
        %v3341 = vpop.f32.mrb[0].mxu0
        %v3342 = vadd.f32 %v3150, %v3341
        %v3343 = vpop.f32.mrb[0].mxu0
        %v3344 = vadd.f32 %v3150, %v3343
        %v3345 = vpop.f32.mrb[0].mxu0
        %v3346 = vadd.f32 %v3155, %v3345
        %v3347 = vpop.f32.mrb[0].mxu0
        %v3348 = vadd.f32 %v3155, %v3347
        %3349 = vdwg.mxu0
        %vm3350 = vcmp.eq.bf16.partialorder %v746, 0
        %v3351 = vsel %vm3350, 65537, 0
        %v3352 = vunpack.c.l.b16 %v3351
        %vm3353 = vcmp.ne.s32.totalorder %v3352, 0
        %v3354 = vsel %vm3353, 1, 0
        %v3355 = vlaneseq
        %v3356 = vshrl.u32 %v3355, 7
        %v3357 = vsub.s32 0, %v3356
        %v3358 = vrot.slane %v3354, %v3357
        %v3359 = vlaneseq
        %v3360 = vshrl.u32 %v3359, 7
        %v3361 = vsub.s32 2, %v3360
        %v3362 = vrot.slane %v3354, %v3361
        %vm3363 = vcmp.ne.s32.totalorder %v3358, 0
        %vm3364 = vcmp.ne.s32.totalorder %v3362, 0
        %v3365 = vsel %vm3363, 1, 0
        %v3366 = vsel %vm3364, 1, 0
        %v3367 = vlaneseq
        %v3368 = vshrl.u32 %v3367, 7
        %v3369 = vsub.s32 0, %v3368
        %v3370 = vrot.slane %v3365, %v3369
        %v3371 = vlaneseq
        %v3372 = vshrl.u32 %v3371, 7
        %v3373 = vsub.s32 0, %v3372
        %v3374 = vrot.slane %v3366, %v3373
        %vm3375 = vcmp.eq.s32.totalorder %v3370, 1
        %vm3376 = vcmp.eq.s32.totalorder %v3374, 1
        %v3377 = vsel %vm3375, 1e-09, %v3272
        %v3378 = vsel %vm3376, 1e-09, %v3274
        %v3379 = vsel %vm3375, 1e-09, %v3276
        %v3380 = vsel %vm3376, 1e-09, %v3278
        %v3381 = vsel %vm3375, 1e-09, %v3282
        %v3382 = vsel %vm3376, 1e-09, %v3284
        %v3383 = vsel %vm3375, 1e-09, %v3286
        %v3384 = vsel %vm3376, 1e-09, %v3288
        %v3385 = vsel %vm3375, 1e-09, %v3292
        %v3386 = vsel %vm3376, 1e-09, %v3294
        %v3387 = vsel %vm3375, 1e-09, %v3296
        %v3388 = vsel %vm3376, 1e-09, %v3298
        %v3389 = vsel %vm3375, 1e-09, %v3302
        %v3390 = vsel %vm3376, 1e-09, %v3304
        %v3391 = vsel %vm3375, 1e-09, %v3306
        %v3392 = vsel %vm3376, 1e-09, %v3308
        %v3393 = vsel %vm3375, 1e-09, %v3312
        %v3394 = vsel %vm3376, 1e-09, %v3314
        %v3395 = vsel %vm3375, 1e-09, %v3316
        %v3396 = vsel %vm3376, 1e-09, %v3318
        %v3397 = vsel %vm3375, 1e-09, %v3322
        %v3398 = vsel %vm3376, 1e-09, %v3324
        %v3399 = vsel %vm3375, 1e-09, %v3326
        %v3400 = vsel %vm3376, 1e-09, %v3328
        %v3401 = vsel %vm3375, 1e-09, %v3332
        %v3402 = vsel %vm3376, 1e-09, %v3334
        %v3403 = vsel %vm3375, 1e-09, %v3336
        %v3404 = vsel %vm3376, 1e-09, %v3338
        %v3405 = vsel %vm3375, 1e-09, %v3342
        %v3406 = vsel %vm3376, 1e-09, %v3344
        %v3407 = vsel %vm3375, 1e-09, %v3346
        %v3408 = vsel %vm3376, 1e-09, %v3348
        %v3409 = vlaneseq
        %v3410 = vand.u32 %v3409, 127
        %v3411 = vadd.s32 %v3410, 128
        %v3412 = vstv %s576
        %vm3413 = vcmp.ge.s32.totalorder %v3410, %v3412
        %vm3414 = vcmp.ge.s32.totalorder %v3411, %v3412
        %v3415 = vsel %vm3413, 1, 0
        %v3416 = vsel %vm3414, 1, 0
        %vm3417 = vcmp.eq.s32.totalorder %v3415, 1
        %vm3418 = vcmp.eq.s32.totalorder %v3416, 1
        %v3419 = vsel %vm3417, -1e+30, %v3377
        %v3420 = vsel %vm3418, -1e+30, %v3378
        %v3421 = vsel %vm3417, -1e+30, %v3379
        %v3422 = vsel %vm3418, -1e+30, %v3380
        %v3423 = vsel %vm3417, -1e+30, %v3381
        %v3424 = vsel %vm3418, -1e+30, %v3382
        %v3425 = vsel %vm3417, -1e+30, %v3383
        %v3426 = vsel %vm3418, -1e+30, %v3384
        %v3427 = vsel %vm3417, -1e+30, %v3385
        %v3428 = vsel %vm3418, -1e+30, %v3386
        %v3429 = vsel %vm3417, -1e+30, %v3387
        %v3430 = vsel %vm3418, -1e+30, %v3388
        %v3431 = vsel %vm3417, -1e+30, %v3389
        %v3432 = vsel %vm3418, -1e+30, %v3390
        %v3433 = vsel %vm3417, -1e+30, %v3391
        %v3434 = vsel %vm3418, -1e+30, %v3392
        %v3435 = vsel %vm3417, -1e+30, %v3393
        %v3436 = vsel %vm3418, -1e+30, %v3394
        %v3437 = vsel %vm3417, -1e+30, %v3395
        %v3438 = vsel %vm3418, -1e+30, %v3396
        %v3439 = vsel %vm3417, -1e+30, %v3397
        %v3440 = vsel %vm3418, -1e+30, %v3398
        %v3441 = vsel %vm3417, -1e+30, %v3399
        %v3442 = vsel %vm3418, -1e+30, %v3400
        %v3443 = vsel %vm3417, -1e+30, %v3401
        %v3444 = vsel %vm3418, -1e+30, %v3402
        %v3445 = vsel %vm3417, -1e+30, %v3403
        %v3446 = vsel %vm3418, -1e+30, %v3404
        %v3447 = vsel %vm3417, -1e+30, %v3405
        %v3448 = vsel %vm3418, -1e+30, %v3406
        %v3449 = vsel %vm3417, -1e+30, %v3407
        %v3450 = vsel %vm3418, -1e+30, %v3408
        %v3451 = vld [vmem:[#allocation2] sm:$0xff]
        %v3452 = vld [vmem:[#allocation2 + $0x8] sm:$0xff]
        %v3453 = vld [vmem:[#allocation2 + $0x10] sm:$0xff]
        %v3454 = vld [vmem:[#allocation2 + $0x18] sm:$0xff]
        %v3455 = vld [vmem:[#allocation2 + $0x20] sm:$0xff]
        %v3456 = vld [vmem:[#allocation2 + $0x28] sm:$0xff]
        %v3457 = vld [vmem:[#allocation2 + $0x30] sm:$0xff]
        %v3458 = vld [vmem:[#allocation2 + $0x38] sm:$0xff]
        %v3459 = vld [vmem:[#allocation2 + $0x40] sm:$0xff]
        %v3460 = vld [vmem:[#allocation2 + $0x48] sm:$0xff]
        %v3461 = vld [vmem:[#allocation2 + $0x50] sm:$0xff]
        %v3462 = vld [vmem:[#allocation2 + $0x58] sm:$0xff]
        %v3463 = vld [vmem:[#allocation2 + $0x60] sm:$0xff]
        %v3464 = vld [vmem:[#allocation2 + $0x68] sm:$0xff]
        %v3465 = vld [vmem:[#allocation2 + $0x70] sm:$0xff]
        %v3466 = vld [vmem:[#allocation2 + $0x78] sm:$0xff]
        %v3467 = vmax.f32 %v3419, %v3420
        %3468 = vmax.xlane.f32.xlu0 %v3467
        %v3469 = vpop.xlane.xlu0 %3468
        %v3470 = vmax.f32 %v3421, %v3422
        %3471 = vmax.xlane.f32.xlu0 %v3470
        %v3472 = vpop.xlane.xlu0 %3471
        %v3473 = vmax.f32 %v3423, %v3424
        %3474 = vmax.xlane.f32.xlu0 %v3473
        %v3475 = vpop.xlane.xlu0 %3474
        %v3476 = vmax.f32 %v3425, %v3426
        %3477 = vmax.xlane.f32.xlu0 %v3476
        %v3478 = vpop.xlane.xlu0 %3477
        %v3479 = vmax.f32 %v3427, %v3428
        %3480 = vmax.xlane.f32.xlu0 %v3479
        %v3481 = vpop.xlane.xlu0 %3480
        %v3482 = vmax.f32 %v3429, %v3430
        %3483 = vmax.xlane.f32.xlu0 %v3482
        %v3484 = vpop.xlane.xlu0 %3483
        %v3485 = vmax.f32 %v3431, %v3432
        %3486 = vmax.xlane.f32.xlu0 %v3485
        %v3487 = vpop.xlane.xlu0 %3486
        %v3488 = vmax.f32 %v3433, %v3434
        %3489 = vmax.xlane.f32.xlu0 %v3488
        %v3490 = vpop.xlane.xlu0 %3489
        %v3491 = vmax.f32 %v3435, %v3436
        %3492 = vmax.xlane.f32.xlu0 %v3491
        %v3493 = vpop.xlane.xlu0 %3492
        %v3494 = vmax.f32 %v3437, %v3438
        %3495 = vmax.xlane.f32.xlu0 %v3494
        %v3496 = vpop.xlane.xlu0 %3495
        %v3497 = vmax.f32 %v3439, %v3440
        %3498 = vmax.xlane.f32.xlu0 %v3497
        %v3499 = vpop.xlane.xlu0 %3498
        %v3500 = vmax.f32 %v3441, %v3442
        %3501 = vmax.xlane.f32.xlu0 %v3500
        %v3502 = vpop.xlane.xlu0 %3501
        %v3503 = vmax.f32 %v3443, %v3444
        %3504 = vmax.xlane.f32.xlu0 %v3503
        %v3505 = vpop.xlane.xlu0 %3504
        %v3506 = vmax.f32 %v3445, %v3446
        %3507 = vmax.xlane.f32.xlu0 %v3506
        %v3508 = vpop.xlane.xlu0 %3507
        %v3509 = vmax.f32 %v3447, %v3448
        %3510 = vmax.xlane.f32.xlu0 %v3509
        %v3511 = vpop.xlane.xlu0 %3510
        %v3512 = vmax.f32 %v3449, %v3450
        %3513 = vmax.xlane.f32.xlu0 %v3512
        %v3514 = vpop.xlane.xlu0 %3513
        %v3515 = vmax.f32 %v3451, %v3469
        %v3516 = vmax.f32 %v3452, %v3472
        %v3517 = vmax.f32 %v3453, %v3475
        %v3518 = vmax.f32 %v3454, %v3478
        %v3519 = vmax.f32 %v3455, %v3481
        %v3520 = vmax.f32 %v3456, %v3484
        %v3521 = vmax.f32 %v3457, %v3487
        %v3522 = vmax.f32 %v3458, %v3490
        %v3523 = vmax.f32 %v3459, %v3493
        %v3524 = vmax.f32 %v3460, %v3496
        %v3525 = vmax.f32 %v3461, %v3499
        %v3526 = vmax.f32 %v3462, %v3502
        %v3527 = vmax.f32 %v3463, %v3505
        %v3528 = vmax.f32 %v3464, %v3508
        %v3529 = vmax.f32 %v3465, %v3511
        %v3530 = vmax.f32 %v3466, %v3514
        %3532 = vset.pattern.permute.xlu0 0
        %3533 = vperm.xlu0 %3532, %v3515
        %v3534 = vpop.permute.xlu0 %3533
        %3537 = vset.pattern.permute.xlu0 0
        %3538 = vperm.xlu0 %3537, %v3516
        %v3539 = vpop.permute.xlu0 %3538
        %3542 = vset.pattern.permute.xlu0 0
        %3543 = vperm.xlu0 %3542, %v3517
        %v3544 = vpop.permute.xlu0 %3543
        %3547 = vset.pattern.permute.xlu0 0
        %3548 = vperm.xlu0 %3547, %v3518
        %v3549 = vpop.permute.xlu0 %3548
        %3552 = vset.pattern.permute.xlu0 0
        %3553 = vperm.xlu0 %3552, %v3519
        %v3554 = vpop.permute.xlu0 %3553
        %3557 = vset.pattern.permute.xlu0 0
        %3558 = vperm.xlu0 %3557, %v3520
        %v3559 = vpop.permute.xlu0 %3558
        %3562 = vset.pattern.permute.xlu0 0
        %3563 = vperm.xlu0 %3562, %v3521
        %v3564 = vpop.permute.xlu0 %3563
        %3567 = vset.pattern.permute.xlu0 0
        %3568 = vperm.xlu0 %3567, %v3522
        %v3569 = vpop.permute.xlu0 %3568
        %3572 = vset.pattern.permute.xlu0 0
        %3573 = vperm.xlu0 %3572, %v3523
        %v3574 = vpop.permute.xlu0 %3573
        %3577 = vset.pattern.permute.xlu0 0
        %3578 = vperm.xlu0 %3577, %v3524
        %v3579 = vpop.permute.xlu0 %3578
        %3582 = vset.pattern.permute.xlu0 0
        %3583 = vperm.xlu0 %3582, %v3525
        %v3584 = vpop.permute.xlu0 %3583
        %3587 = vset.pattern.permute.xlu0 0
        %3588 = vperm.xlu0 %3587, %v3526
        %v3589 = vpop.permute.xlu0 %3588
        %3592 = vset.pattern.permute.xlu0 0
        %3593 = vperm.xlu0 %3592, %v3527
        %v3594 = vpop.permute.xlu0 %3593
        %3597 = vset.pattern.permute.xlu0 0
        %3598 = vperm.xlu0 %3597, %v3528
        %v3599 = vpop.permute.xlu0 %3598
        %3602 = vset.pattern.permute.xlu0 0
        %3603 = vperm.xlu0 %3602, %v3529
        %v3604 = vpop.permute.xlu0 %3603
        %3607 = vset.pattern.permute.xlu0 0
        %3608 = vperm.xlu0 %3607, %v3530
        %v3609 = vpop.permute.xlu0 %3608
        %v3611 = vsub.f32 %v3419, %v3534
        %v3612 = vsub.f32 %v3420, %v3534
        %v3613 = vsub.f32 %v3421, %v3539
        %v3614 = vsub.f32 %v3422, %v3539
        %v3615 = vsub.f32 %v3423, %v3544
        %v3616 = vsub.f32 %v3424, %v3544
        %v3617 = vsub.f32 %v3425, %v3549
        %v3618 = vsub.f32 %v3426, %v3549
        %v3619 = vsub.f32 %v3427, %v3554
        %v3620 = vsub.f32 %v3428, %v3554
        %v3621 = vsub.f32 %v3429, %v3559
        %v3622 = vsub.f32 %v3430, %v3559
        %v3623 = vsub.f32 %v3431, %v3564
        %v3624 = vsub.f32 %v3432, %v3564
        %v3625 = vsub.f32 %v3433, %v3569
        %v3626 = vsub.f32 %v3434, %v3569
        %v3627 = vsub.f32 %v3435, %v3574
        %v3628 = vsub.f32 %v3436, %v3574
        %v3629 = vsub.f32 %v3437, %v3579
        %v3630 = vsub.f32 %v3438, %v3579
        %v3631 = vsub.f32 %v3439, %v3584
        %v3632 = vsub.f32 %v3440, %v3584
        %v3633 = vsub.f32 %v3441, %v3589
        %v3634 = vsub.f32 %v3442, %v3589
        %v3635 = vsub.f32 %v3443, %v3594
        %v3636 = vsub.f32 %v3444, %v3594
        %v3637 = vsub.f32 %v3445, %v3599
        %v3638 = vsub.f32 %v3446, %v3599
        %v3639 = vsub.f32 %v3447, %v3604
        %v3640 = vsub.f32 %v3448, %v3604
        %v3641 = vsub.f32 %v3449, %v3609
        %v3642 = vsub.f32 %v3450, %v3609
        %v3643 = vmul.f32 %v3611, 1.442695
        %v3644 = vpow.pop %v3643
        %v3645 = vmul.f32 %v3612, 1.442695
        %v3646 = vpow.pop %v3645
        %v3647 = vmul.f32 %v3613, 1.442695
        %v3648 = vpow.pop %v3647
        %v3649 = vmul.f32 %v3614, 1.442695
        %v3650 = vpow.pop %v3649
        %v3651 = vmul.f32 %v3615, 1.442695
        %v3652 = vpow.pop %v3651
        %v3653 = vmul.f32 %v3616, 1.442695
        %v3654 = vpow.pop %v3653
        %v3655 = vmul.f32 %v3617, 1.442695
        %v3656 = vpow.pop %v3655
        %v3657 = vmul.f32 %v3618, 1.442695
        %v3658 = vpow.pop %v3657
        %v3659 = vmul.f32 %v3619, 1.442695
        %v3660 = vpow.pop %v3659
        %v3661 = vmul.f32 %v3620, 1.442695
        %v3662 = vpow.pop %v3661
        %v3663 = vmul.f32 %v3621, 1.442695
        %v3664 = vpow.pop %v3663
        %v3665 = vmul.f32 %v3622, 1.442695
        %v3666 = vpow.pop %v3665
        %v3667 = vmul.f32 %v3623, 1.442695
        %v3668 = vpow.pop %v3667
        %v3669 = vmul.f32 %v3624, 1.442695
        %v3670 = vpow.pop %v3669
        %v3671 = vmul.f32 %v3625, 1.442695
        %v3672 = vpow.pop %v3671
        %v3673 = vmul.f32 %v3626, 1.442695
        %v3674 = vpow.pop %v3673
        %v3675 = vmul.f32 %v3627, 1.442695
        %v3676 = vpow.pop %v3675
        %v3677 = vmul.f32 %v3628, 1.442695
        %v3678 = vpow.pop %v3677
        %v3679 = vmul.f32 %v3629, 1.442695
        %v3680 = vpow.pop %v3679
        %v3681 = vmul.f32 %v3630, 1.442695
        %v3682 = vpow.pop %v3681
        %v3683 = vmul.f32 %v3631, 1.442695
        %v3684 = vpow.pop %v3683
        %v3685 = vmul.f32 %v3632, 1.442695
        %v3686 = vpow.pop %v3685
        %v3687 = vmul.f32 %v3633, 1.442695
        %v3688 = vpow.pop %v3687
        %v3689 = vmul.f32 %v3634, 1.442695
        %v3690 = vpow.pop %v3689
        %v3691 = vmul.f32 %v3635, 1.442695
        %v3692 = vpow.pop %v3691
        %v3693 = vmul.f32 %v3636, 1.442695
        %v3694 = vpow.pop %v3693
        %v3695 = vmul.f32 %v3637, 1.442695
        %v3696 = vpow.pop %v3695
        %v3697 = vmul.f32 %v3638, 1.442695
        %v3698 = vpow.pop %v3697
        %v3699 = vmul.f32 %v3639, 1.442695
        %v3700 = vpow.pop %v3699
        %v3701 = vmul.f32 %v3640, 1.442695
        %v3702 = vpow.pop %v3701
        %v3703 = vmul.f32 %v3641, 1.442695
        %v3704 = vpow.pop %v3703
        %v3705 = vmul.f32 %v3642, 1.442695
        %v3706 = vpow.pop %v3705
        %vm3707 = vcmp.gt.f32.partialorder %v3469, %v3451
        %vm3708 = vcmp.gt.f32.partialorder %v3472, %v3452
        %vm3709 = vcmp.gt.f32.partialorder %v3475, %v3453
        %vm3710 = vcmp.gt.f32.partialorder %v3478, %v3454
        %vm3711 = vcmp.gt.f32.partialorder %v3481, %v3455
        %vm3712 = vcmp.gt.f32.partialorder %v3484, %v3456
        %vm3713 = vcmp.gt.f32.partialorder %v3487, %v3457
        %vm3714 = vcmp.gt.f32.partialorder %v3490, %v3458
        %vm3715 = vcmp.gt.f32.partialorder %v3493, %v3459
        %vm3716 = vcmp.gt.f32.partialorder %v3496, %v3460
        %vm3717 = vcmp.gt.f32.partialorder %v3499, %v3461
        %vm3718 = vcmp.gt.f32.partialorder %v3502, %v3462
        %vm3719 = vcmp.gt.f32.partialorder %v3505, %v3463
        %vm3720 = vcmp.gt.f32.partialorder %v3508, %v3464
        %vm3721 = vcmp.gt.f32.partialorder %v3511, %v3465
        %vm3722 = vcmp.gt.f32.partialorder %v3514, %v3466
        %v3723 = vsel %vm3707, 1.0, 0.0
        %v3724 = vsel %vm3708, 1.0, 0.0
        %v3725 = vsel %vm3709, 1.0, 0.0
        %v3726 = vsel %vm3710, 1.0, 0.0
        %v3727 = vsel %vm3711, 1.0, 0.0
        %v3728 = vsel %vm3712, 1.0, 0.0
        %v3729 = vsel %vm3713, 1.0, 0.0
        %v3730 = vsel %vm3714, 1.0, 0.0
        %v3731 = vsel %vm3715, 1.0, 0.0
        %v3732 = vsel %vm3716, 1.0, 0.0
        %v3733 = vsel %vm3717, 1.0, 0.0
        %v3734 = vsel %vm3718, 1.0, 0.0
        %v3735 = vsel %vm3719, 1.0, 0.0
        %v3736 = vsel %vm3720, 1.0, 0.0
        %v3737 = vsel %vm3721, 1.0, 0.0
        %v3738 = vsel %vm3722, 1.0, 0.0
        %vm3739 = vcmask 7168
        %v3740 = vsel %vm3739, %v3723, 0.0
        %v3741 = vsel %vm3739, %v3724, 0.0
        %v3742 = vadd.f32 %v3740, %v3741
        %v3743 = vsel %vm3739, %v3725, 0.0
        %v3744 = vadd.f32 %v3742, %v3743
        %v3745 = vsel %vm3739, %v3726, 0.0
        %v3746 = vadd.f32 %v3744, %v3745
        %v3747 = vsel %vm3739, %v3727, 0.0
        %v3748 = vadd.f32 %v3746, %v3747
        %v3749 = vsel %vm3739, %v3728, 0.0
        %v3750 = vadd.f32 %v3748, %v3749
        %v3751 = vsel %vm3739, %v3729, 0.0
        %v3752 = vadd.f32 %v3750, %v3751
        %v3753 = vsel %vm3739, %v3730, 0.0
        %v3754 = vadd.f32 %v3752, %v3753
        %v3755 = vsel %vm3739, %v3731, 0.0
        %v3756 = vadd.f32 %v3754, %v3755
        %v3757 = vsel %vm3739, %v3732, 0.0
        %v3758 = vadd.f32 %v3756, %v3757
        %v3759 = vsel %vm3739, %v3733, 0.0
        %v3760 = vadd.f32 %v3758, %v3759
        %v3761 = vsel %vm3739, %v3734, 0.0
        %v3762 = vadd.f32 %v3760, %v3761
        %v3763 = vsel %vm3739, %v3735, 0.0
        %v3764 = vadd.f32 %v3762, %v3763
        %v3765 = vsel %vm3739, %v3736, 0.0
        %v3766 = vadd.f32 %v3764, %v3765
        %v3767 = vsel %vm3739, %v3737, 0.0
        %v3768 = vadd.f32 %v3766, %v3767
        %v3769 = vsel %vm3739, %v3738, 0.0
        %v3770 = vadd.f32 %v3768, %v3769
        %3771 = vadd.xlane.f32.xlu0 %v3770
        %v3772 = vpop.xlane.xlu0 %3771
        %v3773 = vrot.slane %v3772, 4
        %v3774 = vadd.f32 %v3772, %v3773
        %v3775 = vrot.slane %v3774, 2
        %v3776 = vadd.f32 %v3774, %v3775
        %v3777 = vrot.slane %v3776, 1
        %v3778 = vadd.f32 %v3776, %v3777
        %s3779 = vtos %v3778
        %p3780 = scmp.gt.f32.partialorder %s3779, 0.0
        // Predicated region
        $region81: #{tpu_custom_call.1} parent=51 // pred_check
          %p3781 = pneg %p3780
        $region82: #{tpu_custom_call.1} parent=51 // pred_check_branch
          %3783 = sbr.rel (%p3781) target = $region84
        $region83: #{tpu_custom_call.1} parent=51 // pred_region
          %v3784 = vsub.f32 %v3451, %v3515
          %v3785 = vsub.f32 %v3452, %v3516
          %v3786 = vsub.f32 %v3453, %v3517
          %v3787 = vsub.f32 %v3454, %v3518
          %v3788 = vsub.f32 %v3455, %v3519
          %v3789 = vsub.f32 %v3456, %v3520
          %v3790 = vsub.f32 %v3457, %v3521
          %v3791 = vsub.f32 %v3458, %v3522
          %v3792 = vsub.f32 %v3459, %v3523
          %v3793 = vsub.f32 %v3460, %v3524
          %v3794 = vsub.f32 %v3461, %v3525
          %v3795 = vsub.f32 %v3462, %v3526
          %v3796 = vsub.f32 %v3463, %v3527
          %v3797 = vsub.f32 %v3464, %v3528
          %v3798 = vsub.f32 %v3465, %v3529
          %v3799 = vsub.f32 %v3466, %v3530
          %v3800 = vmul.f32 %v3784, 1.442695
          %v3801 = vpow.pop %v3800
          %v3802 = vmul.f32 %v3785, 1.442695
          %v3803 = vpow.pop %v3802
          %v3804 = vmul.f32 %v3786, 1.442695
          %v3805 = vpow.pop %v3804
          %v3806 = vmul.f32 %v3787, 1.442695
          %v3807 = vpow.pop %v3806
          %v3808 = vmul.f32 %v3788, 1.442695
          %v3809 = vpow.pop %v3808
          %v3810 = vmul.f32 %v3789, 1.442695
          %v3811 = vpow.pop %v3810
          %v3812 = vmul.f32 %v3790, 1.442695
          %v3813 = vpow.pop %v3812
          %v3814 = vmul.f32 %v3791, 1.442695
          %v3815 = vpow.pop %v3814
          %v3816 = vmul.f32 %v3792, 1.442695
          %v3817 = vpow.pop %v3816
          %v3818 = vmul.f32 %v3793, 1.442695
          %v3819 = vpow.pop %v3818
          %v3820 = vmul.f32 %v3794, 1.442695
          %v3821 = vpow.pop %v3820
          %v3822 = vmul.f32 %v3795, 1.442695
          %v3823 = vpow.pop %v3822
          %v3824 = vmul.f32 %v3796, 1.442695
          %v3825 = vpow.pop %v3824
          %v3826 = vmul.f32 %v3797, 1.442695
          %v3827 = vpow.pop %v3826
          %v3828 = vmul.f32 %v3798, 1.442695
          %v3829 = vpow.pop %v3828
          %v3830 = vmul.f32 %v3799, 1.442695
          %v3831 = vpow.pop %v3830
          %v3832 = vld [vmem:[#allocation3] sm:$0xff]
          %v3833 = vld [vmem:[#allocation3 + $0x8] sm:$0xff]
          %v3834 = vld [vmem:[#allocation3 + $0x10] sm:$0xff]
          %v3835 = vld [vmem:[#allocation3 + $0x18] sm:$0xff]
          %v3836 = vld [vmem:[#allocation3 + $0x20] sm:$0xff]
          %v3837 = vld [vmem:[#allocation3 + $0x28] sm:$0xff]
          %v3838 = vld [vmem:[#allocation3 + $0x30] sm:$0xff]
          %v3839 = vld [vmem:[#allocation3 + $0x38] sm:$0xff]
          %v3840 = vld [vmem:[#allocation3 + $0x40] sm:$0xff]
          %v3841 = vld [vmem:[#allocation3 + $0x48] sm:$0xff]
          %v3842 = vld [vmem:[#allocation3 + $0x50] sm:$0xff]
          %v3843 = vld [vmem:[#allocation3 + $0x58] sm:$0xff]
          %v3844 = vld [vmem:[#allocation3 + $0x60] sm:$0xff]
          %v3845 = vld [vmem:[#allocation3 + $0x68] sm:$0xff]
          %v3846 = vld [vmem:[#allocation3 + $0x70] sm:$0xff]
          %v3847 = vld [vmem:[#allocation3 + $0x78] sm:$0xff]
          %v3848 = vmul.f32 %v3801, %v3832
          %v3849 = vmul.f32 %v3803, %v3833
          %v3850 = vmul.f32 %v3805, %v3834
          %v3851 = vmul.f32 %v3807, %v3835
          %v3852 = vmul.f32 %v3809, %v3836
          %v3853 = vmul.f32 %v3811, %v3837
          %v3854 = vmul.f32 %v3813, %v3838
          %v3855 = vmul.f32 %v3815, %v3839
          %v3856 = vmul.f32 %v3817, %v3840
          %v3857 = vmul.f32 %v3819, %v3841
          %v3858 = vmul.f32 %v3821, %v3842
          %v3859 = vmul.f32 %v3823, %v3843
          %v3860 = vmul.f32 %v3825, %v3844
          %v3861 = vmul.f32 %v3827, %v3845
          %v3862 = vmul.f32 %v3829, %v3846
          %v3863 = vmul.f32 %v3831, %v3847
          %3864 = vst.msk [vmem:[#allocation3] sm:$0xff] %vm3739, %v3848
          %3865 = vst.msk [vmem:[#allocation3 + $0x8] sm:$0xff] %vm3739, %v3849
          %3866 = vst.msk [vmem:[#allocation3 + $0x10] sm:$0xff] %vm3739, %v3850
          %3867 = vst.msk [vmem:[#allocation3 + $0x18] sm:$0xff] %vm3739, %v3851
          %3868 = vst.msk [vmem:[#allocation3 + $0x20] sm:$0xff] %vm3739, %v3852
          %3869 = vst.msk [vmem:[#allocation3 + $0x28] sm:$0xff] %vm3739, %v3853
          %3870 = vst.msk [vmem:[#allocation3 + $0x30] sm:$0xff] %vm3739, %v3854
          %3871 = vst.msk [vmem:[#allocation3 + $0x38] sm:$0xff] %vm3739, %v3855
          %3872 = vst.msk [vmem:[#allocation3 + $0x40] sm:$0xff] %vm3739, %v3856
          %3873 = vst.msk [vmem:[#allocation3 + $0x48] sm:$0xff] %vm3739, %v3857
          %3874 = vst.msk [vmem:[#allocation3 + $0x50] sm:$0xff] %vm3739, %v3858
          %3875 = vst.msk [vmem:[#allocation3 + $0x58] sm:$0xff] %vm3739, %v3859
          %3876 = vst.msk [vmem:[#allocation3 + $0x60] sm:$0xff] %vm3739, %v3860
          %3877 = vst.msk [vmem:[#allocation3 + $0x68] sm:$0xff] %vm3739, %v3861
          %3878 = vst.msk [vmem:[#allocation3 + $0x70] sm:$0xff] %vm3739, %v3862
          %3879 = vst.msk [vmem:[#allocation3 + $0x78] sm:$0xff] %vm3739, %v3863
          %v3880 = vld [vmem:[#allocation4] sm:$0xff]
          %v3881 = vld [vmem:[#allocation4 + $0x8] sm:$0xff]
          %v3882 = vld [vmem:[#allocation4 + $0x10] sm:$0xff]
          %v3883 = vld [vmem:[#allocation4 + $0x18] sm:$0xff]
          %v3884 = vld [vmem:[#allocation4 + $0x20] sm:$0xff]
          %v3885 = vld [vmem:[#allocation4 + $0x28] sm:$0xff]
          %v3886 = vld [vmem:[#allocation4 + $0x30] sm:$0xff]
          %v3887 = vld [vmem:[#allocation4 + $0x38] sm:$0xff]
          %v3888 = vld [vmem:[#allocation4 + $0x40] sm:$0xff]
          %v3889 = vld [vmem:[#allocation4 + $0x48] sm:$0xff]
          %v3890 = vld [vmem:[#allocation4 + $0x50] sm:$0xff]
          %v3891 = vld [vmem:[#allocation4 + $0x58] sm:$0xff]
          %v3892 = vld [vmem:[#allocation4 + $0x60] sm:$0xff]
          %v3893 = vld [vmem:[#allocation4 + $0x68] sm:$0xff]
          %v3894 = vld [vmem:[#allocation4 + $0x70] sm:$0xff]
          %v3895 = vld [vmem:[#allocation4 + $0x78] sm:$0xff]
          %v3896 = vld [vmem:[#allocation4 + $0x80] sm:$0xff]
          %v3897 = vld [vmem:[#allocation4 + $0x88] sm:$0xff]
          %v3898 = vld [vmem:[#allocation4 + $0x90] sm:$0xff]
          %v3899 = vld [vmem:[#allocation4 + $0x98] sm:$0xff]
          %v3900 = vld [vmem:[#allocation4 + $0xa0] sm:$0xff]
          %v3901 = vld [vmem:[#allocation4 + $0xa8] sm:$0xff]
          %v3902 = vld [vmem:[#allocation4 + $0xb0] sm:$0xff]
          %v3903 = vld [vmem:[#allocation4 + $0xb8] sm:$0xff]
          %v3904 = vld [vmem:[#allocation4 + $0xc0] sm:$0xff]
          %v3905 = vld [vmem:[#allocation4 + $0xc8] sm:$0xff]
          %v3906 = vld [vmem:[#allocation4 + $0xd0] sm:$0xff]
          %v3907 = vld [vmem:[#allocation4 + $0xd8] sm:$0xff]
          %v3908 = vld [vmem:[#allocation4 + $0xe0] sm:$0xff]
          %v3909 = vld [vmem:[#allocation4 + $0xe8] sm:$0xff]
          %v3910 = vld [vmem:[#allocation4 + $0xf0] sm:$0xff]
          %v3911 = vld [vmem:[#allocation4 + $0xf8] sm:$0xff]
          %v3912 = vld [vmem:[#allocation4 + $0x100] sm:$0xff]
          %v3913 = vld [vmem:[#allocation4 + $0x108] sm:$0xff]
          %v3914 = vld [vmem:[#allocation4 + $0x110] sm:$0xff]
          %v3915 = vld [vmem:[#allocation4 + $0x118] sm:$0xff]
          %v3916 = vld [vmem:[#allocation4 + $0x120] sm:$0xff]
          %v3917 = vld [vmem:[#allocation4 + $0x128] sm:$0xff]
          %v3918 = vld [vmem:[#allocation4 + $0x130] sm:$0xff]
          %v3919 = vld [vmem:[#allocation4 + $0x138] sm:$0xff]
          %v3920 = vld [vmem:[#allocation4 + $0x140] sm:$0xff]
          %v3921 = vld [vmem:[#allocation4 + $0x148] sm:$0xff]
          %v3922 = vld [vmem:[#allocation4 + $0x150] sm:$0xff]
          %v3923 = vld [vmem:[#allocation4 + $0x158] sm:$0xff]
          %v3924 = vld [vmem:[#allocation4 + $0x160] sm:$0xff]
          %v3925 = vld [vmem:[#allocation4 + $0x168] sm:$0xff]
          %v3926 = vld [vmem:[#allocation4 + $0x170] sm:$0xff]
          %v3927 = vld [vmem:[#allocation4 + $0x178] sm:$0xff]
          %v3928 = vld [vmem:[#allocation4 + $0x180] sm:$0xff]
          %v3929 = vld [vmem:[#allocation4 + $0x188] sm:$0xff]
          %v3930 = vld [vmem:[#allocation4 + $0x190] sm:$0xff]
          %v3931 = vld [vmem:[#allocation4 + $0x198] sm:$0xff]
          %v3932 = vld [vmem:[#allocation4 + $0x1a0] sm:$0xff]
          %v3933 = vld [vmem:[#allocation4 + $0x1a8] sm:$0xff]
          %v3934 = vld [vmem:[#allocation4 + $0x1b0] sm:$0xff]
          %v3935 = vld [vmem:[#allocation4 + $0x1b8] sm:$0xff]
          %v3936 = vld [vmem:[#allocation4 + $0x1c0] sm:$0xff]
          %v3937 = vld [vmem:[#allocation4 + $0x1c8] sm:$0xff]
          %v3938 = vld [vmem:[#allocation4 + $0x1d0] sm:$0xff]
          %v3939 = vld [vmem:[#allocation4 + $0x1d8] sm:$0xff]
          %v3940 = vld [vmem:[#allocation4 + $0x1e0] sm:$0xff]
          %v3941 = vld [vmem:[#allocation4 + $0x1e8] sm:$0xff]
          %v3942 = vld [vmem:[#allocation4 + $0x1f0] sm:$0xff]
          %v3943 = vld [vmem:[#allocation4 + $0x1f8] sm:$0xff]
          %3945 = vset.pattern.permute.xlu0 0
          %3946 = vperm.xlu0 %3945, %v3801
          %v3947 = vpop.permute.xlu0 %3946
          %3950 = vset.pattern.permute.xlu0 0
          %3951 = vperm.xlu0 %3950, %v3803
          %v3952 = vpop.permute.xlu0 %3951
          %3955 = vset.pattern.permute.xlu0 0
          %3956 = vperm.xlu0 %3955, %v3805
          %v3957 = vpop.permute.xlu0 %3956
          %3960 = vset.pattern.permute.xlu0 0
          %3961 = vperm.xlu0 %3960, %v3807
          %v3962 = vpop.permute.xlu0 %3961
          %3965 = vset.pattern.permute.xlu0 0
          %3966 = vperm.xlu0 %3965, %v3809
          %v3967 = vpop.permute.xlu0 %3966
          %3970 = vset.pattern.permute.xlu0 0
          %3971 = vperm.xlu0 %3970, %v3811
          %v3972 = vpop.permute.xlu0 %3971
          %3975 = vset.pattern.permute.xlu0 0
          %3976 = vperm.xlu0 %3975, %v3813
          %v3977 = vpop.permute.xlu0 %3976
          %3980 = vset.pattern.permute.xlu0 0
          %3981 = vperm.xlu0 %3980, %v3815
          %v3982 = vpop.permute.xlu0 %3981
          %3985 = vset.pattern.permute.xlu0 0
          %3986 = vperm.xlu0 %3985, %v3817
          %v3987 = vpop.permute.xlu0 %3986
          %3990 = vset.pattern.permute.xlu0 0
          %3991 = vperm.xlu0 %3990, %v3819
          %v3992 = vpop.permute.xlu0 %3991
          %3995 = vset.pattern.permute.xlu0 0
          %3996 = vperm.xlu0 %3995, %v3821
          %v3997 = vpop.permute.xlu0 %3996
          %4000 = vset.pattern.permute.xlu0 0
          %4001 = vperm.xlu0 %4000, %v3823
          %v4002 = vpop.permute.xlu0 %4001
          %4005 = vset.pattern.permute.xlu0 0
          %4006 = vperm.xlu0 %4005, %v3825
          %v4007 = vpop.permute.xlu0 %4006
          %4010 = vset.pattern.permute.xlu0 0
          %4011 = vperm.xlu0 %4010, %v3827
          %v4012 = vpop.permute.xlu0 %4011
          %4015 = vset.pattern.permute.xlu0 0
          %4016 = vperm.xlu0 %4015, %v3829
          %v4017 = vpop.permute.xlu0 %4016
          %4020 = vset.pattern.permute.xlu0 0
          %4021 = vperm.xlu0 %4020, %v3831
          %v4022 = vpop.permute.xlu0 %4021
          %v4024 = vmul.f32 %v3947, %v3880
          %v4025 = vmul.f32 %v3947, %v3881
          %v4026 = vmul.f32 %v3947, %v3882
          %v4027 = vmul.f32 %v3947, %v3883
          %v4028 = vmul.f32 %v3952, %v3884
          %v4029 = vmul.f32 %v3952, %v3885
          %v4030 = vmul.f32 %v3952, %v3886
          %v4031 = vmul.f32 %v3952, %v3887
          %v4032 = vmul.f32 %v3957, %v3888
          %v4033 = vmul.f32 %v3957, %v3889
          %v4034 = vmul.f32 %v3957, %v3890
          %v4035 = vmul.f32 %v3957, %v3891
          %v4036 = vmul.f32 %v3962, %v3892
          %v4037 = vmul.f32 %v3962, %v3893
          %v4038 = vmul.f32 %v3962, %v3894
          %v4039 = vmul.f32 %v3962, %v3895
          %v4040 = vmul.f32 %v3967, %v3896
          %v4041 = vmul.f32 %v3967, %v3897
          %v4042 = vmul.f32 %v3967, %v3898
          %v4043 = vmul.f32 %v3967, %v3899
          %v4044 = vmul.f32 %v3972, %v3900
          %v4045 = vmul.f32 %v3972, %v3901
          %v4046 = vmul.f32 %v3972, %v3902
          %v4047 = vmul.f32 %v3972, %v3903
          %v4048 = vmul.f32 %v3977, %v3904
          %v4049 = vmul.f32 %v3977, %v3905
          %v4050 = vmul.f32 %v3977, %v3906
          %v4051 = vmul.f32 %v3977, %v3907
          %v4052 = vmul.f32 %v3982, %v3908
          %v4053 = vmul.f32 %v3982, %v3909
          %v4054 = vmul.f32 %v3982, %v3910
          %v4055 = vmul.f32 %v3982, %v3911
          %v4056 = vmul.f32 %v3987, %v3912
          %v4057 = vmul.f32 %v3987, %v3913
          %v4058 = vmul.f32 %v3987, %v3914
          %v4059 = vmul.f32 %v3987, %v3915
          %v4060 = vmul.f32 %v3992, %v3916
          %v4061 = vmul.f32 %v3992, %v3917
          %v4062 = vmul.f32 %v3992, %v3918
          %v4063 = vmul.f32 %v3992, %v3919
          %v4064 = vmul.f32 %v3997, %v3920
          %v4065 = vmul.f32 %v3997, %v3921
          %v4066 = vmul.f32 %v3997, %v3922
          %v4067 = vmul.f32 %v3997, %v3923
          %v4068 = vmul.f32 %v4002, %v3924
          %v4069 = vmul.f32 %v4002, %v3925
          %v4070 = vmul.f32 %v4002, %v3926
          %v4071 = vmul.f32 %v4002, %v3927
          %v4072 = vmul.f32 %v4007, %v3928
          %v4073 = vmul.f32 %v4007, %v3929
          %v4074 = vmul.f32 %v4007, %v3930
          %v4075 = vmul.f32 %v4007, %v3931
          %v4076 = vmul.f32 %v4012, %v3932
          %v4077 = vmul.f32 %v4012, %v3933
          %v4078 = vmul.f32 %v4012, %v3934
          %v4079 = vmul.f32 %v4012, %v3935
          %v4080 = vmul.f32 %v4017, %v3936
          %v4081 = vmul.f32 %v4017, %v3937
          %v4082 = vmul.f32 %v4017, %v3938
          %v4083 = vmul.f32 %v4017, %v3939
          %v4084 = vmul.f32 %v4022, %v3940
          %v4085 = vmul.f32 %v4022, %v3941
          %v4086 = vmul.f32 %v4022, %v3942
          %v4087 = vmul.f32 %v4022, %v3943
          %4088 = vst [vmem:[#allocation4] sm:$0xff] %v4024
          %4089 = vst [vmem:[#allocation4 + $0x8] sm:$0xff] %v4025
          %4090 = vst [vmem:[#allocation4 + $0x10] sm:$0xff] %v4026
          %4091 = vst [vmem:[#allocation4 + $0x18] sm:$0xff] %v4027
          %4092 = vst [vmem:[#allocation4 + $0x20] sm:$0xff] %v4028
          %4093 = vst [vmem:[#allocation4 + $0x28] sm:$0xff] %v4029
          %4094 = vst [vmem:[#allocation4 + $0x30] sm:$0xff] %v4030
          %4095 = vst [vmem:[#allocation4 + $0x38] sm:$0xff] %v4031
          %4096 = vst [vmem:[#allocation4 + $0x40] sm:$0xff] %v4032
          %4097 = vst [vmem:[#allocation4 + $0x48] sm:$0xff] %v4033
          %4098 = vst [vmem:[#allocation4 + $0x50] sm:$0xff] %v4034
          %4099 = vst [vmem:[#allocation4 + $0x58] sm:$0xff] %v4035
          %4100 = vst [vmem:[#allocation4 + $0x60] sm:$0xff] %v4036
          %4101 = vst [vmem:[#allocation4 + $0x68] sm:$0xff] %v4037
          %4102 = vst [vmem:[#allocation4 + $0x70] sm:$0xff] %v4038
          %4103 = vst [vmem:[#allocation4 + $0x78] sm:$0xff] %v4039
          %4104 = vst [vmem:[#allocation4 + $0x80] sm:$0xff] %v4040
          %4105 = vst [vmem:[#allocation4 + $0x88] sm:$0xff] %v4041
          %4106 = vst [vmem:[#allocation4 + $0x90] sm:$0xff] %v4042
          %4107 = vst [vmem:[#allocation4 + $0x98] sm:$0xff] %v4043
          %4108 = vst [vmem:[#allocation4 + $0xa0] sm:$0xff] %v4044
          %4109 = vst [vmem:[#allocation4 + $0xa8] sm:$0xff] %v4045
          %4110 = vst [vmem:[#allocation4 + $0xb0] sm:$0xff] %v4046
          %4111 = vst [vmem:[#allocation4 + $0xb8] sm:$0xff] %v4047
          %4112 = vst [vmem:[#allocation4 + $0xc0] sm:$0xff] %v4048
          %4113 = vst [vmem:[#allocation4 + $0xc8] sm:$0xff] %v4049
          %4114 = vst [vmem:[#allocation4 + $0xd0] sm:$0xff] %v4050
          %4115 = vst [vmem:[#allocation4 + $0xd8] sm:$0xff] %v4051
          %4116 = vst [vmem:[#allocation4 + $0xe0] sm:$0xff] %v4052
          %4117 = vst [vmem:[#allocation4 + $0xe8] sm:$0xff] %v4053
          %4118 = vst [vmem:[#allocation4 + $0xf0] sm:$0xff] %v4054
          %4119 = vst [vmem:[#allocation4 + $0xf8] sm:$0xff] %v4055
          %4120 = vst [vmem:[#allocation4 + $0x100] sm:$0xff] %v4056
          %4121 = vst [vmem:[#allocation4 + $0x108] sm:$0xff] %v4057
          %4122 = vst [vmem:[#allocation4 + $0x110] sm:$0xff] %v4058
          %4123 = vst [vmem:[#allocation4 + $0x118] sm:$0xff] %v4059
          %4124 = vst [vmem:[#allocation4 + $0x120] sm:$0xff] %v4060
          %4125 = vst [vmem:[#allocation4 + $0x128] sm:$0xff] %v4061
          %4126 = vst [vmem:[#allocation4 + $0x130] sm:$0xff] %v4062
          %4127 = vst [vmem:[#allocation4 + $0x138] sm:$0xff] %v4063
          %4128 = vst [vmem:[#allocation4 + $0x140] sm:$0xff] %v4064
          %4129 = vst [vmem:[#allocation4 + $0x148] sm:$0xff] %v4065
          %4130 = vst [vmem:[#allocation4 + $0x150] sm:$0xff] %v4066
          %4131 = vst [vmem:[#allocation4 + $0x158] sm:$0xff] %v4067
          %4132 = vst [vmem:[#allocation4 + $0x160] sm:$0xff] %v4068
          %4133 = vst [vmem:[#allocation4 + $0x168] sm:$0xff] %v4069
          %4134 = vst [vmem:[#allocation4 + $0x170] sm:$0xff] %v4070
          %4135 = vst [vmem:[#allocation4 + $0x178] sm:$0xff] %v4071
          %4136 = vst [vmem:[#allocation4 + $0x180] sm:$0xff] %v4072
          %4137 = vst [vmem:[#allocation4 + $0x188] sm:$0xff] %v4073
          %4138 = vst [vmem:[#allocation4 + $0x190] sm:$0xff] %v4074
          %4139 = vst [vmem:[#allocation4 + $0x198] sm:$0xff] %v4075
          %4140 = vst [vmem:[#allocation4 + $0x1a0] sm:$0xff] %v4076
          %4141 = vst [vmem:[#allocation4 + $0x1a8] sm:$0xff] %v4077
          %4142 = vst [vmem:[#allocation4 + $0x1b0] sm:$0xff] %v4078
          %4143 = vst [vmem:[#allocation4 + $0x1b8] sm:$0xff] %v4079
          %4144 = vst [vmem:[#allocation4 + $0x1c0] sm:$0xff] %v4080
          %4145 = vst [vmem:[#allocation4 + $0x1c8] sm:$0xff] %v4081
          %4146 = vst [vmem:[#allocation4 + $0x1d0] sm:$0xff] %v4082
          %4147 = vst [vmem:[#allocation4 + $0x1d8] sm:$0xff] %v4083
          %4148 = vst [vmem:[#allocation4 + $0x1e0] sm:$0xff] %v4084
          %4149 = vst [vmem:[#allocation4 + $0x1e8] sm:$0xff] %v4085
          %4150 = vst [vmem:[#allocation4 + $0x1f0] sm:$0xff] %v4086
          %4151 = vst [vmem:[#allocation4 + $0x1f8] sm:$0xff] %v4087
          %4152 = vst.msk [vmem:[#allocation2] sm:$0xff] %vm3739, %v3515
          %4153 = vst.msk [vmem:[#allocation2 + $0x8] sm:$0xff] %vm3739, %v3516
          %4154 = vst.msk [vmem:[#allocation2 + $0x10] sm:$0xff] %vm3739, %v3517
          %4155 = vst.msk [vmem:[#allocation2 + $0x18] sm:$0xff] %vm3739, %v3518
          %4156 = vst.msk [vmem:[#allocation2 + $0x20] sm:$0xff] %vm3739, %v3519
          %4157 = vst.msk [vmem:[#allocation2 + $0x28] sm:$0xff] %vm3739, %v3520
          %4158 = vst.msk [vmem:[#allocation2 + $0x30] sm:$0xff] %vm3739, %v3521
          %4159 = vst.msk [vmem:[#allocation2 + $0x38] sm:$0xff] %vm3739, %v3522
          %4160 = vst.msk [vmem:[#allocation2 + $0x40] sm:$0xff] %vm3739, %v3523
          %4161 = vst.msk [vmem:[#allocation2 + $0x48] sm:$0xff] %vm3739, %v3524
          %4162 = vst.msk [vmem:[#allocation2 + $0x50] sm:$0xff] %vm3739, %v3525
          %4163 = vst.msk [vmem:[#allocation2 + $0x58] sm:$0xff] %vm3739, %v3526
          %4164 = vst.msk [vmem:[#allocation2 + $0x60] sm:$0xff] %vm3739, %v3527
          %4165 = vst.msk [vmem:[#allocation2 + $0x68] sm:$0xff] %vm3739, %v3528
          %4166 = vst.msk [vmem:[#allocation2 + $0x70] sm:$0xff] %vm3739, %v3529
          %4167 = vst.msk [vmem:[#allocation2 + $0x78] sm:$0xff] %vm3739, %v3530
        $region84: #{tpu_custom_call.1} parent=51 // pred_fallthru
          _
        %v4168 = vld [vmem:[#allocation3] sm:$0xff]
        %v4169 = vld [vmem:[#allocation3 + $0x8] sm:$0xff]
        %v4170 = vld [vmem:[#allocation3 + $0x10] sm:$0xff]
        %v4171 = vld [vmem:[#allocation3 + $0x18] sm:$0xff]
        %v4172 = vld [vmem:[#allocation3 + $0x20] sm:$0xff]
        %v4173 = vld [vmem:[#allocation3 + $0x28] sm:$0xff]
        %v4174 = vld [vmem:[#allocation3 + $0x30] sm:$0xff]
        %v4175 = vld [vmem:[#allocation3 + $0x38] sm:$0xff]
        %v4176 = vld [vmem:[#allocation3 + $0x40] sm:$0xff]
        %v4177 = vld [vmem:[#allocation3 + $0x48] sm:$0xff]
        %v4178 = vld [vmem:[#allocation3 + $0x50] sm:$0xff]
        %v4179 = vld [vmem:[#allocation3 + $0x58] sm:$0xff]
        %v4180 = vld [vmem:[#allocation3 + $0x60] sm:$0xff]
        %v4181 = vld [vmem:[#allocation3 + $0x68] sm:$0xff]
        %v4182 = vld [vmem:[#allocation3 + $0x70] sm:$0xff]
        %v4183 = vld [vmem:[#allocation3 + $0x78] sm:$0xff]
        %v4184 = vadd.f32 %v3644, %v3646
        %4185 = vadd.xlane.f32.xlu0 %v4184
        %v4186 = vpop.xlane.xlu0 %4185
        %v4187 = vadd.f32 %v3648, %v3650
        %4188 = vadd.xlane.f32.xlu0 %v4187
        %v4189 = vpop.xlane.xlu0 %4188
        %v4190 = vadd.f32 %v3652, %v3654
        %4191 = vadd.xlane.f32.xlu0 %v4190
        %v4192 = vpop.xlane.xlu0 %4191
        %v4193 = vadd.f32 %v3656, %v3658
        %4194 = vadd.xlane.f32.xlu0 %v4193
        %v4195 = vpop.xlane.xlu0 %4194
        %v4196 = vadd.f32 %v3660, %v3662
        %4197 = vadd.xlane.f32.xlu0 %v4196
        %v4198 = vpop.xlane.xlu0 %4197
        %v4199 = vadd.f32 %v3664, %v3666
        %4200 = vadd.xlane.f32.xlu0 %v4199
        %v4201 = vpop.xlane.xlu0 %4200
        %v4202 = vadd.f32 %v3668, %v3670
        %4203 = vadd.xlane.f32.xlu0 %v4202
        %v4204 = vpop.xlane.xlu0 %4203
        %v4205 = vadd.f32 %v3672, %v3674
        %4206 = vadd.xlane.f32.xlu0 %v4205
        %v4207 = vpop.xlane.xlu0 %4206
        %v4208 = vadd.f32 %v3676, %v3678
        %4209 = vadd.xlane.f32.xlu0 %v4208
        %v4210 = vpop.xlane.xlu0 %4209
        %v4211 = vadd.f32 %v3680, %v3682
        %4212 = vadd.xlane.f32.xlu0 %v4211
        %v4213 = vpop.xlane.xlu0 %4212
        %v4214 = vadd.f32 %v3684, %v3686
        %4215 = vadd.xlane.f32.xlu0 %v4214
        %v4216 = vpop.xlane.xlu0 %4215
        %v4217 = vadd.f32 %v3688, %v3690
        %4218 = vadd.xlane.f32.xlu0 %v4217
        %v4219 = vpop.xlane.xlu0 %4218
        %v4220 = vadd.f32 %v3692, %v3694
        %4221 = vadd.xlane.f32.xlu0 %v4220
        %v4222 = vpop.xlane.xlu0 %4221
        %v4223 = vadd.f32 %v3696, %v3698
        %4224 = vadd.xlane.f32.xlu0 %v4223
        %v4225 = vpop.xlane.xlu0 %4224
        %v4226 = vadd.f32 %v3700, %v3702
        %4227 = vadd.xlane.f32.xlu0 %v4226
        %v4228 = vpop.xlane.xlu0 %4227
        %v4229 = vadd.f32 %v3704, %v3706
        %4230 = vadd.xlane.f32.xlu0 %v4229
        %v4231 = vpop.xlane.xlu0 %4230
        %v4232 = vadd.f32 %v4168, %v4186
        %v4233 = vadd.f32 %v4169, %v4189
        %v4234 = vadd.f32 %v4170, %v4192
        %v4235 = vadd.f32 %v4171, %v4195
        %v4236 = vadd.f32 %v4172, %v4198
        %v4237 = vadd.f32 %v4173, %v4201
        %v4238 = vadd.f32 %v4174, %v4204
        %v4239 = vadd.f32 %v4175, %v4207
        %v4240 = vadd.f32 %v4176, %v4210
        %v4241 = vadd.f32 %v4177, %v4213
        %v4242 = vadd.f32 %v4178, %v4216
        %v4243 = vadd.f32 %v4179, %v4219
        %v4244 = vadd.f32 %v4180, %v4222
        %v4245 = vadd.f32 %v4181, %v4225
        %v4246 = vadd.f32 %v4182, %v4228
        %v4247 = vadd.f32 %v4183, %v4231
        %4248 = vst.msk [vmem:[#allocation3] sm:$0xff] %vm3739, %v4232
        %4249 = vst.msk [vmem:[#allocation3 + $0x8] sm:$0xff] %vm3739, %v4233
        %4250 = vst.msk [vmem:[#allocation3 + $0x10] sm:$0xff] %vm3739, %v4234
        %4251 = vst.msk [vmem:[#allocation3 + $0x18] sm:$0xff] %vm3739, %v4235
        %4252 = vst.msk [vmem:[#allocation3 + $0x20] sm:$0xff] %vm3739, %v4236
        %4253 = vst.msk [vmem:[#allocation3 + $0x28] sm:$0xff] %vm3739, %v4237
        %4254 = vst.msk [vmem:[#allocation3 + $0x30] sm:$0xff] %vm3739, %v4238
        %4255 = vst.msk [vmem:[#allocation3 + $0x38] sm:$0xff] %vm3739, %v4239
        %4256 = vst.msk [vmem:[#allocation3 + $0x40] sm:$0xff] %vm3739, %v4240
        %4257 = vst.msk [vmem:[#allocation3 + $0x48] sm:$0xff] %vm3739, %v4241
        %4258 = vst.msk [vmem:[#allocation3 + $0x50] sm:$0xff] %vm3739, %v4242
        %4259 = vst.msk [vmem:[#allocation3 + $0x58] sm:$0xff] %vm3739, %v4243
        %4260 = vst.msk [vmem:[#allocation3 + $0x60] sm:$0xff] %vm3739, %v4244
        %4261 = vst.msk [vmem:[#allocation3 + $0x68] sm:$0xff] %vm3739, %v4245
        %4262 = vst.msk [vmem:[#allocation3 + $0x70] sm:$0xff] %vm3739, %v4246
        %4263 = vst.msk [vmem:[#allocation3 + $0x78] sm:$0xff] %vm3739, %v4247
        %v4264 = vld [vmem:[#allocation4] sm:$0xff]
        %v4265 = vld [vmem:[#allocation4 + $0x8] sm:$0xff]
        %v4266 = vld [vmem:[#allocation4 + $0x10] sm:$0xff]
        %v4267 = vld [vmem:[#allocation4 + $0x18] sm:$0xff]
        %v4268 = vld [vmem:[#allocation4 + $0x20] sm:$0xff]
        %v4269 = vld [vmem:[#allocation4 + $0x28] sm:$0xff]
        %v4270 = vld [vmem:[#allocation4 + $0x30] sm:$0xff]
        %v4271 = vld [vmem:[#allocation4 + $0x38] sm:$0xff]
        %v4272 = vld [vmem:[#allocation4 + $0x40] sm:$0xff]
        %v4273 = vld [vmem:[#allocation4 + $0x48] sm:$0xff]
        %v4274 = vld [vmem:[#allocation4 + $0x50] sm:$0xff]
        %v4275 = vld [vmem:[#allocation4 + $0x58] sm:$0xff]
        %v4276 = vld [vmem:[#allocation4 + $0x60] sm:$0xff]
        %v4277 = vld [vmem:[#allocation4 + $0x68] sm:$0xff]
        %v4278 = vld [vmem:[#allocation4 + $0x70] sm:$0xff]
        %v4279 = vld [vmem:[#allocation4 + $0x78] sm:$0xff]
        %v4280 = vld [vmem:[#allocation4 + $0x80] sm:$0xff]
        %v4281 = vld [vmem:[#allocation4 + $0x88] sm:$0xff]
        %v4282 = vld [vmem:[#allocation4 + $0x90] sm:$0xff]
        %v4283 = vld [vmem:[#allocation4 + $0x98] sm:$0xff]
        %v4284 = vld [vmem:[#allocation4 + $0xa0] sm:$0xff]
        %v4285 = vld [vmem:[#allocation4 + $0xa8] sm:$0xff]
        %v4286 = vld [vmem:[#allocation4 + $0xb0] sm:$0xff]
        %v4287 = vld [vmem:[#allocation4 + $0xb8] sm:$0xff]
        %v4288 = vld [vmem:[#allocation4 + $0xc0] sm:$0xff]
        %v4289 = vld [vmem:[#allocation4 + $0xc8] sm:$0xff]
        %v4290 = vld [vmem:[#allocation4 + $0xd0] sm:$0xff]
        %v4291 = vld [vmem:[#allocation4 + $0xd8] sm:$0xff]
        %v4292 = vld [vmem:[#allocation4 + $0xe0] sm:$0xff]
        %v4293 = vld [vmem:[#allocation4 + $0xe8] sm:$0xff]
        %v4294 = vld [vmem:[#allocation4 + $0xf0] sm:$0xff]
        %v4295 = vld [vmem:[#allocation4 + $0xf8] sm:$0xff]
        %v4296 = vld [vmem:[#allocation4 + $0x100] sm:$0xff]
        %v4297 = vld [vmem:[#allocation4 + $0x108] sm:$0xff]
        %v4298 = vld [vmem:[#allocation4 + $0x110] sm:$0xff]
        %v4299 = vld [vmem:[#allocation4 + $0x118] sm:$0xff]
        %v4300 = vld [vmem:[#allocation4 + $0x120] sm:$0xff]
        %v4301 = vld [vmem:[#allocation4 + $0x128] sm:$0xff]
        %v4302 = vld [vmem:[#allocation4 + $0x130] sm:$0xff]
        %v4303 = vld [vmem:[#allocation4 + $0x138] sm:$0xff]
        %v4304 = vld [vmem:[#allocation4 + $0x140] sm:$0xff]
        %v4305 = vld [vmem:[#allocation4 + $0x148] sm:$0xff]
        %v4306 = vld [vmem:[#allocation4 + $0x150] sm:$0xff]
        %v4307 = vld [vmem:[#allocation4 + $0x158] sm:$0xff]
        %v4308 = vld [vmem:[#allocation4 + $0x160] sm:$0xff]
        %v4309 = vld [vmem:[#allocation4 + $0x168] sm:$0xff]
        %v4310 = vld [vmem:[#allocation4 + $0x170] sm:$0xff]
        %v4311 = vld [vmem:[#allocation4 + $0x178] sm:$0xff]
        %v4312 = vld [vmem:[#allocation4 + $0x180] sm:$0xff]
        %v4313 = vld [vmem:[#allocation4 + $0x188] sm:$0xff]
        %v4314 = vld [vmem:[#allocation4 + $0x190] sm:$0xff]
        %v4315 = vld [vmem:[#allocation4 + $0x198] sm:$0xff]
        %v4316 = vld [vmem:[#allocation4 + $0x1a0] sm:$0xff]
        %v4317 = vld [vmem:[#allocation4 + $0x1a8] sm:$0xff]
        %v4318 = vld [vmem:[#allocation4 + $0x1b0] sm:$0xff]
        %v4319 = vld [vmem:[#allocation4 + $0x1b8] sm:$0xff]
        %v4320 = vld [vmem:[#allocation4 + $0x1c0] sm:$0xff]
        %v4321 = vld [vmem:[#allocation4 + $0x1c8] sm:$0xff]
        %v4322 = vld [vmem:[#allocation4 + $0x1d0] sm:$0xff]
        %v4323 = vld [vmem:[#allocation4 + $0x1d8] sm:$0xff]
        %v4324 = vld [vmem:[#allocation4 + $0x1e0] sm:$0xff]
        %v4325 = vld [vmem:[#allocation4 + $0x1e8] sm:$0xff]
        %v4326 = vld [vmem:[#allocation4 + $0x1f0] sm:$0xff]
        %v4327 = vld [vmem:[#allocation4 + $0x1f8] sm:$0xff]
        %v4328 = vpack.c.bf16 %v3648, %v3644
        %v4329 = vpack.c.bf16 %v3650, %v3646
        %v4330 = vpack.c.bf16 %v3656, %v3652
        %v4331 = vpack.c.bf16 %v3658, %v3654
        %v4332 = vpack.c.bf16 %v3664, %v3660
        %v4333 = vpack.c.bf16 %v3666, %v3662
        %v4334 = vpack.c.bf16 %v3672, %v3668
        %v4335 = vpack.c.bf16 %v3674, %v3670
        %v4336 = vpack.c.bf16 %v3680, %v3676
        %v4337 = vpack.c.bf16 %v3682, %v3678
        %v4338 = vpack.c.bf16 %v3688, %v3684
        %v4339 = vpack.c.bf16 %v3690, %v3686
        %v4340 = vpack.c.bf16 %v3696, %v3692
        %v4341 = vpack.c.bf16 %v3698, %v3694
        %v4342 = vpack.c.bf16 %v3704, %v3700
        %v4343 = vpack.c.bf16 %v3706, %v3702
        %4344 = vmatprep.subr.bf16.mxu0 %v1090
        %4345 = vmatpush1.bf16.msra.mxu0 %v1089
        %4346 = vmatprep.subr.bf16.mxu0 %v1094
        %4347 = vmatpush1.bf16.msra.mxu0 %v1093
        %4348 = vmatprep.subr.bf16.mxu0 %v1098
        %4349 = vmatpush1.bf16.msra.mxu0 %v1097
        %4350 = vmatprep.subr.bf16.mxu0 %v1102
        %4351 = vmatpush1.bf16.msra.mxu0 %v1101
        %4352 = vmatprep.subr.bf16.mxu0 %v1106
        %4353 = vmatpush1.bf16.msra.mxu0 %v1105
        %4354 = vmatprep.subr.bf16.mxu0 %v1110
        %4355 = vmatpush1.bf16.msra.mxu0 %v1109
        %4356 = vmatprep.subr.bf16.mxu0 %v1114
        %4357 = vmatpush1.bf16.msra.mxu0 %v1113
        %4358 = vmatprep.subr.bf16.mxu0 %v1118
        %4359 = vmatpush1.bf16.msra.mxu0 %v1117
        %4360 = vmatprep.subr.bf16.mxu0 %v1122
        %4361 = vmatpush1.bf16.msra.mxu0 %v1121
        %4362 = vmatprep.subr.bf16.mxu0 %v1126
        %4363 = vmatpush1.bf16.msra.mxu0 %v1125
        %4364 = vmatprep.subr.bf16.mxu0 %v1130
        %4365 = vmatpush1.bf16.msra.mxu0 %v1129
        %4366 = vmatprep.subr.bf16.mxu0 %v1134
        %4367 = vmatpush1.bf16.msra.mxu0 %v1133
        %4368 = vmatprep.subr.bf16.mxu0 %v1138
        %4369 = vmatpush1.bf16.msra.mxu0 %v1137
        %4370 = vmatprep.subr.bf16.mxu0 %v1142
        %4371 = vmatpush1.bf16.msra.mxu0 %v1141
        %4372 = vmatprep.subr.bf16.mxu0 %v1146
        %4373 = vmatpush1.bf16.msra.mxu0 %v1145
        %4374 = vmatprep.subr.bf16.mxu0 %v1150
        %4375 = vmatpush1.bf16.msra.mxu0 %v1149
        %4376 = vmatprep.mubr.bf16.mxu0 %v4329
        %4377 = vmatmul.mubr.bf16.gmra.mrb[0].mxu0 %v4328
        %v4378 = vpop.f32.mrb[0].mxu0
        %v4379 = vadd.f32 0.0, %v4378
        %v4380 = vpop.f32.mrb[0].mxu0
        %v4381 = vadd.f32 0.0, %v4380
        %v4382 = vpop.f32.mrb[0].mxu0
        %v4383 = vadd.f32 0.0, %v4382
        %v4384 = vpop.f32.mrb[0].mxu0
        %v4385 = vadd.f32 0.0, %v4384
        %4386 = vmatprep.mubr.bf16.mxu0 %v4331
        %4387 = vmatmul.mubr.bf16.gmra.mrb[0].mxu0 %v4330
        %v4388 = vpop.f32.mrb[0].mxu0
        %v4389 = vadd.f32 0.0, %v4388
        %v4390 = vpop.f32.mrb[0].mxu0
        %v4391 = vadd.f32 0.0, %v4390
        %v4392 = vpop.f32.mrb[0].mxu0
        %v4393 = vadd.f32 0.0, %v4392
        %v4394 = vpop.f32.mrb[0].mxu0
        %v4395 = vadd.f32 0.0, %v4394
        %4396 = vmatprep.mubr.bf16.mxu0 %v4333
        %4397 = vmatmul.mubr.bf16.gmra.mrb[0].mxu0 %v4332
        %v4398 = vpop.f32.mrb[0].mxu0
        %v4399 = vadd.f32 0.0, %v4398
        %v4400 = vpop.f32.mrb[0].mxu0
        %v4401 = vadd.f32 0.0, %v4400
        %v4402 = vpop.f32.mrb[0].mxu0
        %v4403 = vadd.f32 0.0, %v4402
        %v4404 = vpop.f32.mrb[0].mxu0
        %v4405 = vadd.f32 0.0, %v4404
        %4406 = vmatprep.mubr.bf16.mxu0 %v4335
        %4407 = vmatmul.mubr.bf16.gmra.mrb[0].mxu0 %v4334
        %v4408 = vpop.f32.mrb[0].mxu0
        %v4409 = vadd.f32 0.0, %v4408
        %v4410 = vpop.f32.mrb[0].mxu0
        %v4411 = vadd.f32 0.0, %v4410
        %v4412 = vpop.f32.mrb[0].mxu0
        %v4413 = vadd.f32 0.0, %v4412
        %v4414 = vpop.f32.mrb[0].mxu0
        %v4415 = vadd.f32 0.0, %v4414
        %4416 = vmatprep.mubr.bf16.mxu0 %v4337
        %4417 = vmatmul.mubr.bf16.gmra.mrb[0].mxu0 %v4336
        %v4418 = vpop.f32.mrb[0].mxu0
        %v4419 = vadd.f32 0.0, %v4418
        %v4420 = vpop.f32.mrb[0].mxu0
        %v4421 = vadd.f32 0.0, %v4420
        %v4422 = vpop.f32.mrb[0].mxu0
        %v4423 = vadd.f32 0.0, %v4422
        %v4424 = vpop.f32.mrb[0].mxu0
        %v4425 = vadd.f32 0.0, %v4424
        %4426 = vmatprep.mubr.bf16.mxu0 %v4339
        %4427 = vmatmul.mubr.bf16.gmra.mrb[0].mxu0 %v4338
        %v4428 = vpop.f32.mrb[0].mxu0
        %v4429 = vadd.f32 0.0, %v4428
        %v4430 = vpop.f32.mrb[0].mxu0
        %v4431 = vadd.f32 0.0, %v4430
        %v4432 = vpop.f32.mrb[0].mxu0
        %v4433 = vadd.f32 0.0, %v4432
        %v4434 = vpop.f32.mrb[0].mxu0
        %v4435 = vadd.f32 0.0, %v4434
        %4436 = vmatprep.mubr.bf16.mxu0 %v4341
        %4437 = vmatmul.mubr.bf16.gmra.mrb[0].mxu0 %v4340
        %v4438 = vpop.f32.mrb[0].mxu0
        %v4439 = vadd.f32 0.0, %v4438
        %v4440 = vpop.f32.mrb[0].mxu0
        %v4441 = vadd.f32 0.0, %v4440
        %v4442 = vpop.f32.mrb[0].mxu0
        %v4443 = vadd.f32 0.0, %v4442
        %v4444 = vpop.f32.mrb[0].mxu0
        %v4445 = vadd.f32 0.0, %v4444
        %4446 = vmatprep.mubr.bf16.mxu0 %v4343
        %4447 = vmatmul.mubr.bf16.gmra.mrb[0].mxu0 %v4342
        %v4448 = vpop.f32.mrb[0].mxu0
        %v4449 = vadd.f32 0.0, %v4448
        %v4450 = vpop.f32.mrb[0].mxu0
        %v4451 = vadd.f32 0.0, %v4450
        %v4452 = vpop.f32.mrb[0].mxu0
        %v4453 = vadd.f32 0.0, %v4452
        %v4454 = vpop.f32.mrb[0].mxu0
        %v4455 = vadd.f32 0.0, %v4454
        %4456 = vdwg.mxu0
        %4457 = vmatprep.subr.bf16.mxu0 %v1092
        %4458 = vmatpush1.bf16.msra.mxu0 %v1091
        %4459 = vmatprep.subr.bf16.mxu0 %v1096
        %4460 = vmatpush1.bf16.msra.mxu0 %v1095
        %4461 = vmatprep.subr.bf16.mxu0 %v1100
        %4462 = vmatpush1.bf16.msra.mxu0 %v1099
        %4463 = vmatprep.subr.bf16.mxu0 %v1104
        %4464 = vmatpush1.bf16.msra.mxu0 %v1103
        %4465 = vmatprep.subr.bf16.mxu0 %v1108
        %4466 = vmatpush1.bf16.msra.mxu0 %v1107
        %4467 = vmatprep.subr.bf16.mxu0 %v1112
        %4468 = vmatpush1.bf16.msra.mxu0 %v1111
        %4469 = vmatprep.subr.bf16.mxu0 %v1116
        %4470 = vmatpush1.bf16.msra.mxu0 %v1115
        %4471 = vmatprep.subr.bf16.mxu0 %v1120
        %4472 = vmatpush1.bf16.msra.mxu0 %v1119
        %4473 = vmatprep.subr.bf16.mxu0 %v1124
        %4474 = vmatpush1.bf16.msra.mxu0 %v1123
        %4475 = vmatprep.subr.bf16.mxu0 %v1128
        %4476 = vmatpush1.bf16.msra.mxu0 %v1127
        %4477 = vmatprep.subr.bf16.mxu0 %v1132
        %4478 = vmatpush1.bf16.msra.mxu0 %v1131
        %4479 = vmatprep.subr.bf16.mxu0 %v1136
        %4480 = vmatpush1.bf16.msra.mxu0 %v1135
        %4481 = vmatprep.subr.bf16.mxu0 %v1140
        %4482 = vmatpush1.bf16.msra.mxu0 %v1139
        %4483 = vmatprep.subr.bf16.mxu0 %v1144
        %4484 = vmatpush1.bf16.msra.mxu0 %v1143
        %4485 = vmatprep.subr.bf16.mxu0 %v1148
        %4486 = vmatpush1.bf16.msra.mxu0 %v1147
        %4487 = vmatprep.subr.bf16.mxu0 %v1152
        %4488 = vmatpush1.bf16.msra.mxu0 %v1151
        %4489 = vmatprep.mubr.bf16.mxu0 %v4329
        %4490 = vmatmul.mubr.bf16.gmra.mrb[0].mxu0 %v4328
        %v4491 = vpop.f32.mrb[0].mxu0
        %v4492 = vadd.f32 0.0, %v4491
        %v4493 = vpop.f32.mrb[0].mxu0
        %v4494 = vadd.f32 0.0, %v4493
        %v4495 = vpop.f32.mrb[0].mxu0
        %v4496 = vadd.f32 0.0, %v4495
        %v4497 = vpop.f32.mrb[0].mxu0
        %v4498 = vadd.f32 0.0, %v4497
        %4499 = vmatprep.mubr.bf16.mxu0 %v4331
        %4500 = vmatmul.mubr.bf16.gmra.mrb[0].mxu0 %v4330
        %v4501 = vpop.f32.mrb[0].mxu0
        %v4502 = vadd.f32 0.0, %v4501
        %v4503 = vpop.f32.mrb[0].mxu0
        %v4504 = vadd.f32 0.0, %v4503
        %v4505 = vpop.f32.mrb[0].mxu0
        %v4506 = vadd.f32 0.0, %v4505
        %v4507 = vpop.f32.mrb[0].mxu0
        %v4508 = vadd.f32 0.0, %v4507
        %4509 = vmatprep.mubr.bf16.mxu0 %v4333
        %4510 = vmatmul.mubr.bf16.gmra.mrb[0].mxu0 %v4332
        %v4511 = vpop.f32.mrb[0].mxu0
        %v4512 = vadd.f32 0.0, %v4511
        %v4513 = vpop.f32.mrb[0].mxu0
        %v4514 = vadd.f32 0.0, %v4513
        %v4515 = vpop.f32.mrb[0].mxu0
        %v4516 = vadd.f32 0.0, %v4515
        %v4517 = vpop.f32.mrb[0].mxu0
        %v4518 = vadd.f32 0.0, %v4517
        %4519 = vmatprep.mubr.bf16.mxu0 %v4335
        %4520 = vmatmul.mubr.bf16.gmra.mrb[0].mxu0 %v4334
        %v4521 = vpop.f32.mrb[0].mxu0
        %v4522 = vadd.f32 0.0, %v4521
        %v4523 = vpop.f32.mrb[0].mxu0
        %v4524 = vadd.f32 0.0, %v4523
        %v4525 = vpop.f32.mrb[0].mxu0
        %v4526 = vadd.f32 0.0, %v4525
        %v4527 = vpop.f32.mrb[0].mxu0
        %v4528 = vadd.f32 0.0, %v4527
        %4529 = vmatprep.mubr.bf16.mxu0 %v4337
        %4530 = vmatmul.mubr.bf16.gmra.mrb[0].mxu0 %v4336
        %v4531 = vpop.f32.mrb[0].mxu0
        %v4532 = vadd.f32 0.0, %v4531
        %v4533 = vpop.f32.mrb[0].mxu0
        %v4534 = vadd.f32 0.0, %v4533
        %v4535 = vpop.f32.mrb[0].mxu0
        %v4536 = vadd.f32 0.0, %v4535
        %v4537 = vpop.f32.mrb[0].mxu0
        %v4538 = vadd.f32 0.0, %v4537
        %4539 = vmatprep.mubr.bf16.mxu0 %v4339
        %4540 = vmatmul.mubr.bf16.gmra.mrb[0].mxu0 %v4338
        %v4541 = vpop.f32.mrb[0].mxu0
        %v4542 = vadd.f32 0.0, %v4541
        %v4543 = vpop.f32.mrb[0].mxu0
        %v4544 = vadd.f32 0.0, %v4543
        %v4545 = vpop.f32.mrb[0].mxu0
        %v4546 = vadd.f32 0.0, %v4545
        %v4547 = vpop.f32.mrb[0].mxu0
        %v4548 = vadd.f32 0.0, %v4547
        %4549 = vmatprep.mubr.bf16.mxu0 %v4341
        %4550 = vmatmul.mubr.bf16.gmra.mrb[0].mxu0 %v4340
        %v4551 = vpop.f32.mrb[0].mxu0
        %v4552 = vadd.f32 0.0, %v4551
        %v4553 = vpop.f32.mrb[0].mxu0
        %v4554 = vadd.f32 0.0, %v4553
        %v4555 = vpop.f32.mrb[0].mxu0
        %v4556 = vadd.f32 0.0, %v4555
        %v4557 = vpop.f32.mrb[0].mxu0
        %v4558 = vadd.f32 0.0, %v4557
        %4559 = vmatprep.mubr.bf16.mxu0 %v4343
        %4560 = vmatmul.mubr.bf16.gmra.mrb[0].mxu0 %v4342
        %v4561 = vpop.f32.mrb[0].mxu0
        %v4562 = vadd.f32 0.0, %v4561
        %v4563 = vpop.f32.mrb[0].mxu0
        %v4564 = vadd.f32 0.0, %v4563
        %v4565 = vpop.f32.mrb[0].mxu0
        %v4566 = vadd.f32 0.0, %v4565
        %v4567 = vpop.f32.mrb[0].mxu0
        %v4568 = vadd.f32 0.0, %v4567
        %4569 = vdwg.mxu0
        %v4570 = vadd.f32 %v4264, %v4379
        %v4571 = vadd.f32 %v4265, %v4381
        %v4572 = vadd.f32 %v4266, %v4492
        %v4573 = vadd.f32 %v4267, %v4494
        %v4574 = vadd.f32 %v4268, %v4383
        %v4575 = vadd.f32 %v4269, %v4385
        %v4576 = vadd.f32 %v4270, %v4496
        %v4577 = vadd.f32 %v4271, %v4498
        %v4578 = vadd.f32 %v4272, %v4389
        %v4579 = vadd.f32 %v4273, %v4391
        %v4580 = vadd.f32 %v4274, %v4502
        %v4581 = vadd.f32 %v4275, %v4504
        %v4582 = vadd.f32 %v4276, %v4393
        %v4583 = vadd.f32 %v4277, %v4395
        %v4584 = vadd.f32 %v4278, %v4506
        %v4585 = vadd.f32 %v4279, %v4508
        %v4586 = vadd.f32 %v4280, %v4399
        %v4587 = vadd.f32 %v4281, %v4401
        %v4588 = vadd.f32 %v4282, %v4512
        %v4589 = vadd.f32 %v4283, %v4514
        %v4590 = vadd.f32 %v4284, %v4403
        %v4591 = vadd.f32 %v4285, %v4405
        %v4592 = vadd.f32 %v4286, %v4516
        %v4593 = vadd.f32 %v4287, %v4518
        %v4594 = vadd.f32 %v4288, %v4409
        %v4595 = vadd.f32 %v4289, %v4411
        %v4596 = vadd.f32 %v4290, %v4522
        %v4597 = vadd.f32 %v4291, %v4524
        %v4598 = vadd.f32 %v4292, %v4413
        %v4599 = vadd.f32 %v4293, %v4415
        %v4600 = vadd.f32 %v4294, %v4526
        %v4601 = vadd.f32 %v4295, %v4528
        %v4602 = vadd.f32 %v4296, %v4419
        %v4603 = vadd.f32 %v4297, %v4421
        %v4604 = vadd.f32 %v4298, %v4532
        %v4605 = vadd.f32 %v4299, %v4534
        %v4606 = vadd.f32 %v4300, %v4423
        %v4607 = vadd.f32 %v4301, %v4425
        %v4608 = vadd.f32 %v4302, %v4536
        %v4609 = vadd.f32 %v4303, %v4538
        %v4610 = vadd.f32 %v4304, %v4429
        %v4611 = vadd.f32 %v4305, %v4431
        %v4612 = vadd.f32 %v4306, %v4542
        %v4613 = vadd.f32 %v4307, %v4544
        %v4614 = vadd.f32 %v4308, %v4433
        %v4615 = vadd.f32 %v4309, %v4435
        %v4616 = vadd.f32 %v4310, %v4546
        %v4617 = vadd.f32 %v4311, %v4548
        %v4618 = vadd.f32 %v4312, %v4439
        %v4619 = vadd.f32 %v4313, %v4441
        %v4620 = vadd.f32 %v4314, %v4552
        %v4621 = vadd.f32 %v4315, %v4554
        %v4622 = vadd.f32 %v4316, %v4443
        %v4623 = vadd.f32 %v4317, %v4445
        %v4624 = vadd.f32 %v4318, %v4556
        %v4625 = vadd.f32 %v4319, %v4558
        %v4626 = vadd.f32 %v4320, %v4449
        %v4627 = vadd.f32 %v4321, %v4451
        %v4628 = vadd.f32 %v4322, %v4562
        %v4629 = vadd.f32 %v4323, %v4564
        %v4630 = vadd.f32 %v4324, %v4453
        %v4631 = vadd.f32 %v4325, %v4455
        %v4632 = vadd.f32 %v4326, %v4566
        %v4633 = vadd.f32 %v4327, %v4568
        %4634 = vst [vmem:[#allocation4] sm:$0xff] %v4570
        %4635 = vst [vmem:[#allocation4 + $0x8] sm:$0xff] %v4571
        %4636 = vst [vmem:[#allocation4 + $0x10] sm:$0xff] %v4572
        %4637 = vst [vmem:[#allocation4 + $0x18] sm:$0xff] %v4573
        %4638 = vst [vmem:[#allocation4 + $0x20] sm:$0xff] %v4574
        %4639 = vst [vmem:[#allocation4 + $0x28] sm:$0xff] %v4575
        %4640 = vst [vmem:[#allocation4 + $0x30] sm:$0xff] %v4576
        %4641 = vst [vmem:[#allocation4 + $0x38] sm:$0xff] %v4577
        %4642 = vst [vmem:[#allocation4 + $0x40] sm:$0xff] %v4578
        %4643 = vst [vmem:[#allocation4 + $0x48] sm:$0xff] %v4579
        %4644 = vst [vmem:[#allocation4 + $0x50] sm:$0xff] %v4580
        %4645 = vst [vmem:[#allocation4 + $0x58] sm:$0xff] %v4581
        %4646 = vst [vmem:[#allocation4 + $0x60] sm:$0xff] %v4582
        %4647 = vst [vmem:[#allocation4 + $0x68] sm:$0xff] %v4583
        %4648 = vst [vmem:[#allocation4 + $0x70] sm:$0xff] %v4584
        %4649 = vst [vmem:[#allocation4 + $0x78] sm:$0xff] %v4585
        %4650 = vst [vmem:[#allocation4 + $0x80] sm:$0xff] %v4586
        %4651 = vst [vmem:[#allocation4 + $0x88] sm:$0xff] %v4587
        %4652 = vst [vmem:[#allocation4 + $0x90] sm:$0xff] %v4588
        %4653 = vst [vmem:[#allocation4 + $0x98] sm:$0xff] %v4589
        %4654 = vst [vmem:[#allocation4 + $0xa0] sm:$0xff] %v4590
        %4655 = vst [vmem:[#allocation4 + $0xa8] sm:$0xff] %v4591
        %4656 = vst [vmem:[#allocation4 + $0xb0] sm:$0xff] %v4592
        %4657 = vst [vmem:[#allocation4 + $0xb8] sm:$0xff] %v4593
        %4658 = vst [vmem:[#allocation4 + $0xc0] sm:$0xff] %v4594
        %4659 = vst [vmem:[#allocation4 + $0xc8] sm:$0xff] %v4595
        %4660 = vst [vmem:[#allocation4 + $0xd0] sm:$0xff] %v4596
        %4661 = vst [vmem:[#allocation4 + $0xd8] sm:$0xff] %v4597
        %4662 = vst [vmem:[#allocation4 + $0xe0] sm:$0xff] %v4598
        %4663 = vst [vmem:[#allocation4 + $0xe8] sm:$0xff] %v4599
        %4664 = vst [vmem:[#allocation4 + $0xf0] sm:$0xff] %v4600
        %4665 = vst [vmem:[#allocation4 + $0xf8] sm:$0xff] %v4601
        %4666 = vst [vmem:[#allocation4 + $0x100] sm:$0xff] %v4602
        %4667 = vst [vmem:[#allocation4 + $0x108] sm:$0xff] %v4603
        %4668 = vst [vmem:[#allocation4 + $0x110] sm:$0xff] %v4604
        %4669 = vst [vmem:[#allocation4 + $0x118] sm:$0xff] %v4605
        %4670 = vst [vmem:[#allocation4 + $0x120] sm:$0xff] %v4606
        %4671 = vst [vmem:[#allocation4 + $0x128] sm:$0xff] %v4607
        %4672 = vst [vmem:[#allocation4 + $0x130] sm:$0xff] %v4608
        %4673 = vst [vmem:[#allocation4 + $0x138] sm:$0xff] %v4609
        %4674 = vst [vmem:[#allocation4 + $0x140] sm:$0xff] %v4610
        %4675 = vst [vmem:[#allocation4 + $0x148] sm:$0xff] %v4611
        %4676 = vst [vmem:[#allocation4 + $0x150] sm:$0xff] %v4612
        %4677 = vst [vmem:[#allocation4 + $0x158] sm:$0xff] %v4613
        %4678 = vst [vmem:[#allocation4 + $0x160] sm:$0xff] %v4614
        %4679 = vst [vmem:[#allocation4 + $0x168] sm:$0xff] %v4615
        %4680 = vst [vmem:[#allocation4 + $0x170] sm:$0xff] %v4616
        %4681 = vst [vmem:[#allocation4 + $0x178] sm:$0xff] %v4617
        %4682 = vst [vmem:[#allocation4 + $0x180] sm:$0xff] %v4618
        %4683 = vst [vmem:[#allocation4 + $0x188] sm:$0xff] %v4619
        %4684 = vst [vmem:[#allocation4 + $0x190] sm:$0xff] %v4620
        %4685 = vst [vmem:[#allocation4 + $0x198] sm:$0xff] %v4621
        %4686 = vst [vmem:[#allocation4 + $0x1a0] sm:$0xff] %v4622
        %4687 = vst [vmem:[#allocation4 + $0x1a8] sm:$0xff] %v4623
        %4688 = vst [vmem:[#allocation4 + $0x1b0] sm:$0xff] %v4624
        %4689 = vst [vmem:[#allocation4 + $0x1b8] sm:$0xff] %v4625
        %4690 = vst [vmem:[#allocation4 + $0x1c0] sm:$0xff] %v4626
        %4691 = vst [vmem:[#allocation4 + $0x1c8] sm:$0xff] %v4627
        %4692 = vst [vmem:[#allocation4 + $0x1d0] sm:$0xff] %v4628
        %4693 = vst [vmem:[#allocation4 + $0x1d8] sm:$0xff] %v4629
        %4694 = vst [vmem:[#allocation4 + $0x1e0] sm:$0xff] %v4630
        %4695 = vst [vmem:[#allocation4 + $0x1e8] sm:$0xff] %v4631
        %4696 = vst [vmem:[#allocation4 + $0x1f0] sm:$0xff] %v4632
        %4697 = vst [vmem:[#allocation4 + $0x1f8] sm:$0xff] %v4633
        %s4698 = sadd.s32 %s569, 3
        %s4699 = smul.u32 %s4698, 128
        %s4700 = sadd.s32 %s4699, %s574
        %s4701 = sld [smem:[#allocation6 + %s4700]]
        %p4702 = scmp.eq.s32.totalorder %s4701, 1
        // Predicated region
        $region85: #{tpu_custom_call.1} parent=51 // pred_check
          %p4703 = pneg %p4702
        $region86: #{tpu_custom_call.1} parent=51 // pred_check_branch
          %4705 = sbr.rel (%p4703) target = $region88
        $region87: #{tpu_custom_call.1} parent=51 // pred_region
          %v4706 = vld [vmem:[#allocation4] sm:$0xff]
          %v4707 = vld [vmem:[#allocation4 + $0x8] sm:$0xff]
          %v4708 = vld [vmem:[#allocation4 + $0x10] sm:$0xff]
          %v4709 = vld [vmem:[#allocation4 + $0x18] sm:$0xff]
          %v4710 = vld [vmem:[#allocation4 + $0x20] sm:$0xff]
          %v4711 = vld [vmem:[#allocation4 + $0x28] sm:$0xff]
          %v4712 = vld [vmem:[#allocation4 + $0x30] sm:$0xff]
          %v4713 = vld [vmem:[#allocation4 + $0x38] sm:$0xff]
          %v4714 = vld [vmem:[#allocation4 + $0x40] sm:$0xff]
          %v4715 = vld [vmem:[#allocation4 + $0x48] sm:$0xff]
          %v4716 = vld [vmem:[#allocation4 + $0x50] sm:$0xff]
          %v4717 = vld [vmem:[#allocation4 + $0x58] sm:$0xff]
          %v4718 = vld [vmem:[#allocation4 + $0x60] sm:$0xff]
          %v4719 = vld [vmem:[#allocation4 + $0x68] sm:$0xff]
          %v4720 = vld [vmem:[#allocation4 + $0x70] sm:$0xff]
          %v4721 = vld [vmem:[#allocation4 + $0x78] sm:$0xff]
          %v4722 = vld [vmem:[#allocation4 + $0x80] sm:$0xff]
          %v4723 = vld [vmem:[#allocation4 + $0x88] sm:$0xff]
          %v4724 = vld [vmem:[#allocation4 + $0x90] sm:$0xff]
          %v4725 = vld [vmem:[#allocation4 + $0x98] sm:$0xff]
          %v4726 = vld [vmem:[#allocation4 + $0xa0] sm:$0xff]
          %v4727 = vld [vmem:[#allocation4 + $0xa8] sm:$0xff]
          %v4728 = vld [vmem:[#allocation4 + $0xb0] sm:$0xff]
          %v4729 = vld [vmem:[#allocation4 + $0xb8] sm:$0xff]
          %v4730 = vld [vmem:[#allocation4 + $0xc0] sm:$0xff]
          %v4731 = vld [vmem:[#allocation4 + $0xc8] sm:$0xff]
          %v4732 = vld [vmem:[#allocation4 + $0xd0] sm:$0xff]
          %v4733 = vld [vmem:[#allocation4 + $0xd8] sm:$0xff]
          %v4734 = vld [vmem:[#allocation4 + $0xe0] sm:$0xff]
          %v4735 = vld [vmem:[#allocation4 + $0xe8] sm:$0xff]
          %v4736 = vld [vmem:[#allocation4 + $0xf0] sm:$0xff]
          %v4737 = vld [vmem:[#allocation4 + $0xf8] sm:$0xff]
          %v4738 = vld [vmem:[#allocation4 + $0x100] sm:$0xff]
          %v4739 = vld [vmem:[#allocation4 + $0x108] sm:$0xff]
          %v4740 = vld [vmem:[#allocation4 + $0x110] sm:$0xff]
          %v4741 = vld [vmem:[#allocation4 + $0x118] sm:$0xff]
          %v4742 = vld [vmem:[#allocation4 + $0x120] sm:$0xff]
          %v4743 = vld [vmem:[#allocation4 + $0x128] sm:$0xff]
          %v4744 = vld [vmem:[#allocation4 + $0x130] sm:$0xff]
          %v4745 = vld [vmem:[#allocation4 + $0x138] sm:$0xff]
          %v4746 = vld [vmem:[#allocation4 + $0x140] sm:$0xff]
          %v4747 = vld [vmem:[#allocation4 + $0x148] sm:$0xff]
          %v4748 = vld [vmem:[#allocation4 + $0x150] sm:$0xff]
          %v4749 = vld [vmem:[#allocation4 + $0x158] sm:$0xff]
          %v4750 = vld [vmem:[#allocation4 + $0x160] sm:$0xff]
          %v4751 = vld [vmem:[#allocation4 + $0x168] sm:$0xff]
          %v4752 = vld [vmem:[#allocation4 + $0x170] sm:$0xff]
          %v4753 = vld [vmem:[#allocation4 + $0x178] sm:$0xff]
          %v4754 = vld [vmem:[#allocation4 + $0x180] sm:$0xff]
          %v4755 = vld [vmem:[#allocation4 + $0x188] sm:$0xff]
          %v4756 = vld [vmem:[#allocation4 + $0x190] sm:$0xff]
          %v4757 = vld [vmem:[#allocation4 + $0x198] sm:$0xff]
          %v4758 = vld [vmem:[#allocation4 + $0x1a0] sm:$0xff]
          %v4759 = vld [vmem:[#allocation4 + $0x1a8] sm:$0xff]
          %v4760 = vld [vmem:[#allocation4 + $0x1b0] sm:$0xff]
          %v4761 = vld [vmem:[#allocation4 + $0x1b8] sm:$0xff]
          %v4762 = vld [vmem:[#allocation4 + $0x1c0] sm:$0xff]
          %v4763 = vld [vmem:[#allocation4 + $0x1c8] sm:$0xff]
          %v4764 = vld [vmem:[#allocation4 + $0x1d0] sm:$0xff]
          %v4765 = vld [vmem:[#allocation4 + $0x1d8] sm:$0xff]
          %v4766 = vld [vmem:[#allocation4 + $0x1e0] sm:$0xff]
          %v4767 = vld [vmem:[#allocation4 + $0x1e8] sm:$0xff]
          %v4768 = vld [vmem:[#allocation4 + $0x1f0] sm:$0xff]
          %v4769 = vld [vmem:[#allocation4 + $0x1f8] sm:$0xff]
          %v4770 = vld [vmem:[#allocation3] sm:$0xff]
          %v4771 = vld [vmem:[#allocation3 + $0x8] sm:$0xff]
          %v4772 = vld [vmem:[#allocation3 + $0x10] sm:$0xff]
          %v4773 = vld [vmem:[#allocation3 + $0x18] sm:$0xff]
          %v4774 = vld [vmem:[#allocation3 + $0x20] sm:$0xff]
          %v4775 = vld [vmem:[#allocation3 + $0x28] sm:$0xff]
          %v4776 = vld [vmem:[#allocation3 + $0x30] sm:$0xff]
          %v4777 = vld [vmem:[#allocation3 + $0x38] sm:$0xff]
          %v4778 = vld [vmem:[#allocation3 + $0x40] sm:$0xff]
          %v4779 = vld [vmem:[#allocation3 + $0x48] sm:$0xff]
          %v4780 = vld [vmem:[#allocation3 + $0x50] sm:$0xff]
          %v4781 = vld [vmem:[#allocation3 + $0x58] sm:$0xff]
          %v4782 = vld [vmem:[#allocation3 + $0x60] sm:$0xff]
          %v4783 = vld [vmem:[#allocation3 + $0x68] sm:$0xff]
          %v4784 = vld [vmem:[#allocation3 + $0x70] sm:$0xff]
          %v4785 = vld [vmem:[#allocation3 + $0x78] sm:$0xff]
          %v4786 = vrcp.pop %v4770
          %v4787 = vrcp.pop %v4771
          %v4788 = vrcp.pop %v4772
          %v4789 = vrcp.pop %v4773
          %v4790 = vrcp.pop %v4774
          %v4791 = vrcp.pop %v4775
          %v4792 = vrcp.pop %v4776
          %v4793 = vrcp.pop %v4777
          %v4794 = vrcp.pop %v4778
          %v4795 = vrcp.pop %v4779
          %v4796 = vrcp.pop %v4780
          %v4797 = vrcp.pop %v4781
          %v4798 = vrcp.pop %v4782
          %v4799 = vrcp.pop %v4783
          %v4800 = vrcp.pop %v4784
          %v4801 = vrcp.pop %v4785
          %4803 = vset.pattern.permute.xlu0 0
          %4804 = vperm.xlu0 %4803, %v4786
          %v4805 = vpop.permute.xlu0 %4804
          %4808 = vset.pattern.permute.xlu0 0
          %4809 = vperm.xlu0 %4808, %v4787
          %v4810 = vpop.permute.xlu0 %4809
          %4813 = vset.pattern.permute.xlu0 0
          %4814 = vperm.xlu0 %4813, %v4788
          %v4815 = vpop.permute.xlu0 %4814
          %4818 = vset.pattern.permute.xlu0 0
          %4819 = vperm.xlu0 %4818, %v4789
          %v4820 = vpop.permute.xlu0 %4819
          %4823 = vset.pattern.permute.xlu0 0
          %4824 = vperm.xlu0 %4823, %v4790
          %v4825 = vpop.permute.xlu0 %4824
          %4828 = vset.pattern.permute.xlu0 0
          %4829 = vperm.xlu0 %4828, %v4791
          %v4830 = vpop.permute.xlu0 %4829
          %4833 = vset.pattern.permute.xlu0 0
          %4834 = vperm.xlu0 %4833, %v4792
          %v4835 = vpop.permute.xlu0 %4834
          %4838 = vset.pattern.permute.xlu0 0
          %4839 = vperm.xlu0 %4838, %v4793
          %v4840 = vpop.permute.xlu0 %4839
          %4843 = vset.pattern.permute.xlu0 0
          %4844 = vperm.xlu0 %4843, %v4794
          %v4845 = vpop.permute.xlu0 %4844
          %4848 = vset.pattern.permute.xlu0 0
          %4849 = vperm.xlu0 %4848, %v4795
          %v4850 = vpop.permute.xlu0 %4849
          %4853 = vset.pattern.permute.xlu0 0
          %4854 = vperm.xlu0 %4853, %v4796
          %v4855 = vpop.permute.xlu0 %4854
          %4858 = vset.pattern.permute.xlu0 0
          %4859 = vperm.xlu0 %4858, %v4797
          %v4860 = vpop.permute.xlu0 %4859
          %4863 = vset.pattern.permute.xlu0 0
          %4864 = vperm.xlu0 %4863, %v4798
          %v4865 = vpop.permute.xlu0 %4864
          %4868 = vset.pattern.permute.xlu0 0
          %4869 = vperm.xlu0 %4868, %v4799
          %v4870 = vpop.permute.xlu0 %4869
          %4873 = vset.pattern.permute.xlu0 0
          %4874 = vperm.xlu0 %4873, %v4800
          %v4875 = vpop.permute.xlu0 %4874
          %4878 = vset.pattern.permute.xlu0 0
          %4879 = vperm.xlu0 %4878, %v4801
          %v4880 = vpop.permute.xlu0 %4879
          %v4882 = vmul.f32 %v4706, %v4805
          %v4883 = vmul.f32 %v4707, %v4805
          %v4884 = vmul.f32 %v4708, %v4805
          %v4885 = vmul.f32 %v4709, %v4805
          %v4886 = vmul.f32 %v4710, %v4810
          %v4887 = vmul.f32 %v4711, %v4810
          %v4888 = vmul.f32 %v4712, %v4810
          %v4889 = vmul.f32 %v4713, %v4810
          %v4890 = vmul.f32 %v4714, %v4815
          %v4891 = vmul.f32 %v4715, %v4815
          %v4892 = vmul.f32 %v4716, %v4815
          %v4893 = vmul.f32 %v4717, %v4815
          %v4894 = vmul.f32 %v4718, %v4820
          %v4895 = vmul.f32 %v4719, %v4820
          %v4896 = vmul.f32 %v4720, %v4820
          %v4897 = vmul.f32 %v4721, %v4820
          %v4898 = vmul.f32 %v4722, %v4825
          %v4899 = vmul.f32 %v4723, %v4825
          %v4900 = vmul.f32 %v4724, %v4825
          %v4901 = vmul.f32 %v4725, %v4825
          %v4902 = vmul.f32 %v4726, %v4830
          %v4903 = vmul.f32 %v4727, %v4830
          %v4904 = vmul.f32 %v4728, %v4830
          %v4905 = vmul.f32 %v4729, %v4830
          %v4906 = vmul.f32 %v4730, %v4835
          %v4907 = vmul.f32 %v4731, %v4835
          %v4908 = vmul.f32 %v4732, %v4835
          %v4909 = vmul.f32 %v4733, %v4835
          %v4910 = vmul.f32 %v4734, %v4840
          %v4911 = vmul.f32 %v4735, %v4840
          %v4912 = vmul.f32 %v4736, %v4840
          %v4913 = vmul.f32 %v4737, %v4840
          %v4914 = vmul.f32 %v4738, %v4845
          %v4915 = vmul.f32 %v4739, %v4845
          %v4916 = vmul.f32 %v4740, %v4845
          %v4917 = vmul.f32 %v4741, %v4845
          %v4918 = vmul.f32 %v4742, %v4850
          %v4919 = vmul.f32 %v4743, %v4850
          %v4920 = vmul.f32 %v4744, %v4850
          %v4921 = vmul.f32 %v4745, %v4850
          %v4922 = vmul.f32 %v4746, %v4855
          %v4923 = vmul.f32 %v4747, %v4855
          %v4924 = vmul.f32 %v4748, %v4855
          %v4925 = vmul.f32 %v4749, %v4855
          %v4926 = vmul.f32 %v4750, %v4860
          %v4927 = vmul.f32 %v4751, %v4860
          %v4928 = vmul.f32 %v4752, %v4860
          %v4929 = vmul.f32 %v4753, %v4860
          %v4930 = vmul.f32 %v4754, %v4865
          %v4931 = vmul.f32 %v4755, %v4865
          %v4932 = vmul.f32 %v4756, %v4865
          %v4933 = vmul.f32 %v4757, %v4865
          %v4934 = vmul.f32 %v4758, %v4870
          %v4935 = vmul.f32 %v4759, %v4870
          %v4936 = vmul.f32 %v4760, %v4870
          %v4937 = vmul.f32 %v4761, %v4870
          %v4938 = vmul.f32 %v4762, %v4875
          %v4939 = vmul.f32 %v4763, %v4875
          %v4940 = vmul.f32 %v4764, %v4875
          %v4941 = vmul.f32 %v4765, %v4875
          %v4942 = vmul.f32 %v4766, %v4880
          %v4943 = vmul.f32 %v4767, %v4880
          %v4944 = vmul.f32 %v4768, %v4880
          %v4945 = vmul.f32 %v4769, %v4880
          %v4946 = vadd.f32 %v4882, %v4883
          %v4947 = vadd.f32 %v4946, %v4884
          %v4948 = vadd.f32 %v4947, %v4885
          %4949 = vadd.xlane.f32.xlu0 %v4948
          %v4950 = vpop.xlane.xlu0 %4949
          %v4951 = vadd.f32 %v4886, %v4887
          %v4952 = vadd.f32 %v4951, %v4888
          %v4953 = vadd.f32 %v4952, %v4889
          %4954 = vadd.xlane.f32.xlu0 %v4953
          %v4955 = vpop.xlane.xlu0 %4954
          %v4956 = vadd.f32 %v4890, %v4891
          %v4957 = vadd.f32 %v4956, %v4892
          %v4958 = vadd.f32 %v4957, %v4893
          %4959 = vadd.xlane.f32.xlu0 %v4958
          %v4960 = vpop.xlane.xlu0 %4959
          %v4961 = vadd.f32 %v4894, %v4895
          %v4962 = vadd.f32 %v4961, %v4896
          %v4963 = vadd.f32 %v4962, %v4897
          %4964 = vadd.xlane.f32.xlu0 %v4963
          %v4965 = vpop.xlane.xlu0 %4964
          %v4966 = vadd.f32 %v4898, %v4899
          %v4967 = vadd.f32 %v4966, %v4900
          %v4968 = vadd.f32 %v4967, %v4901
          %4969 = vadd.xlane.f32.xlu0 %v4968
          %v4970 = vpop.xlane.xlu0 %4969
          %v4971 = vadd.f32 %v4902, %v4903
          %v4972 = vadd.f32 %v4971, %v4904
          %v4973 = vadd.f32 %v4972, %v4905
          %4974 = vadd.xlane.f32.xlu0 %v4973
          %v4975 = vpop.xlane.xlu0 %4974
          %v4976 = vadd.f32 %v4906, %v4907
          %v4977 = vadd.f32 %v4976, %v4908
          %v4978 = vadd.f32 %v4977, %v4909
          %4979 = vadd.xlane.f32.xlu0 %v4978
          %v4980 = vpop.xlane.xlu0 %4979
          %v4981 = vadd.f32 %v4910, %v4911
          %v4982 = vadd.f32 %v4981, %v4912
          %v4983 = vadd.f32 %v4982, %v4913
          %4984 = vadd.xlane.f32.xlu0 %v4983
          %v4985 = vpop.xlane.xlu0 %4984
          %v4986 = vadd.f32 %v4914, %v4915
          %v4987 = vadd.f32 %v4986, %v4916
          %v4988 = vadd.f32 %v4987, %v4917
          %4989 = vadd.xlane.f32.xlu0 %v4988
          %v4990 = vpop.xlane.xlu0 %4989
          %v4991 = vadd.f32 %v4918, %v4919
          %v4992 = vadd.f32 %v4991, %v4920
          %v4993 = vadd.f32 %v4992, %v4921
          %4994 = vadd.xlane.f32.xlu0 %v4993
          %v4995 = vpop.xlane.xlu0 %4994
          %v4996 = vadd.f32 %v4922, %v4923
          %v4997 = vadd.f32 %v4996, %v4924
          %v4998 = vadd.f32 %v4997, %v4925
          %4999 = vadd.xlane.f32.xlu0 %v4998
          %v5000 = vpop.xlane.xlu0 %4999
          %v5001 = vadd.f32 %v4926, %v4927
          %v5002 = vadd.f32 %v5001, %v4928
          %v5003 = vadd.f32 %v5002, %v4929
          %5004 = vadd.xlane.f32.xlu0 %v5003
          %v5005 = vpop.xlane.xlu0 %5004
          %v5006 = vadd.f32 %v4930, %v4931
          %v5007 = vadd.f32 %v5006, %v4932
          %v5008 = vadd.f32 %v5007, %v4933
          %5009 = vadd.xlane.f32.xlu0 %v5008
          %v5010 = vpop.xlane.xlu0 %5009
          %v5011 = vadd.f32 %v4934, %v4935
          %v5012 = vadd.f32 %v5011, %v4936
          %v5013 = vadd.f32 %v5012, %v4937
          %5014 = vadd.xlane.f32.xlu0 %v5013
          %v5015 = vpop.xlane.xlu0 %5014
          %v5016 = vadd.f32 %v4938, %v4939
          %v5017 = vadd.f32 %v5016, %v4940
          %v5018 = vadd.f32 %v5017, %v4941
          %5019 = vadd.xlane.f32.xlu0 %v5018
          %v5020 = vpop.xlane.xlu0 %5019
          %v5021 = vadd.f32 %v4942, %v4943
          %v5022 = vadd.f32 %v5021, %v4944
          %v5023 = vadd.f32 %v5022, %v4945
          %5024 = vadd.xlane.f32.xlu0 %v5023
          %v5025 = vpop.xlane.xlu0 %5024
          %v5026 = vrcp.pop 512.0
          %v5027 = vmul.f32 %v4950, %v5026
          %v5028 = vmul.f32 %v4955, %v5026
          %v5029 = vmul.f32 %v4960, %v5026
          %v5030 = vmul.f32 %v4965, %v5026
          %v5031 = vmul.f32 %v4970, %v5026
          %v5032 = vmul.f32 %v4975, %v5026
          %v5033 = vmul.f32 %v4980, %v5026
          %v5034 = vmul.f32 %v4985, %v5026
          %v5035 = vmul.f32 %v4990, %v5026
          %v5036 = vmul.f32 %v4995, %v5026
          %v5037 = vmul.f32 %v5000, %v5026
          %v5038 = vmul.f32 %v5005, %v5026
          %v5039 = vmul.f32 %v5010, %v5026
          %v5040 = vmul.f32 %v5015, %v5026
          %v5041 = vmul.f32 %v5020, %v5026
          %v5042 = vmul.f32 %v5025, %v5026
          %v5043 = vsub.f32 %v4882, %v5027
          %v5044 = vsub.f32 %v4883, %v5027
          %v5045 = vsub.f32 %v4884, %v5027
          %v5046 = vsub.f32 %v4885, %v5027
          %v5047 = vsub.f32 %v4886, %v5028
          %v5048 = vsub.f32 %v4887, %v5028
          %v5049 = vsub.f32 %v4888, %v5028
          %v5050 = vsub.f32 %v4889, %v5028
          %v5051 = vsub.f32 %v4890, %v5029
          %v5052 = vsub.f32 %v4891, %v5029
          %v5053 = vsub.f32 %v4892, %v5029
          %v5054 = vsub.f32 %v4893, %v5029
          %v5055 = vsub.f32 %v4894, %v5030
          %v5056 = vsub.f32 %v4895, %v5030
          %v5057 = vsub.f32 %v4896, %v5030
          %v5058 = vsub.f32 %v4897, %v5030
          %v5059 = vsub.f32 %v4898, %v5031
          %v5060 = vsub.f32 %v4899, %v5031
          %v5061 = vsub.f32 %v4900, %v5031
          %v5062 = vsub.f32 %v4901, %v5031
          %v5063 = vsub.f32 %v4902, %v5032
          %v5064 = vsub.f32 %v4903, %v5032
          %v5065 = vsub.f32 %v4904, %v5032
          %v5066 = vsub.f32 %v4905, %v5032
          %v5067 = vsub.f32 %v4906, %v5033
          %v5068 = vsub.f32 %v4907, %v5033
          %v5069 = vsub.f32 %v4908, %v5033
          %v5070 = vsub.f32 %v4909, %v5033
          %v5071 = vsub.f32 %v4910, %v5034
          %v5072 = vsub.f32 %v4911, %v5034
          %v5073 = vsub.f32 %v4912, %v5034
          %v5074 = vsub.f32 %v4913, %v5034
          %v5075 = vsub.f32 %v4914, %v5035
          %v5076 = vsub.f32 %v4915, %v5035
          %v5077 = vsub.f32 %v4916, %v5035
          %v5078 = vsub.f32 %v4917, %v5035
          %v5079 = vsub.f32 %v4918, %v5036
          %v5080 = vsub.f32 %v4919, %v5036
          %v5081 = vsub.f32 %v4920, %v5036
          %v5082 = vsub.f32 %v4921, %v5036
          %v5083 = vsub.f32 %v4922, %v5037
          %v5084 = vsub.f32 %v4923, %v5037
          %v5085 = vsub.f32 %v4924, %v5037
          %v5086 = vsub.f32 %v4925, %v5037
          %v5087 = vsub.f32 %v4926, %v5038
          %v5088 = vsub.f32 %v4927, %v5038
          %v5089 = vsub.f32 %v4928, %v5038
          %v5090 = vsub.f32 %v4929, %v5038
          %v5091 = vsub.f32 %v4930, %v5039
          %v5092 = vsub.f32 %v4931, %v5039
          %v5093 = vsub.f32 %v4932, %v5039
          %v5094 = vsub.f32 %v4933, %v5039
          %v5095 = vsub.f32 %v4934, %v5040
          %v5096 = vsub.f32 %v4935, %v5040
          %v5097 = vsub.f32 %v4936, %v5040
          %v5098 = vsub.f32 %v4937, %v5040
          %v5099 = vsub.f32 %v4938, %v5041
          %v5100 = vsub.f32 %v4939, %v5041
          %v5101 = vsub.f32 %v4940, %v5041
          %v5102 = vsub.f32 %v4941, %v5041
          %v5103 = vsub.f32 %v4942, %v5042
          %v5104 = vsub.f32 %v4943, %v5042
          %v5105 = vsub.f32 %v4944, %v5042
          %v5106 = vsub.f32 %v4945, %v5042
          %v5107 = vmul.f32 %v5043, %v5043
          %v5108 = vmul.f32 %v5044, %v5044
          %v5109 = vmul.f32 %v5045, %v5045
          %v5110 = vmul.f32 %v5046, %v5046
          %v5111 = vmul.f32 %v5047, %v5047
          %v5112 = vmul.f32 %v5048, %v5048
          %v5113 = vmul.f32 %v5049, %v5049
          %v5114 = vmul.f32 %v5050, %v5050
          %v5115 = vmul.f32 %v5051, %v5051
          %v5116 = vmul.f32 %v5052, %v5052
          %v5117 = vmul.f32 %v5053, %v5053
          %v5118 = vmul.f32 %v5054, %v5054
          %v5119 = vmul.f32 %v5055, %v5055
          %v5120 = vmul.f32 %v5056, %v5056
          %v5121 = vmul.f32 %v5057, %v5057
          %v5122 = vmul.f32 %v5058, %v5058
          %v5123 = vmul.f32 %v5059, %v5059
          %v5124 = vmul.f32 %v5060, %v5060
          %v5125 = vmul.f32 %v5061, %v5061
          %v5126 = vmul.f32 %v5062, %v5062
          %v5127 = vmul.f32 %v5063, %v5063
          %v5128 = vmul.f32 %v5064, %v5064
          %v5129 = vmul.f32 %v5065, %v5065
          %v5130 = vmul.f32 %v5066, %v5066
          %v5131 = vmul.f32 %v5067, %v5067
          %v5132 = vmul.f32 %v5068, %v5068
          %v5133 = vmul.f32 %v5069, %v5069
          %v5134 = vmul.f32 %v5070, %v5070
          %v5135 = vmul.f32 %v5071, %v5071
          %v5136 = vmul.f32 %v5072, %v5072
          %v5137 = vmul.f32 %v5073, %v5073
          %v5138 = vmul.f32 %v5074, %v5074
          %v5139 = vmul.f32 %v5075, %v5075
          %v5140 = vmul.f32 %v5076, %v5076
          %v5141 = vmul.f32 %v5077, %v5077
          %v5142 = vmul.f32 %v5078, %v5078
          %v5143 = vmul.f32 %v5079, %v5079
          %v5144 = vmul.f32 %v5080, %v5080
          %v5145 = vmul.f32 %v5081, %v5081
          %v5146 = vmul.f32 %v5082, %v5082
          %v5147 = vmul.f32 %v5083, %v5083
          %v5148 = vmul.f32 %v5084, %v5084
          %v5149 = vmul.f32 %v5085, %v5085
          %v5150 = vmul.f32 %v5086, %v5086
          %v5151 = vmul.f32 %v5087, %v5087
          %v5152 = vmul.f32 %v5088, %v5088
          %v5153 = vmul.f32 %v5089, %v5089
          %v5154 = vmul.f32 %v5090, %v5090
          %v5155 = vmul.f32 %v5091, %v5091
          %v5156 = vmul.f32 %v5092, %v5092
          %v5157 = vmul.f32 %v5093, %v5093
          %v5158 = vmul.f32 %v5094, %v5094
          %v5159 = vmul.f32 %v5095, %v5095
          %v5160 = vmul.f32 %v5096, %v5096
          %v5161 = vmul.f32 %v5097, %v5097
          %v5162 = vmul.f32 %v5098, %v5098
          %v5163 = vmul.f32 %v5099, %v5099
          %v5164 = vmul.f32 %v5100, %v5100
          %v5165 = vmul.f32 %v5101, %v5101
          %v5166 = vmul.f32 %v5102, %v5102
          %v5167 = vmul.f32 %v5103, %v5103
          %v5168 = vmul.f32 %v5104, %v5104
          %v5169 = vmul.f32 %v5105, %v5105
          %v5170 = vmul.f32 %v5106, %v5106
          %v5171 = vadd.f32 %v5107, %v5108
          %v5172 = vadd.f32 %v5171, %v5109
          %v5173 = vadd.f32 %v5172, %v5110
          %5174 = vadd.xlane.f32.xlu0 %v5173
          %v5175 = vpop.xlane.xlu0 %5174
          %v5176 = vadd.f32 %v5111, %v5112
          %v5177 = vadd.f32 %v5176, %v5113
          %v5178 = vadd.f32 %v5177, %v5114
          %5179 = vadd.xlane.f32.xlu0 %v5178
          %v5180 = vpop.xlane.xlu0 %5179
          %v5181 = vadd.f32 %v5115, %v5116
          %v5182 = vadd.f32 %v5181, %v5117
          %v5183 = vadd.f32 %v5182, %v5118
          %5184 = vadd.xlane.f32.xlu0 %v5183
          %v5185 = vpop.xlane.xlu0 %5184
          %v5186 = vadd.f32 %v5119, %v5120
          %v5187 = vadd.f32 %v5186, %v5121
          %v5188 = vadd.f32 %v5187, %v5122
          %5189 = vadd.xlane.f32.xlu0 %v5188
          %v5190 = vpop.xlane.xlu0 %5189
          %v5191 = vadd.f32 %v5123, %v5124
          %v5192 = vadd.f32 %v5191, %v5125
          %v5193 = vadd.f32 %v5192, %v5126
          %5194 = vadd.xlane.f32.xlu0 %v5193
          %v5195 = vpop.xlane.xlu0 %5194
          %v5196 = vadd.f32 %v5127, %v5128
          %v5197 = vadd.f32 %v5196, %v5129
          %v5198 = vadd.f32 %v5197, %v5130
          %5199 = vadd.xlane.f32.xlu0 %v5198
          %v5200 = vpop.xlane.xlu0 %5199
          %v5201 = vadd.f32 %v5131, %v5132
          %v5202 = vadd.f32 %v5201, %v5133
          %v5203 = vadd.f32 %v5202, %v5134
          %5204 = vadd.xlane.f32.xlu0 %v5203
          %v5205 = vpop.xlane.xlu0 %5204
          %v5206 = vadd.f32 %v5135, %v5136
          %v5207 = vadd.f32 %v5206, %v5137
          %v5208 = vadd.f32 %v5207, %v5138
          %5209 = vadd.xlane.f32.xlu0 %v5208
          %v5210 = vpop.xlane.xlu0 %5209
          %v5211 = vadd.f32 %v5139, %v5140
          %v5212 = vadd.f32 %v5211, %v5141
          %v5213 = vadd.f32 %v5212, %v5142
          %5214 = vadd.xlane.f32.xlu0 %v5213
          %v5215 = vpop.xlane.xlu0 %5214
          %v5216 = vadd.f32 %v5143, %v5144
          %v5217 = vadd.f32 %v5216, %v5145
          %v5218 = vadd.f32 %v5217, %v5146
          %5219 = vadd.xlane.f32.xlu0 %v5218
          %v5220 = vpop.xlane.xlu0 %5219
          %v5221 = vadd.f32 %v5147, %v5148
          %v5222 = vadd.f32 %v5221, %v5149
          %v5223 = vadd.f32 %v5222, %v5150
          %5224 = vadd.xlane.f32.xlu0 %v5223
          %v5225 = vpop.xlane.xlu0 %5224
          %v5226 = vadd.f32 %v5151, %v5152
          %v5227 = vadd.f32 %v5226, %v5153
          %v5228 = vadd.f32 %v5227, %v5154
          %5229 = vadd.xlane.f32.xlu0 %v5228
          %v5230 = vpop.xlane.xlu0 %5229
          %v5231 = vadd.f32 %v5155, %v5156
          %v5232 = vadd.f32 %v5231, %v5157
          %v5233 = vadd.f32 %v5232, %v5158
          %5234 = vadd.xlane.f32.xlu0 %v5233
          %v5235 = vpop.xlane.xlu0 %5234
          %v5236 = vadd.f32 %v5159, %v5160
          %v5237 = vadd.f32 %v5236, %v5161
          %v5238 = vadd.f32 %v5237, %v5162
          %5239 = vadd.xlane.f32.xlu0 %v5238
          %v5240 = vpop.xlane.xlu0 %5239
          %v5241 = vadd.f32 %v5163, %v5164
          %v5242 = vadd.f32 %v5241, %v5165
          %v5243 = vadd.f32 %v5242, %v5166
          %5244 = vadd.xlane.f32.xlu0 %v5243
          %v5245 = vpop.xlane.xlu0 %5244
          %v5246 = vadd.f32 %v5167, %v5168
          %v5247 = vadd.f32 %v5246, %v5169
          %v5248 = vadd.f32 %v5247, %v5170
          %5249 = vadd.xlane.f32.xlu0 %v5248
          %v5250 = vpop.xlane.xlu0 %5249
          %v5251 = vmul.f32 %v5175, %v5026
          %v5252 = vmul.f32 %v5180, %v5026
          %v5253 = vmul.f32 %v5185, %v5026
          %v5254 = vmul.f32 %v5190, %v5026
          %v5255 = vmul.f32 %v5195, %v5026
          %v5256 = vmul.f32 %v5200, %v5026
          %v5257 = vmul.f32 %v5205, %v5026
          %v5258 = vmul.f32 %v5210, %v5026
          %v5259 = vmul.f32 %v5215, %v5026
          %v5260 = vmul.f32 %v5220, %v5026
          %v5261 = vmul.f32 %v5225, %v5026
          %v5262 = vmul.f32 %v5230, %v5026
          %v5263 = vmul.f32 %v5235, %v5026
          %v5264 = vmul.f32 %v5240, %v5026
          %v5265 = vmul.f32 %v5245, %v5026
          %v5266 = vmul.f32 %v5250, %v5026
          %v5267 = vadd.f32 %v5251, 1e-05
          %v5268 = vadd.f32 %v5252, 1e-05
          %v5269 = vadd.f32 %v5253, 1e-05
          %v5270 = vadd.f32 %v5254, 1e-05
          %v5271 = vadd.f32 %v5255, 1e-05
          %v5272 = vadd.f32 %v5256, 1e-05
          %v5273 = vadd.f32 %v5257, 1e-05
          %v5274 = vadd.f32 %v5258, 1e-05
          %v5275 = vadd.f32 %v5259, 1e-05
          %v5276 = vadd.f32 %v5260, 1e-05
          %v5277 = vadd.f32 %v5261, 1e-05
          %v5278 = vadd.f32 %v5262, 1e-05
          %v5279 = vadd.f32 %v5263, 1e-05
          %v5280 = vadd.f32 %v5264, 1e-05
          %v5281 = vadd.f32 %v5265, 1e-05
          %v5282 = vadd.f32 %v5266, 1e-05
          %v5283 = vrsqrt.pop %v5267
          %v5284 = vrsqrt.pop %v5268
          %v5285 = vrsqrt.pop %v5269
          %v5286 = vrsqrt.pop %v5270
          %v5287 = vrsqrt.pop %v5271
          %v5288 = vrsqrt.pop %v5272
          %v5289 = vrsqrt.pop %v5273
          %v5290 = vrsqrt.pop %v5274
          %v5291 = vrsqrt.pop %v5275
          %v5292 = vrsqrt.pop %v5276
          %v5293 = vrsqrt.pop %v5277
          %v5294 = vrsqrt.pop %v5278
          %v5295 = vrsqrt.pop %v5279
          %v5296 = vrsqrt.pop %v5280
          %v5297 = vrsqrt.pop %v5281
          %v5298 = vrsqrt.pop %v5282
          %v5299 = vmul.f32 %v5043, %v5283
          %v5300 = vmul.f32 %v5044, %v5283
          %v5301 = vmul.f32 %v5045, %v5283
          %v5302 = vmul.f32 %v5046, %v5283
          %v5303 = vmul.f32 %v5047, %v5284
          %v5304 = vmul.f32 %v5048, %v5284
          %v5305 = vmul.f32 %v5049, %v5284
          %v5306 = vmul.f32 %v5050, %v5284
          %v5307 = vmul.f32 %v5051, %v5285
          %v5308 = vmul.f32 %v5052, %v5285
          %v5309 = vmul.f32 %v5053, %v5285
          %v5310 = vmul.f32 %v5054, %v5285
          %v5311 = vmul.f32 %v5055, %v5286
          %v5312 = vmul.f32 %v5056, %v5286
          %v5313 = vmul.f32 %v5057, %v5286
          %v5314 = vmul.f32 %v5058, %v5286
          %v5315 = vmul.f32 %v5059, %v5287
          %v5316 = vmul.f32 %v5060, %v5287
          %v5317 = vmul.f32 %v5061, %v5287
          %v5318 = vmul.f32 %v5062, %v5287
          %v5319 = vmul.f32 %v5063, %v5288
          %v5320 = vmul.f32 %v5064, %v5288
          %v5321 = vmul.f32 %v5065, %v5288
          %v5322 = vmul.f32 %v5066, %v5288
          %v5323 = vmul.f32 %v5067, %v5289
          %v5324 = vmul.f32 %v5068, %v5289
          %v5325 = vmul.f32 %v5069, %v5289
          %v5326 = vmul.f32 %v5070, %v5289
          %v5327 = vmul.f32 %v5071, %v5290
          %v5328 = vmul.f32 %v5072, %v5290
          %v5329 = vmul.f32 %v5073, %v5290
          %v5330 = vmul.f32 %v5074, %v5290
          %v5331 = vmul.f32 %v5075, %v5291
          %v5332 = vmul.f32 %v5076, %v5291
          %v5333 = vmul.f32 %v5077, %v5291
          %v5334 = vmul.f32 %v5078, %v5291
          %v5335 = vmul.f32 %v5079, %v5292
          %v5336 = vmul.f32 %v5080, %v5292
          %v5337 = vmul.f32 %v5081, %v5292
          %v5338 = vmul.f32 %v5082, %v5292
          %v5339 = vmul.f32 %v5083, %v5293
          %v5340 = vmul.f32 %v5084, %v5293
          %v5341 = vmul.f32 %v5085, %v5293
          %v5342 = vmul.f32 %v5086, %v5293
          %v5343 = vmul.f32 %v5087, %v5294
          %v5344 = vmul.f32 %v5088, %v5294
          %v5345 = vmul.f32 %v5089, %v5294
          %v5346 = vmul.f32 %v5090, %v5294
          %v5347 = vmul.f32 %v5091, %v5295
          %v5348 = vmul.f32 %v5092, %v5295
          %v5349 = vmul.f32 %v5093, %v5295
          %v5350 = vmul.f32 %v5094, %v5295
          %v5351 = vmul.f32 %v5095, %v5296
          %v5352 = vmul.f32 %v5096, %v5296
          %v5353 = vmul.f32 %v5097, %v5296
          %v5354 = vmul.f32 %v5098, %v5296
          %v5355 = vmul.f32 %v5099, %v5297
          %v5356 = vmul.f32 %v5100, %v5297
          %v5357 = vmul.f32 %v5101, %v5297
          %v5358 = vmul.f32 %v5102, %v5297
          %v5359 = vmul.f32 %v5103, %v5298
          %v5360 = vmul.f32 %v5104, %v5298
          %v5361 = vmul.f32 %v5105, %v5298
          %v5362 = vmul.f32 %v5106, %v5298
          %v5363 = vpack.c.bf16 %v5303, %v5299
          %v5364 = vpack.c.bf16 %v5304, %v5300
          %v5365 = vpack.c.bf16 %v5305, %v5301
          %v5366 = vpack.c.bf16 %v5306, %v5302
          %v5367 = vpack.c.bf16 %v5311, %v5307
          %v5368 = vpack.c.bf16 %v5312, %v5308
          %v5369 = vpack.c.bf16 %v5313, %v5309
          %v5370 = vpack.c.bf16 %v5314, %v5310
          %v5371 = vpack.c.bf16 %v5319, %v5315
          %v5372 = vpack.c.bf16 %v5320, %v5316
          %v5373 = vpack.c.bf16 %v5321, %v5317
          %v5374 = vpack.c.bf16 %v5322, %v5318
          %v5375 = vpack.c.bf16 %v5327, %v5323
          %v5376 = vpack.c.bf16 %v5328, %v5324
          %v5377 = vpack.c.bf16 %v5329, %v5325
          %v5378 = vpack.c.bf16 %v5330, %v5326
          %v5379 = vpack.c.bf16 %v5335, %v5331
          %v5380 = vpack.c.bf16 %v5336, %v5332
          %v5381 = vpack.c.bf16 %v5337, %v5333
          %v5382 = vpack.c.bf16 %v5338, %v5334
          %v5383 = vpack.c.bf16 %v5343, %v5339
          %v5384 = vpack.c.bf16 %v5344, %v5340
          %v5385 = vpack.c.bf16 %v5345, %v5341
          %v5386 = vpack.c.bf16 %v5346, %v5342
          %v5387 = vpack.c.bf16 %v5351, %v5347
          %v5388 = vpack.c.bf16 %v5352, %v5348
          %v5389 = vpack.c.bf16 %v5353, %v5349
          %v5390 = vpack.c.bf16 %v5354, %v5350
          %v5391 = vpack.c.bf16 %v5359, %v5355
          %v5392 = vpack.c.bf16 %v5360, %v5356
          %v5393 = vpack.c.bf16 %v5361, %v5357
          %v5394 = vpack.c.bf16 %v5362, %v5358
          %v5395 = vld [vmem:[#allocation15] sm:$0xf]
          %v5396 = vld [vmem:[#allocation15 + $0x4] sm:$0xf]
          %v5397 = vld [vmem:[#allocation15 + $0x8] sm:$0xf]
          %v5398 = vld [vmem:[#allocation15 + $0xc] sm:$0xf]
          %v5399 = vld [vmem:[#allocation15 + $0x10] sm:$0xf]
          %v5400 = vld [vmem:[#allocation15 + $0x14] sm:$0xf]
          %v5401 = vld [vmem:[#allocation15 + $0x18] sm:$0xf]
          %v5402 = vld [vmem:[#allocation15 + $0x1c] sm:$0xf]
          %v5403 = vld [vmem:[#allocation15 + $0x20] sm:$0xf]
          %v5404 = vld [vmem:[#allocation15 + $0x24] sm:$0xf]
          %v5405 = vld [vmem:[#allocation15 + $0x28] sm:$0xf]
          %v5406 = vld [vmem:[#allocation15 + $0x2c] sm:$0xf]
          %v5407 = vld [vmem:[#allocation15 + $0x30] sm:$0xf]
          %v5408 = vld [vmem:[#allocation15 + $0x34] sm:$0xf]
          %v5409 = vld [vmem:[#allocation15 + $0x38] sm:$0xf]
          %v5410 = vld [vmem:[#allocation15 + $0x3c] sm:$0xf]
          %v5411 = vld [vmem:[#allocation15 + $0x40] sm:$0xf]
          %v5412 = vld [vmem:[#allocation15 + $0x44] sm:$0xf]
          %v5413 = vld [vmem:[#allocation15 + $0x48] sm:$0xf]
          %v5414 = vld [vmem:[#allocation15 + $0x4c] sm:$0xf]
          %v5415 = vld [vmem:[#allocation15 + $0x50] sm:$0xf]
          %v5416 = vld [vmem:[#allocation15 + $0x54] sm:$0xf]
          %v5417 = vld [vmem:[#allocation15 + $0x58] sm:$0xf]
          %v5418 = vld [vmem:[#allocation15 + $0x5c] sm:$0xf]
          %v5419 = vld [vmem:[#allocation15 + $0x60] sm:$0xf]
          %v5420 = vld [vmem:[#allocation15 + $0x64] sm:$0xf]
          %v5421 = vld [vmem:[#allocation15 + $0x68] sm:$0xf]
          %v5422 = vld [vmem:[#allocation15 + $0x6c] sm:$0xf]
          %v5423 = vld [vmem:[#allocation15 + $0x70] sm:$0xf]
          %v5424 = vld [vmem:[#allocation15 + $0x74] sm:$0xf]
          %v5425 = vld [vmem:[#allocation15 + $0x78] sm:$0xf]
          %v5426 = vld [vmem:[#allocation15 + $0x7c] sm:$0xf]
          %v5427 = vld [vmem:[#allocation15 + $0x80] sm:$0xf]
          %v5428 = vld [vmem:[#allocation15 + $0x84] sm:$0xf]
          %v5429 = vld [vmem:[#allocation15 + $0x88] sm:$0xf]
          %v5430 = vld [vmem:[#allocation15 + $0x8c] sm:$0xf]
          %v5431 = vld [vmem:[#allocation15 + $0x90] sm:$0xf]
          %v5432 = vld [vmem:[#allocation15 + $0x94] sm:$0xf]
          %v5433 = vld [vmem:[#allocation15 + $0x98] sm:$0xf]
          %v5434 = vld [vmem:[#allocation15 + $0x9c] sm:$0xf]
          %v5435 = vld [vmem:[#allocation15 + $0xa0] sm:$0xf]
          %v5436 = vld [vmem:[#allocation15 + $0xa4] sm:$0xf]
          %v5437 = vld [vmem:[#allocation15 + $0xa8] sm:$0xf]
          %v5438 = vld [vmem:[#allocation15 + $0xac] sm:$0xf]
          %v5439 = vld [vmem:[#allocation15 + $0xb0] sm:$0xf]
          %v5440 = vld [vmem:[#allocation15 + $0xb4] sm:$0xf]
          %v5441 = vld [vmem:[#allocation15 + $0xb8] sm:$0xf]
          %v5442 = vld [vmem:[#allocation15 + $0xbc] sm:$0xf]
          %v5443 = vld [vmem:[#allocation15 + $0xc0] sm:$0xf]
          %v5444 = vld [vmem:[#allocation15 + $0xc4] sm:$0xf]
          %v5445 = vld [vmem:[#allocation15 + $0xc8] sm:$0xf]
          %v5446 = vld [vmem:[#allocation15 + $0xcc] sm:$0xf]
          %v5447 = vld [vmem:[#allocation15 + $0xd0] sm:$0xf]
          %v5448 = vld [vmem:[#allocation15 + $0xd4] sm:$0xf]
          %v5449 = vld [vmem:[#allocation15 + $0xd8] sm:$0xf]
          %v5450 = vld [vmem:[#allocation15 + $0xdc] sm:$0xf]
          %v5451 = vld [vmem:[#allocation15 + $0xe0] sm:$0xf]
          %v5452 = vld [vmem:[#allocation15 + $0xe4] sm:$0xf]
          %v5453 = vld [vmem:[#allocation15 + $0xe8] sm:$0xf]
          %v5454 = vld [vmem:[#allocation15 + $0xec] sm:$0xf]
          %v5455 = vld [vmem:[#allocation15 + $0xf0] sm:$0xf]
          %v5456 = vld [vmem:[#allocation15 + $0xf4] sm:$0xf]
          %v5457 = vld [vmem:[#allocation15 + $0xf8] sm:$0xf]
          %v5458 = vld [vmem:[#allocation15 + $0xfc] sm:$0xf]
          %v5459 = vld [vmem:[#allocation16] sm:$0x1]
          %v5461 = vlaneseq
          %v5462 = vshrl.u32 %v5461, 7
          %v5463 = vsub.s32 0, %v5462
          %v5464 = vrot.slane %v5459, %v5463
          %v5530 = vunpack.c.l.b16 %v5395
          %v5531 = vunpack.c.l.b16 %v5396
          %v5532 = vunpack.c.l.b16 %v5397
          %v5533 = vunpack.c.l.b16 %v5398
          %v5534 = vunpack.c.l.b16 %v5399
          %v5535 = vunpack.c.l.b16 %v5400
          %v5536 = vunpack.c.l.b16 %v5401
          %v5537 = vunpack.c.l.b16 %v5402
          %v5538 = vunpack.c.l.b16 %v5403
          %v5539 = vunpack.c.l.b16 %v5404
          %v5540 = vunpack.c.l.b16 %v5405
          %v5541 = vunpack.c.l.b16 %v5406
          %v5542 = vunpack.c.l.b16 %v5407
          %v5543 = vunpack.c.l.b16 %v5408
          %v5544 = vunpack.c.l.b16 %v5409
          %v5545 = vunpack.c.l.b16 %v5410
          %v5546 = vunpack.c.l.b16 %v5411
          %v5547 = vunpack.c.l.b16 %v5412
          %v5548 = vunpack.c.l.b16 %v5413
          %v5549 = vunpack.c.l.b16 %v5414
          %v5550 = vunpack.c.l.b16 %v5415
          %v5551 = vunpack.c.l.b16 %v5416
          %v5552 = vunpack.c.l.b16 %v5417
          %v5553 = vunpack.c.l.b16 %v5418
          %v5554 = vunpack.c.l.b16 %v5419
          %v5555 = vunpack.c.l.b16 %v5420
          %v5556 = vunpack.c.l.b16 %v5421
          %v5557 = vunpack.c.l.b16 %v5422
          %v5558 = vunpack.c.l.b16 %v5423
          %v5559 = vunpack.c.l.b16 %v5424
          %v5560 = vunpack.c.l.b16 %v5425
          %v5561 = vunpack.c.l.b16 %v5426
          %v5562 = vunpack.c.l.b16 %v5427
          %v5563 = vunpack.c.l.b16 %v5428
          %v5564 = vunpack.c.l.b16 %v5429
          %v5565 = vunpack.c.l.b16 %v5430
          %v5566 = vunpack.c.l.b16 %v5431
          %v5567 = vunpack.c.l.b16 %v5432
          %v5568 = vunpack.c.l.b16 %v5433
          %v5569 = vunpack.c.l.b16 %v5434
          %v5570 = vunpack.c.l.b16 %v5435
          %v5571 = vunpack.c.l.b16 %v5436
          %v5572 = vunpack.c.l.b16 %v5437
          %v5573 = vunpack.c.l.b16 %v5438
          %v5574 = vunpack.c.l.b16 %v5439
          %v5575 = vunpack.c.l.b16 %v5440
          %v5576 = vunpack.c.l.b16 %v5441
          %v5577 = vunpack.c.l.b16 %v5442
          %v5578 = vunpack.c.l.b16 %v5443
          %v5579 = vunpack.c.l.b16 %v5444
          %v5580 = vunpack.c.l.b16 %v5445
          %v5581 = vunpack.c.l.b16 %v5446
          %v5582 = vunpack.c.l.b16 %v5447
          %v5583 = vunpack.c.l.b16 %v5448
          %v5584 = vunpack.c.l.b16 %v5449
          %v5585 = vunpack.c.l.b16 %v5450
          %v5586 = vunpack.c.l.b16 %v5451
          %v5587 = vunpack.c.l.b16 %v5452
          %v5588 = vunpack.c.l.b16 %v5453
          %v5589 = vunpack.c.l.b16 %v5454
          %v5590 = vunpack.c.l.b16 %v5455
          %v5591 = vunpack.c.l.b16 %v5456
          %v5592 = vunpack.c.l.b16 %v5457
          %v5593 = vunpack.c.l.b16 %v5458
          %v5594 = vpack.c.b16 %v5531, %v5530
          %v5595 = vpack.c.b16 %v5533, %v5532
          %v5596 = vpack.c.b16 %v5535, %v5534
          %v5597 = vpack.c.b16 %v5537, %v5536
          %v5598 = vpack.c.b16 %v5539, %v5538
          %v5599 = vpack.c.b16 %v5541, %v5540
          %v5600 = vpack.c.b16 %v5543, %v5542
          %v5601 = vpack.c.b16 %v5545, %v5544
          %v5602 = vpack.c.b16 %v5547, %v5546
          %v5603 = vpack.c.b16 %v5549, %v5548
          %v5604 = vpack.c.b16 %v5551, %v5550
          %v5605 = vpack.c.b16 %v5553, %v5552
          %v5606 = vpack.c.b16 %v5555, %v5554
          %v5607 = vpack.c.b16 %v5557, %v5556
          %v5608 = vpack.c.b16 %v5559, %v5558
          %v5609 = vpack.c.b16 %v5561, %v5560
          %v5610 = vpack.c.b16 %v5563, %v5562
          %v5611 = vpack.c.b16 %v5565, %v5564
          %v5612 = vpack.c.b16 %v5567, %v5566
          %v5613 = vpack.c.b16 %v5569, %v5568
          %v5614 = vpack.c.b16 %v5571, %v5570
          %v5615 = vpack.c.b16 %v5573, %v5572
          %v5616 = vpack.c.b16 %v5575, %v5574
          %v5617 = vpack.c.b16 %v5577, %v5576
          %v5618 = vpack.c.b16 %v5579, %v5578
          %v5619 = vpack.c.b16 %v5581, %v5580
          %v5620 = vpack.c.b16 %v5583, %v5582
          %v5621 = vpack.c.b16 %v5585, %v5584
          %v5622 = vpack.c.b16 %v5587, %v5586
          %v5623 = vpack.c.b16 %v5589, %v5588
          %v5624 = vpack.c.b16 %v5591, %v5590
          %v5625 = vpack.c.b16 %v5593, %v5592
          %5658 = vmatprep.subr.bf16.mxu0 0
          %5659 = vmatpush1.bf16.msra.mxu0 %v5594
          %5660 = vmatprep.subr.bf16.mxu0 0
          %5661 = vmatpush1.bf16.msra.mxu0 %v5595
          %5662 = vmatprep.subr.bf16.mxu0 0
          %5663 = vmatpush1.bf16.msra.mxu0 %v5596
          %5664 = vmatprep.subr.bf16.mxu0 0
          %5665 = vmatpush1.bf16.msra.mxu0 %v5597
          %5666 = vmatprep.subr.bf16.mxu0 0
          %5667 = vmatpush1.bf16.msra.mxu0 %v5598
          %5668 = vmatprep.subr.bf16.mxu0 0
          %5669 = vmatpush1.bf16.msra.mxu0 %v5599
          %5670 = vmatprep.subr.bf16.mxu0 0
          %5671 = vmatpush1.bf16.msra.mxu0 %v5600
          %5672 = vmatprep.subr.bf16.mxu0 0
          %5673 = vmatpush1.bf16.msra.mxu0 %v5601
          %5674 = vmatprep.subr.bf16.mxu0 0
          %5675 = vmatpush1.bf16.msra.mxu0 %v5602
          %5676 = vmatprep.subr.bf16.mxu0 0
          %5677 = vmatpush1.bf16.msra.mxu0 %v5603
          %5678 = vmatprep.subr.bf16.mxu0 0
          %5679 = vmatpush1.bf16.msra.mxu0 %v5604
          %5680 = vmatprep.subr.bf16.mxu0 0
          %5681 = vmatpush1.bf16.msra.mxu0 %v5605
          %5682 = vmatprep.subr.bf16.mxu0 0
          %5683 = vmatpush1.bf16.msra.mxu0 %v5606
          %5684 = vmatprep.subr.bf16.mxu0 0
          %5685 = vmatpush1.bf16.msra.mxu0 %v5607
          %5686 = vmatprep.subr.bf16.mxu0 0
          %5687 = vmatpush1.bf16.msra.mxu0 %v5608
          %5688 = vmatprep.subr.bf16.mxu0 0
          %5689 = vmatpush1.bf16.msra.mxu0 %v5609
          %5690 = vmatprep.mubr.bf16.mxu0 %v5364
          %5691 = vmatmul.mubr.bf16.gmra.mrb[0].mxu0 %v5363
          %v5692 = vpop.f32.mrb[0].mxu0
          %v5693 = vadd.f32 %v5464, %v5692
          %v5694 = vpop.f32.mrb[0].mxu0
          %v5695 = vpop.f32.mrb[0].mxu0
          %v5696 = vadd.f32 %v5464, %v5695
          %v5697 = vpop.f32.mrb[0].mxu0
          %5698 = vmatprep.mubr.bf16.mxu0 %v5368
          %5699 = vmatmul.mubr.bf16.gmra.mrb[0].mxu0 %v5367
          %v5700 = vpop.f32.mrb[0].mxu0
          %v5701 = vadd.f32 %v5464, %v5700
          %v5702 = vpop.f32.mrb[0].mxu0
          %v5703 = vpop.f32.mrb[0].mxu0
          %v5704 = vadd.f32 %v5464, %v5703
          %v5705 = vpop.f32.mrb[0].mxu0
          %5706 = vmatprep.mubr.bf16.mxu0 %v5372
          %5707 = vmatmul.mubr.bf16.gmra.mrb[0].mxu0 %v5371
          %v5708 = vpop.f32.mrb[0].mxu0
          %v5709 = vadd.f32 %v5464, %v5708
          %v5710 = vpop.f32.mrb[0].mxu0
          %v5711 = vpop.f32.mrb[0].mxu0
          %v5712 = vadd.f32 %v5464, %v5711
          %v5713 = vpop.f32.mrb[0].mxu0
          %5714 = vmatprep.mubr.bf16.mxu0 %v5376
          %5715 = vmatmul.mubr.bf16.gmra.mrb[0].mxu0 %v5375
          %v5716 = vpop.f32.mrb[0].mxu0
          %v5717 = vadd.f32 %v5464, %v5716
          %v5718 = vpop.f32.mrb[0].mxu0
          %v5719 = vpop.f32.mrb[0].mxu0
          %v5720 = vadd.f32 %v5464, %v5719
          %v5721 = vpop.f32.mrb[0].mxu0
          %5722 = vmatprep.mubr.bf16.mxu0 %v5380
          %5723 = vmatmul.mubr.bf16.gmra.mrb[0].mxu0 %v5379
          %v5724 = vpop.f32.mrb[0].mxu0
          %v5725 = vadd.f32 %v5464, %v5724
          %v5726 = vpop.f32.mrb[0].mxu0
          %v5727 = vpop.f32.mrb[0].mxu0
          %v5728 = vadd.f32 %v5464, %v5727
          %v5729 = vpop.f32.mrb[0].mxu0
          %5730 = vmatprep.mubr.bf16.mxu0 %v5384
          %5731 = vmatmul.mubr.bf16.gmra.mrb[0].mxu0 %v5383
          %v5732 = vpop.f32.mrb[0].mxu0
          %v5733 = vadd.f32 %v5464, %v5732
          %v5734 = vpop.f32.mrb[0].mxu0
          %v5735 = vpop.f32.mrb[0].mxu0
          %v5736 = vadd.f32 %v5464, %v5735
          %v5737 = vpop.f32.mrb[0].mxu0
          %5738 = vmatprep.mubr.bf16.mxu0 %v5388
          %5739 = vmatmul.mubr.bf16.gmra.mrb[0].mxu0 %v5387
          %v5740 = vpop.f32.mrb[0].mxu0
          %v5741 = vadd.f32 %v5464, %v5740
          %v5742 = vpop.f32.mrb[0].mxu0
          %v5743 = vpop.f32.mrb[0].mxu0
          %v5744 = vadd.f32 %v5464, %v5743
          %v5745 = vpop.f32.mrb[0].mxu0
          %5746 = vmatprep.mubr.bf16.mxu0 %v5392
          %5747 = vmatmul.mubr.bf16.gmra.mrb[0].mxu0 %v5391
          %v5748 = vpop.f32.mrb[0].mxu0
          %v5749 = vadd.f32 %v5464, %v5748
          %v5750 = vpop.f32.mrb[0].mxu0
          %v5751 = vpop.f32.mrb[0].mxu0
          %v5752 = vadd.f32 %v5464, %v5751
          %v5753 = vpop.f32.mrb[0].mxu0
          %5754 = vdwg.mxu0
          %5755 = vmatprep.subr.bf16.mxu0 0
          %5756 = vmatpush1.bf16.msra.mxu0 %v5610
          %5757 = vmatprep.subr.bf16.mxu0 0
          %5758 = vmatpush1.bf16.msra.mxu0 %v5611
          %5759 = vmatprep.subr.bf16.mxu0 0
          %5760 = vmatpush1.bf16.msra.mxu0 %v5612
          %5761 = vmatprep.subr.bf16.mxu0 0
          %5762 = vmatpush1.bf16.msra.mxu0 %v5613
          %5763 = vmatprep.subr.bf16.mxu0 0
          %5764 = vmatpush1.bf16.msra.mxu0 %v5614
          %5765 = vmatprep.subr.bf16.mxu0 0
          %5766 = vmatpush1.bf16.msra.mxu0 %v5615
          %5767 = vmatprep.subr.bf16.mxu0 0
          %5768 = vmatpush1.bf16.msra.mxu0 %v5616
          %5769 = vmatprep.subr.bf16.mxu0 0
          %5770 = vmatpush1.bf16.msra.mxu0 %v5617
          %5771 = vmatprep.subr.bf16.mxu0 0
          %5772 = vmatpush1.bf16.msra.mxu0 %v5618
          %5773 = vmatprep.subr.bf16.mxu0 0
          %5774 = vmatpush1.bf16.msra.mxu0 %v5619
          %5775 = vmatprep.subr.bf16.mxu0 0
          %5776 = vmatpush1.bf16.msra.mxu0 %v5620
          %5777 = vmatprep.subr.bf16.mxu0 0
          %5778 = vmatpush1.bf16.msra.mxu0 %v5621
          %5779 = vmatprep.subr.bf16.mxu0 0
          %5780 = vmatpush1.bf16.msra.mxu0 %v5622
          %5781 = vmatprep.subr.bf16.mxu0 0
          %5782 = vmatpush1.bf16.msra.mxu0 %v5623
          %5783 = vmatprep.subr.bf16.mxu0 0
          %5784 = vmatpush1.bf16.msra.mxu0 %v5624
          %5785 = vmatprep.subr.bf16.mxu0 0
          %5786 = vmatpush1.bf16.msra.mxu0 %v5625
          %5787 = vmatprep.mubr.bf16.mxu0 %v5366
          %5788 = vmatmul.mubr.bf16.gmra.mrb[0].mxu0 %v5365
          %v5789 = vpop.f32.mrb[0].mxu0
          %v5790 = vadd.f32 %v5693, %v5789
          %v5791 = vpop.f32.mrb[0].mxu0
          %v5792 = vpop.f32.mrb[0].mxu0
          %v5793 = vadd.f32 %v5696, %v5792
          %v5794 = vpop.f32.mrb[0].mxu0
          %5795 = vmatprep.mubr.bf16.mxu0 %v5370
          %5796 = vmatmul.mubr.bf16.gmra.mrb[0].mxu0 %v5369
          %v5797 = vpop.f32.mrb[0].mxu0
          %v5798 = vadd.f32 %v5701, %v5797
          %v5799 = vpop.f32.mrb[0].mxu0
          %v5800 = vpop.f32.mrb[0].mxu0
          %v5801 = vadd.f32 %v5704, %v5800
          %v5802 = vpop.f32.mrb[0].mxu0
          %5803 = vmatprep.mubr.bf16.mxu0 %v5374
          %5804 = vmatmul.mubr.bf16.gmra.mrb[0].mxu0 %v5373
          %v5805 = vpop.f32.mrb[0].mxu0
          %v5806 = vadd.f32 %v5709, %v5805
          %v5807 = vpop.f32.mrb[0].mxu0
          %v5808 = vpop.f32.mrb[0].mxu0
          %v5809 = vadd.f32 %v5712, %v5808
          %v5810 = vpop.f32.mrb[0].mxu0
          %5811 = vmatprep.mubr.bf16.mxu0 %v5378
          %5812 = vmatmul.mubr.bf16.gmra.mrb[0].mxu0 %v5377
          %v5813 = vpop.f32.mrb[0].mxu0
          %v5814 = vadd.f32 %v5717, %v5813
          %v5815 = vpop.f32.mrb[0].mxu0
          %v5816 = vpop.f32.mrb[0].mxu0
          %v5817 = vadd.f32 %v5720, %v5816
          %v5818 = vpop.f32.mrb[0].mxu0
          %5819 = vmatprep.mubr.bf16.mxu0 %v5382
          %5820 = vmatmul.mubr.bf16.gmra.mrb[0].mxu0 %v5381
          %v5821 = vpop.f32.mrb[0].mxu0
          %v5822 = vadd.f32 %v5725, %v5821
          %v5823 = vpop.f32.mrb[0].mxu0
          %v5824 = vpop.f32.mrb[0].mxu0
          %v5825 = vadd.f32 %v5728, %v5824
          %v5826 = vpop.f32.mrb[0].mxu0
          %5827 = vmatprep.mubr.bf16.mxu0 %v5386
          %5828 = vmatmul.mubr.bf16.gmra.mrb[0].mxu0 %v5385
          %v5829 = vpop.f32.mrb[0].mxu0
          %v5830 = vadd.f32 %v5733, %v5829
          %v5831 = vpop.f32.mrb[0].mxu0
          %v5832 = vpop.f32.mrb[0].mxu0
          %v5833 = vadd.f32 %v5736, %v5832
          %v5834 = vpop.f32.mrb[0].mxu0
          %5835 = vmatprep.mubr.bf16.mxu0 %v5390
          %5836 = vmatmul.mubr.bf16.gmra.mrb[0].mxu0 %v5389
          %v5837 = vpop.f32.mrb[0].mxu0
          %v5838 = vadd.f32 %v5741, %v5837
          %v5839 = vpop.f32.mrb[0].mxu0
          %v5840 = vpop.f32.mrb[0].mxu0
          %v5841 = vadd.f32 %v5744, %v5840
          %v5842 = vpop.f32.mrb[0].mxu0
          %5843 = vmatprep.mubr.bf16.mxu0 %v5394
          %5844 = vmatmul.mubr.bf16.gmra.mrb[0].mxu0 %v5393
          %v5845 = vpop.f32.mrb[0].mxu0
          %v5846 = vadd.f32 %v5749, %v5845
          %v5847 = vpop.f32.mrb[0].mxu0
          %v5848 = vpop.f32.mrb[0].mxu0
          %v5849 = vadd.f32 %v5752, %v5848
          %v5850 = vpop.f32.mrb[0].mxu0
          %5851 = vdwg.mxu0
          %v5852 = vmax.f32 %v5790, 0.0
          %v5853 = vmax.f32 %v5793, 0.0
          %v5854 = vmax.f32 %v5798, 0.0
          %v5855 = vmax.f32 %v5801, 0.0
          %v5856 = vmax.f32 %v5806, 0.0
          %v5857 = vmax.f32 %v5809, 0.0
          %v5858 = vmax.f32 %v5814, 0.0
          %v5859 = vmax.f32 %v5817, 0.0
          %v5860 = vmax.f32 %v5822, 0.0
          %v5861 = vmax.f32 %v5825, 0.0
          %v5862 = vmax.f32 %v5830, 0.0
          %v5863 = vmax.f32 %v5833, 0.0
          %v5864 = vmax.f32 %v5838, 0.0
          %v5865 = vmax.f32 %v5841, 0.0
          %v5866 = vmax.f32 %v5846, 0.0
          %v5867 = vmax.f32 %v5849, 0.0
          %5868 = vst [vmem:[%s544] sm:$0xff] %v5852
          %5869 = vst [vmem:[%s544 + $0x8] sm:$0xff] %v5853
          %5870 = vst [vmem:[%s544 + $0x10] sm:$0xff] %v5854
          %5871 = vst [vmem:[%s544 + $0x18] sm:$0xff] %v5855
          %5872 = vst [vmem:[%s544 + $0x20] sm:$0xff] %v5856
          %5873 = vst [vmem:[%s544 + $0x28] sm:$0xff] %v5857
          %5874 = vst [vmem:[%s544 + $0x30] sm:$0xff] %v5858
          %5875 = vst [vmem:[%s544 + $0x38] sm:$0xff] %v5859
          %5876 = vst [vmem:[%s544 + $0x40] sm:$0xff] %v5860
          %5877 = vst [vmem:[%s544 + $0x48] sm:$0xff] %v5861
          %5878 = vst [vmem:[%s544 + $0x50] sm:$0xff] %v5862
          %5879 = vst [vmem:[%s544 + $0x58] sm:$0xff] %v5863
          %5880 = vst [vmem:[%s544 + $0x60] sm:$0xff] %v5864
          %5881 = vst [vmem:[%s544 + $0x68] sm:$0xff] %v5865
          %5882 = vst [vmem:[%s544 + $0x70] sm:$0xff] %v5866
          %5883 = vst [vmem:[%s544 + $0x78] sm:$0xff] %v5867
        $region88: #{tpu_custom_call.1} parent=51 // pred_fallthru
          _
        %s5884 = sand.u32 %s271, 1
        %s5885 = scalar_lea.sflag [#allocation9], %s5884
        %s5886 = sand.u32 %s271, 1
        %s5887 = smul.addr %s5886, 128
        %s5888 = scalar_lea.vmem [#allocation18], %s5887
        // Predicated region
        $region89: #{tpu_custom_call.1} parent=51 // pred_check
          %p5889 = pneg %p281
        $region90: #{tpu_custom_call.1} parent=51 // pred_check_branch
          %5891 = sbr.rel (%p5889) target = $region92
        $region91: #{tpu_custom_call.1} parent=51 // pred_region
          %s5892 = sld [smem:[#allocation6 + %s42]]
          %s5894 = ssub.s32 2048, 2048
          %5895 = vsyncadd %s5885, %s5894
          %s5896 = smul.addr %s41, 16
          %s5897 = smul.addr %s5892, 32
          %s5898 = sadd.s32 %s5896, %s5897
          %s5899 = smul.addr %s5898, 128
          %s5900 = scalar_lea.hbm %s9, %s5899
          %s5901 = sshll.u32 %s5888, 4
          %s5902 = int_to_ptr.vmem [resolvable:$true] %s5901
          %5907 = dma.vmem_to_hbm [thread:$0]  %s5902, 2048, %s5900, %s5885, 128, 128, 8
        $region92: #{tpu_custom_call.1} parent=51 // pred_fallthru
          _
      $region52: #{tpu_custom_call.1} parent=5 // pred_fallthru
        _
      %p5908 = scmp.le.s32.totalorder 2, %s32
      // Predicated region
      $region93: #{tpu_custom_call.1} parent=5 // pred_check
        %p5909 = pneg %p5908
      $region94: #{tpu_custom_call.1} parent=5 // pred_check_branch
        %5911 = sbr.rel (%p5909) target = $region96
      $region95: #{tpu_custom_call.1} parent=5 // pred_region
        %s5912 = ssub.s32 %s32, 2
        // Predicated region
        $region97: #{tpu_custom_call.1} parent=95 // pred_check
          %p5913 = pneg %p287
        $region98: #{tpu_custom_call.1} parent=95 // pred_check_branch
          %5915 = sbr.rel (%p5913) target = $region100
        $region99: #{tpu_custom_call.1} parent=95 // pred_region
          %s5916 = sand.u32 %s272, 1
          %s5917 = scalar_lea.sflag [#allocation9], %s5916
          %s5918 = sand.u32 %s272, 1
          %s5919 = smul.addr %s5918, 128
          %s5920 = scalar_lea.vmem [#allocation18], %s5919
          %5921 = dma.done %s5917, 2048
        $region100: #{tpu_custom_call.1} parent=95 // pred_fallthru
          _
      $region96: #{tpu_custom_call.1} parent=5 // pred_fallthru
        _
    $region6: #{tpu_custom_call.1} parent=1 // loop_footer
      %s36 = sadd.s32 1, %s32
    $region7: #{tpu_custom_call.1} parent=1 // loop_footer_branch
      %31 = sbr.rel target = $region3
    $region8: #{tpu_custom_call.1} parent=1 // loop_exit
      _
    %5922 = vsyncpa [#allocation8], 1
    %s5923 = scalar_lea.sflag [#allocation8], 1
    %5924 = vsyncpa %s5923, 1
    %5925 = vsyncpa [#allocation11], 1
    %s5926 = scalar_lea.sflag [#allocation11], 1
    %5927 = vsyncpa %s5926, 1
    %5928 = vsyncpa [#allocation14], 1
    %s5929 = scalar_lea.sflag [#allocation14], 1
    %5930 = vsyncpa %s5929, 1
    %5931 = vsyncpa [#allocation17], 1
    %5932 = vsyncpa [#allocation9], 1
    %s5933 = scalar_lea.sflag [#allocation9], 1
    %5934 = vsyncpa %s5933, 1

</llo_original>
